<compile_context>
chip_gen: v6e
topology: v6e:2x2x1
jax: 0.10.0
libtpu: 0.0.40
codegen_flags: <defaults>
</compile_context>

<pallas_src>
import functools
import math

import jax
import jax.numpy as jnp
from jax.experimental import pallas as pl
from jax.experimental.pallas import tpu as pltpu


def mha_kernel(q_ref, k_ref, v_ref, wq_ref, wk_ref, wv_ref, wfc_ref,
               gamma_ref, beta_ref, o_ref, kh_ref, vh_ref, *, n_heads):
    # Grid step = (batch b, query-tile qi).
    # q_ref/o_ref blocks: (1, Tq, Dm); k_ref/v_ref blocks: (1, S, Dm)
    # w*_ref blocks: (H, Dm, Dm) bf16 (scale already folded into wq).
    # kh_ref/vh_ref: (H, S, Dm) bf16 VMEM scratch -- per-batch K/V head cache.
    qi = pl.program_id(1)

    # Project K and V once per batch (first query tile); reuse for all tiles.
    @pl.when(qi == 0)
    def _():
        k = k_ref[0].astype(jnp.bfloat16)              # (S, Dm)
        v = v_ref[0].astype(jnp.bfloat16)              # (S, Dm)
        for h in range(n_heads):                       # static unroll
            kh_ref[h] = jnp.dot(k, wk_ref[h],
                                preferred_element_type=jnp.float32
                                ).astype(jnp.bfloat16)
            vh_ref[h] = jnp.dot(v, wv_ref[h],
                                preferred_element_type=jnp.float32
                                ).astype(jnp.bfloat16)

    q_f32 = q_ref[0]                                   # (Tq, Dm) f32 -- residual
    q = q_f32.astype(jnp.bfloat16)

    out = jnp.zeros(q_f32.shape, jnp.float32)          # single f32 accumulator
    for h in range(n_heads):                           # static unroll; temps die here
        qh = jnp.dot(q, wq_ref[h],
                     preferred_element_type=jnp.float32).astype(jnp.bfloat16)
        kh = kh_ref[h]                                 # (S, Dm) bf16 (cached)
        vh = vh_ref[h]                                 # (S, Dm) bf16 (cached)

        # scores = (q Wq / sqrt(Dm)) @ (k Wk)^T -- contraction on last dims,
        # no explicit transpose materialized.
        s = jax.lax.dot_general(qh, kh, (((1,), (1,)), ((), ())),
                                preferred_element_type=jnp.float32)   # (Tq, S)

        # numerically-stable softmax; divide moved onto the EUP slot
        s = s - jnp.max(s, axis=-1, keepdims=True)
        p = jnp.exp(s)
        p = p * pl.reciprocal(jnp.sum(p, axis=-1, keepdims=True), approx=True)

        oh = jnp.dot(p.astype(jnp.bfloat16), vh,
                     preferred_element_type=jnp.float32)              # (Tq, Dm)

        # accumulate this head straight into the fc projection (no concat)
        out = out + jnp.dot(oh.astype(jnp.bfloat16), wfc_ref[h],
                            preferred_element_type=jnp.float32)       # (Tq, Dm)

    # TODO(synk): nn.Dropout implemented as identity (eval-mode semantics).
    out = out + q_f32                                  # residual (f32)

    # LayerNorm(d_model, eps=1e-6) in f32
    mean = jnp.mean(out, axis=-1, keepdims=True)
    var = jnp.mean(jnp.square(out - mean), axis=-1, keepdims=True)
    normed = (out - mean) * jax.lax.rsqrt(var + 1e-6)
    o_ref[0] = (normed * gamma_ref[...] + beta_ref[...]).astype(o_ref.dtype)


def multi_head_attention(q, k, v, wq, wk, wv, wfc, gamma, beta, *,
                         n_heads, q_tile=None):
    B, S, Dm = q.shape
    H = n_heads
    assert wq.shape == (Dm, H * Dm) and wfc.shape == (H * Dm, Dm)

    # ---- host-side weight prep --------------------------------------------
    # Fold 1/sqrt(d_model) into the Q projection, split packed projection
    # weights per head along a leading axis (kernel indexes heads on the cheap
    # leading dim), store MXU operands in bf16.
    scale = 1.0 / math.sqrt(Dm)            # d_k == d_model after the .view() quirk
    wq_h = (wq * scale).reshape(Dm, H, Dm).transpose(1, 0, 2).astype(jnp.bfloat16)
    wk_h = wk.reshape(Dm, H, Dm).transpose(1, 0, 2).astype(jnp.bfloat16)
    wv_h = wv.reshape(Dm, H, Dm).transpose(1, 0, 2).astype(jnp.bfloat16)
    wfc_h = wfc.reshape(H, Dm, Dm).astype(jnp.bfloat16)
    gamma2 = gamma.reshape(1, Dm).astype(jnp.float32)
    beta2 = beta.reshape(1, Dm).astype(jnp.float32)

    # ---- query tiling -------------------------------------------------------
    if q_tile is None:
        q_tile = next((t for t in (256, 128, 64, 32, 16, 8) if S % t == 0), S)
    Tq = min(q_tile, S)
    grid = (B, S // Tq)

    qo_spec = pl.BlockSpec((1, Tq, Dm), lambda b, qi: (b, qi, 0))
    kv_spec = pl.BlockSpec((1, S, Dm), lambda b, qi: (b, 0, 0))
    w_spec = pl.BlockSpec((H, Dm, Dm), lambda b, qi: (0, 0, 0))
    vec_spec = pl.BlockSpec((1, Dm), lambda b, qi: (0, 0))

    flops = (2 * B * S * Dm * (H * Dm)             # q projection
             + 2 * 2 * B * S * Dm * (H * Dm)       # k/v projections (once per batch)
             + 2 * 2 * B * H * S * S * Dm          # QK^T and PV
             + 2 * B * S * (H * Dm) * Dm)          # fc projection
    transcendentals = B * H * S * S                # softmax exp
    bytes_accessed = (3 * B * S * Dm * 4           # q, k, v (f32)
                      + 4 * H * Dm * Dm * 2        # bf16 weights
                      + 2 * Dm * 4                 # gamma, beta
                      + B * S * Dm * 4)            # output

    kernel = functools.partial(mha_kernel, n_heads=H)
    return pl.pallas_call(
        kernel,
        out_shape=jax.ShapeDtypeStruct((B, S, Dm), jnp.float32),
        grid=grid,
        in_specs=[qo_spec, kv_spec, kv_spec,
                  w_spec, w_spec, w_spec, w_spec,
                  vec_spec, vec_spec],
        out_specs=qo_spec,
        scratch_shapes=[pltpu.VMEM((H, S, Dm), jnp.bfloat16),   # K-head cache
                        pltpu.VMEM((H, S, Dm), jnp.bfloat16)],  # V-head cache
        compiler_params=pltpu.CompilerParams(
            dimension_semantics=("parallel", "arbitrary")),
        cost_estimate=pl.CostEstimate(flops=flops,
                                      transcendentals=transcendentals,
                                      bytes_accessed=bytes_accessed),
    )(q, k, v, wq_h, wk_h, wv_h, wfc_h, gamma2, beta2)


def reference_mha(q, k, v, wq, wk, wv, wfc, gamma, beta, n_heads):
    """Pure-JAX f32 mirror of the torch forward (dropout = identity)."""
    B, S, Dm = q.shape
    residual = q
    qp = (q @ wq).reshape(B, S, n_heads, Dm).transpose(0, 2, 1, 3)
    kp = (k @ wk).reshape(B, S, n_heads, Dm).transpose(0, 2, 1, 3)
    vp = (v @ wv).reshape(B, S, n_heads, Dm).transpose(0, 2, 1, 3)
    attn = jnp.einsum('bhqd,bhkd->bhqk', qp, kp) / math.sqrt(Dm)
    attn = jax.nn.softmax(attn, axis=-1)
    out = jnp.einsum('bhqk,bhkd->bhqd', attn, vp)
    out = out.transpose(0, 2, 1, 3).reshape(B, S, n_heads * Dm)
    out = out @ wfc
    out = out + residual
    mean = jnp.mean(out, axis=-1, keepdims=True)
    var = jnp.mean((out - mean) ** 2, axis=-1, keepdims=True)
    return (out - mean) * jax.lax.rsqrt(var + 1e-6) * gamma.reshape(1, 1, Dm) \
        + beta.reshape(1, 1, Dm)


if __name__ == "__main__":
    # Small but lane-dense shapes: d_model = 128 (multiple of the 128-lane vreg).
    B, S, Dm, H = 2, 128, 128, 2
    d_k = d_v = Dm  # required by the .view() in the reference forward

    key = jax.random.PRNGKey(0)
    kq, kk, kv, kwq, kwk, kwv, kfc = jax.random.split(key, 7)

    q = jax.random.normal(kq, (B, S, Dm), jnp.float32)
    k = jax.random.normal(kk, (B, S, Dm), jnp.float32)
    v = jax.random.normal(kv, (B, S, Dm), jnp.float32)

    def xavier_uniform(rng, out_f, in_f):
        bound = math.sqrt(6.0 / (in_f + out_f))
        # torch Linear weight layout is (out, in); transpose to (in, out).
        return jax.random.uniform(rng, (out_f, in_f), jnp.float32,
                                  -bound, bound).T

    wq = xavier_uniform(kwq, H * d_k, Dm)          # (Dm, H*Dm)
    wk = xavier_uniform(kwk, H * d_k, Dm)
    wv = xavier_uniform(kwv, H * d_v, Dm)

    fc_bound = 1.0 / math.sqrt(H * d_v)            # torch default Linear init
    wfc = jax.random.uniform(kfc, (Dm, H * d_v), jnp.float32,
                             -fc_bound, fc_bound).T  # (H*Dm, Dm)

    gamma = jnp.ones((Dm,), jnp.float32)           # LayerNorm weight
    beta = jnp.zeros((Dm,), jnp.float32)           # LayerNorm bias

    out = multi_head_attention(q, k, v, wq, wk, wv, wfc, gamma, beta, n_heads=H)
    out = jax.block_until_ready(out)

    ref = reference_mha(q, k, v, wq, wk, wv, wfc, gamma, beta, H)
    err = float(jnp.max(jnp.abs(out - ref)))
    # Tolerance loosened vs. a pure-f32 version: matmuls run on the MXU with
    # bf16 operands (f32 accumulation); LayerNorm/residual remain f32.
    assert err < 7.5e-2, f"mismatch vs reference: max abs err = {err}"

    print("KERNEL_OK")
</pallas_src>

<mosaic_0001>
module attributes {stable_mosaic.version = 11 : i64} {
  func.func @mha_kernel(%arg0: i32, %arg1: i32, %arg2: memref<1x128x128xf32, #tpu.memory_space<vmem>>, %arg3: memref<1x128x128xf32, #tpu.memory_space<vmem>>, %arg4: memref<1x128x128xf32, #tpu.memory_space<vmem>>, %arg5: memref<2x128x128xbf16, #tpu.memory_space<vmem>>, %arg6: memref<2x128x128xbf16, #tpu.memory_space<vmem>>, %arg7: memref<2x128x128xbf16, #tpu.memory_space<vmem>>, %arg8: memref<2x128x128xbf16, #tpu.memory_space<vmem>>, %arg9: memref<1x128xf32, #tpu.memory_space<vmem>>, %arg10: memref<1x128xf32, #tpu.memory_space<vmem>>, %arg11: memref<1x128x128xf32, #tpu.memory_space<vmem>>, %arg12: memref<2x128x128xbf16, #tpu.memory_space<vmem>>, %arg13: memref<2x128x128xbf16, #tpu.memory_space<vmem>>) attributes {dimension_semantics = [#tpu.dimension_semantics<parallel>, #tpu.dimension_semantics<arbitrary>], iteration_bounds = array<i64: 2, 1>, scalar_prefetch = 0 : i64, scratch_operands = 2 : i64, tpu.core_type = #tpu.core_type<tc>, window_params = [{transform_indices = @transform_0, window_bounds = array<i64: 1, 128, 128>}, {transform_indices = @transform_1, window_bounds = array<i64: 1, 128, 128>}, {transform_indices = @transform_2, window_bounds = array<i64: 1, 128, 128>}, {pipeline_mode = #tpu.pipeline_mode<synchronous>, transform_indices = @transform_3, window_bounds = array<i64: 2, 128, 128>}, {pipeline_mode = #tpu.pipeline_mode<synchronous>, transform_indices = @transform_4, window_bounds = array<i64: 2, 128, 128>}, {pipeline_mode = #tpu.pipeline_mode<synchronous>, transform_indices = @transform_5, window_bounds = array<i64: 2, 128, 128>}, {pipeline_mode = #tpu.pipeline_mode<synchronous>, transform_indices = @transform_6, window_bounds = array<i64: 2, 128, 128>}, {pipeline_mode = #tpu.pipeline_mode<synchronous>, transform_indices = @transform_7, window_bounds = array<i64: 1, 128>}, {pipeline_mode = #tpu.pipeline_mode<synchronous>, transform_indices = @transform_8, window_bounds = array<i64: 1, 128>}, {transform_indices = @transform_9, window_bounds = array<i64: 1, 128, 128>}]} {
    %c0_i32 = arith.constant 0 : i32
    %0 = arith.cmpi eq, %arg1, %c0_i32 : i32
    %1 = arith.extui %0 : i1 to i32
    %c0_i32_0 = arith.constant 0 : i32
    %2 = arith.cmpi ne, %1, %c0_i32_0 : i32
    scf.if %2 {
      %c0_50 = arith.constant 0 : index
      %c0_51 = arith.constant 0 : index
      %c0_52 = arith.constant 0 : index
      %87 = vector.load %arg3[%c0_50, %c0_51, %c0_52] : memref<1x128x128xf32, #tpu.memory_space<vmem>>, vector<1x128x128xf32>
      %88 = vector.shape_cast %87 : vector<1x128x128xf32> to vector<128x128xf32>
      %89 = arith.truncf %88 : vector<128x128xf32> to vector<128x128xbf16>
      %c0_53 = arith.constant 0 : index
      %c0_54 = arith.constant 0 : index
      %c0_55 = arith.constant 0 : index
      %90 = vector.load %arg4[%c0_53, %c0_54, %c0_55] : memref<1x128x128xf32, #tpu.memory_space<vmem>>, vector<1x128x128xf32>
      %91 = vector.shape_cast %90 : vector<1x128x128xf32> to vector<128x128xf32>
      %92 = arith.truncf %91 : vector<128x128xf32> to vector<128x128xbf16>
      %c0_56 = arith.constant 0 : index
      %c0_57 = arith.constant 0 : index
      %c0_58 = arith.constant 0 : index
      %93 = vector.load %arg6[%c0_56, %c0_57, %c0_58] : memref<2x128x128xbf16, #tpu.memory_space<vmem>>, vector<1x128x128xbf16>
      %94 = vector.shape_cast %93 : vector<1x128x128xbf16> to vector<128x128xbf16>
      %cst_59 = arith.constant dense<0.000000e+00> : vector<128x128xf32>
      %95 = tpu.matmul %89, %94, %cst_59 {dimension_numbers = #tpu.dot_dimension_numbers<[1], [0], [0], [1], [0, 0, 1, 1], [], []>} : vector<128x128xbf16>, vector<128x128xbf16>, vector<128x128xf32> -> vector<128x128xf32>
      %96 = arith.truncf %95 : vector<128x128xf32> to vector<128x128xbf16>
      %c0_60 = arith.constant 0 : index
      %c0_61 = arith.constant 0 : index
      %c0_62 = arith.constant 0 : index
      %97 = vector.load %arg12[%c0_60, %c0_61, %c0_62] : memref<2x128x128xbf16, #tpu.memory_space<vmem>>, vector<1x128x128xbf16>
      %98 = vector.shape_cast %97 : vector<1x128x128xbf16> to vector<128x128xbf16>
      %99 = vector.shape_cast %96 : vector<128x128xbf16> to vector<1x128x128xbf16>
      tpu.vector_store %arg12[%c0_60, %c0_61, %c0_62], %99 {strides = array<i32>} : memref<2x128x128xbf16, #tpu.memory_space<vmem>>, vector<1x128x128xbf16>,
      %c0_63 = arith.constant 0 : index
      %c0_64 = arith.constant 0 : index
      %c0_65 = arith.constant 0 : index
      %100 = vector.load %arg7[%c0_63, %c0_64, %c0_65] : memref<2x128x128xbf16, #tpu.memory_space<vmem>>, vector<1x128x128xbf16>
      %101 = vector.shape_cast %100 : vector<1x128x128xbf16> to vector<128x128xbf16>
      %cst_66 = arith.constant dense<0.000000e+00> : vector<128x128xf32>
      %102 = tpu.matmul %92, %101, %cst_66 {dimension_numbers = #tpu.dot_dimension_numbers<[1], [0], [0], [1], [0, 0, 1, 1], [], []>} : vector<128x128xbf16>, vector<128x128xbf16>, vector<128x128xf32> -> vector<128x128xf32>
      %103 = arith.truncf %102 : vector<128x128xf32> to vector<128x128xbf16>
      %c0_67 = arith.constant 0 : index
      %c0_68 = arith.constant 0 : index
      %c0_69 = arith.constant 0 : index
      %104 = vector.load %arg13[%c0_67, %c0_68, %c0_69] : memref<2x128x128xbf16, #tpu.memory_space<vmem>>, vector<1x128x128xbf16>
      %105 = vector.shape_cast %104 : vector<1x128x128xbf16> to vector<128x128xbf16>
      %106 = vector.shape_cast %103 : vector<128x128xbf16> to vector<1x128x128xbf16>
      tpu.vector_store %arg13[%c0_67, %c0_68, %c0_69], %106 {strides = array<i32>} : memref<2x128x128xbf16, #tpu.memory_space<vmem>>, vector<1x128x128xbf16>,
      %c1_70 = arith.constant 1 : index
      %c0_71 = arith.constant 0 : index
      %c0_72 = arith.constant 0 : index
      %107 = vector.load %arg6[%c1_70, %c0_71, %c0_72] : memref<2x128x128xbf16, #tpu.memory_space<vmem>>, vector<1x128x128xbf16>
      %108 = vector.shape_cast %107 : vector<1x128x128xbf16> to vector<128x128xbf16>
      %cst_73 = arith.constant dense<0.000000e+00> : vector<128x128xf32>
      %109 = tpu.matmul %89, %108, %cst_73 {dimension_numbers = #tpu.dot_dimension_numbers<[1], [0], [0], [1], [0, 0, 1, 1], [], []>} : vector<128x128xbf16>, vector<128x128xbf16>, vector<128x128xf32> -> vector<128x128xf32>
      %110 = arith.truncf %109 : vector<128x128xf32> to vector<128x128xbf16>
      %c1_74 = arith.constant 1 : index
      %c0_75 = arith.constant 0 : index
      %c0_76 = arith.constant 0 : index
      %111 = vector.load %arg12[%c1_74, %c0_75, %c0_76] : memref<2x128x128xbf16, #tpu.memory_space<vmem>>, vector<1x128x128xbf16>
      %112 = vector.shape_cast %111 : vector<1x128x128xbf16> to vector<128x128xbf16>
      %113 = vector.shape_cast %110 : vector<128x128xbf16> to vector<1x128x128xbf16>
      tpu.vector_store %arg12[%c1_74, %c0_75, %c0_76], %113 {strides = array<i32>} : memref<2x128x128xbf16, #tpu.memory_space<vmem>>, vector<1x128x128xbf16>,
      %c1_77 = arith.constant 1 : index
      %c0_78 = arith.constant 0 : index
      %c0_79 = arith.constant 0 : index
      %114 = vector.load %arg7[%c1_77, %c0_78, %c0_79] : memref<2x128x128xbf16, #tpu.memory_space<vmem>>, vector<1x128x128xbf16>
      %115 = vector.shape_cast %114 : vector<1x128x128xbf16> to vector<128x128xbf16>
      %cst_80 = arith.constant dense<0.000000e+00> : vector<128x128xf32>
      %116 = tpu.matmul %92, %115, %cst_80 {dimension_numbers = #tpu.dot_dimension_numbers<[1], [0], [0], [1], [0, 0, 1, 1], [], []>} : vector<128x128xbf16>, vector<128x128xbf16>, vector<128x128xf32> -> vector<128x128xf32>
      %117 = arith.truncf %116 : vector<128x128xf32> to vector<128x128xbf16>
      %c1_81 = arith.constant 1 : index
      %c0_82 = arith.constant 0 : index
      %c0_83 = arith.constant 0 : index
      %118 = vector.load %arg13[%c1_81, %c0_82, %c0_83] : memref<2x128x128xbf16, #tpu.memory_space<vmem>>, vector<1x128x128xbf16>
      %119 = vector.shape_cast %118 : vector<1x128x128xbf16> to vector<128x128xbf16>
      %120 = vector.shape_cast %117 : vector<128x128xbf16> to vector<1x128x128xbf16>
      tpu.vector_store %arg13[%c1_81, %c0_82, %c0_83], %120 {strides = array<i32>} : memref<2x128x128xbf16, #tpu.memory_space<vmem>>, vector<1x128x128xbf16>,
    } else {
    }
    %c0 = arith.constant 0 : index
    %c0_1 = arith.constant 0 : index
    %c0_2 = arith.constant 0 : index
    %3 = vector.load %arg2[%c0, %c0_1, %c0_2] : memref<1x128x128xf32, #tpu.memory_space<vmem>>, vector<1x128x128xf32>
    %4 = vector.shape_cast %3 : vector<1x128x128xf32> to vector<128x128xf32>
    %5 = arith.truncf %4 : vector<128x128xf32> to vector<128x128xbf16>
    %cst = arith.constant 0.000000e+00 : f32
    %6 = vector.broadcast %cst : f32 to vector<128x128xf32>
    %c0_3 = arith.constant 0 : index
    %c0_4 = arith.constant 0 : index
    %c0_5 = arith.constant 0 : index
    %7 = vector.load %arg5[%c0_3, %c0_4, %c0_5] : memref<2x128x128xbf16, #tpu.memory_space<vmem>>, vector<1x128x128xbf16>
    %8 = vector.shape_cast %7 : vector<1x128x128xbf16> to vector<128x128xbf16>
    %cst_6 = arith.constant dense<0.000000e+00> : vector<128x128xf32>
    %9 = tpu.matmul %5, %8, %cst_6 {dimension_numbers = #tpu.dot_dimension_numbers<[1], [0], [0], [1], [0, 0, 1, 1], [], []>} : vector<128x128xbf16>, vector<128x128xbf16>, vector<128x128xf32> -> vector<128x128xf32>
    %10 = arith.truncf %9 : vector<128x128xf32> to vector<128x128xbf16>
    %c0_7 = arith.constant 0 : index
    %c0_8 = arith.constant 0 : index
    %c0_9 = arith.constant 0 : index
    %11 = vector.load %arg12[%c0_7, %c0_8, %c0_9] : memref<2x128x128xbf16, #tpu.memory_space<vmem>>, vector<1x128x128xbf16>
    %12 = vector.shape_cast %11 : vector<1x128x128xbf16> to vector<128x128xbf16>
    %c0_10 = arith.constant 0 : index
    %c0_11 = arith.constant 0 : index
    %c0_12 = arith.constant 0 : index
    %13 = vector.load %arg13[%c0_10, %c0_11, %c0_12] : memref<2x128x128xbf16, #tpu.memory_space<vmem>>, vector<1x128x128xbf16>
    %14 = vector.shape_cast %13 : vector<1x128x128xbf16> to vector<128x128xbf16>
    %cst_13 = arith.constant dense<0.000000e+00> : vector<128x128xf32>
    %15 = tpu.matmul %10, %12, %cst_13 {dimension_numbers = #tpu.dot_dimension_numbers<[1], [1], [0], [0], [0, 0, 1, 0], [], []>} : vector<128x128xbf16>, vector<128x128xbf16>, vector<128x128xf32> -> vector<128x128xf32>
    %cst_14 = arith.constant dense<0xFF800000> : vector<128xf32>
    %16 = vector.multi_reduction <maximumf>, %15, %cst_14 [1] : vector<128x128xf32> to vector<128xf32>
    %17 = vector.shape_cast %16 : vector<128xf32> to vector<128x1xf32>
    %18 = vector.broadcast %17 : vector<128x1xf32> to vector<128x128xf32>
    %19 = arith.subf %15, %18 : vector<128x128xf32>
    %20 = math.exp %19 : vector<128x128xf32>
    %cst_15 = arith.constant dense<0.000000e+00> : vector<128xf32>
    %21 = vector.multi_reduction <add>, %20, %cst_15 [1] : vector<128x128xf32> to vector<128xf32>
    %22 = vector.shape_cast %21 : vector<128xf32> to vector<128x1xf32>
    %23 = tpu.reciprocal %22 {approx = true} : vector<128x1xf32> -> vector<128x1xf32>
    %24 = vector.broadcast %23 : vector<128x1xf32> to vector<128x128xf32>
    %25 = arith.mulf %20, %24 : vector<128x128xf32>
    %26 = arith.truncf %25 : vector<128x128xf32> to vector<128x128xbf16>
    %cst_16 = arith.constant dense<0.000000e+00> : vector<128x128xf32>
    %27 = tpu.matmul %26, %14, %cst_16 {dimension_numbers = #tpu.dot_dimension_numbers<[1], [0], [0], [1], [0, 0, 1, 1], [], []>} : vector<128x128xbf16>, vector<128x128xbf16>, vector<128x128xf32> -> vector<128x128xf32>
    %28 = arith.truncf %27 : vector<128x128xf32> to vector<128x128xbf16>
    %c0_17 = arith.constant 0 : index
    %c0_18 = arith.constant 0 : index
    %c0_19 = arith.constant 0 : index
    %29 = vector.load %arg8[%c0_17, %c0_18, %c0_19] : memref<2x128x128xbf16, #tpu.memory_space<vmem>>, vector<1x128x128xbf16>
    %30 = vector.shape_cast %29 : vector<1x128x128xbf16> to vector<128x128xbf16>
    %cst_20 = arith.constant dense<0.000000e+00> : vector<128x128xf32>
    %31 = tpu.matmul %28, %30, %cst_20 {dimension_numbers = #tpu.dot_dimension_numbers<[1], [0], [0], [1], [0, 0, 1, 1], [], []>} : vector<128x128xbf16>, vector<128x128xbf16>, vector<128x128xf32> -> vector<128x128xf32>
    %32 = arith.addf %6, %31 : vector<128x128xf32>
    %c1 = arith.constant 1 : index
    %c0_21 = arith.constant 0 : index
    %c0_22 = arith.constant 0 : index
    %33 = vector.load %arg5[%c1, %c0_21, %c0_22] : memref<2x128x128xbf16, #tpu.memory_space<vmem>>, vector<1x128x128xbf16>
    %34 = vector.shape_cast %33 : vector<1x128x128xbf16> to vector<128x128xbf16>
    %cst_23 = arith.constant dense<0.000000e+00> : vector<128x128xf32>
    %35 = tpu.matmul %5, %34, %cst_23 {dimension_numbers = #tpu.dot_dimension_numbers<[1], [0], [0], [1], [0, 0, 1, 1], [], []>} : vector<128x128xbf16>, vector<128x128xbf16>, vector<128x128xf32> -> vector<128x128xf32>
    %36 = arith.truncf %35 : vector<128x128xf32> to vector<128x128xbf16>
    %c1_24 = arith.constant 1 : index
    %c0_25 = arith.constant 0 : index
    %c0_26 = arith.constant 0 : index
    %37 = vector.load %arg12[%c1_24, %c0_25, %c0_26] : memref<2x128x128xbf16, #tpu.memory_space<vmem>>, vector<1x128x128xbf16>
    %38 = vector.shape_cast %37 : vector<1x128x128xbf16> to vector<128x128xbf16>
    %c1_27 = arith.constant 1 : index
    %c0_28 = arith.constant 0 : index
    %c0_29 = arith.constant 0 : index
    %39 = vector.load %arg13[%c1_27, %c0_28, %c0_29] : memref<2x128x128xbf16, #tpu.memory_space<vmem>>, vector<1x128x128xbf16>
    %40 = vector.shape_cast %39 : vector<1x128x128xbf16> to vector<128x128xbf16>
    %cst_30 = arith.constant dense<0.000000e+00> : vector<128x128xf32>
    %41 = tpu.matmul %36, %38, %cst_30 {dimension_numbers = #tpu.dot_dimension_numbers<[1], [1], [0], [0], [0, 0, 1, 0], [], []>} : vector<128x128xbf16>, vector<128x128xbf16>, vector<128x128xf32> -> vector<128x128xf32>
    %cst_31 = arith.constant dense<0xFF800000> : vector<128xf32>
    %42 = vector.multi_reduction <maximumf>, %41, %cst_31 [1] : vector<128x128xf32> to vector<128xf32>
    %43 = vector.shape_cast %42 : vector<128xf32> to vector<128x1xf32>
    %44 = vector.broadcast %43 : vector<128x1xf32> to vector<128x128xf32>
    %45 = arith.subf %41, %44 : vector<128x128xf32>
    %46 = math.exp %45 : vector<128x128xf32>
    %cst_32 = arith.constant dense<0.000000e+00> : vector<128xf32>
    %47 = vector.multi_reduction <add>, %46, %cst_32 [1] : vector<128x128xf32> to vector<128xf32>
    %48 = vector.shape_cast %47 : vector<128xf32> to vector<128x1xf32>
    %49 = tpu.reciprocal %48 {approx = true} : vector<128x1xf32> -> vector<128x1xf32>
    %50 = vector.broadcast %49 : vector<128x1xf32> to vector<128x128xf32>
    %51 = arith.mulf %46, %50 : vector<128x128xf32>
    %52 = arith.truncf %51 : vector<128x128xf32> to vector<128x128xbf16>
    %cst_33 = arith.constant dense<0.000000e+00> : vector<128x128xf32>
    %53 = tpu.matmul %52, %40, %cst_33 {dimension_numbers = #tpu.dot_dimension_numbers<[1], [0], [0], [1], [0, 0, 1, 1], [], []>} : vector<128x128xbf16>, vector<128x128xbf16>, vector<128x128xf32> -> vector<128x128xf32>
    %54 = arith.truncf %53 : vector<128x128xf32> to vector<128x128xbf16>
    %c1_34 = arith.constant 1 : index
    %c0_35 = arith.constant 0 : index
    %c0_36 = arith.constant 0 : index
    %55 = vector.load %arg8[%c1_34, %c0_35, %c0_36] : memref<2x128x128xbf16, #tpu.memory_space<vmem>>, vector<1x128x128xbf16>
    %56 = vector.shape_cast %55 : vector<1x128x128xbf16> to vector<128x128xbf16>
    %cst_37 = arith.constant dense<0.000000e+00> : vector<128x128xf32>
    %57 = tpu.matmul %54, %56, %cst_37 {dimension_numbers = #tpu.dot_dimension_numbers<[1], [0], [0], [1], [0, 0, 1, 1], [], []>} : vector<128x128xbf16>, vector<128x128xbf16>, vector<128x128xf32> -> vector<128x128xf32>
    %58 = arith.addf %32, %57 : vector<128x128xf32>
    %59 = arith.addf %58, %4 : vector<128x128xf32>
    %cst_38 = arith.constant dense<0.000000e+00> : vector<128xf32>
    %60 = vector.multi_reduction <add>, %59, %cst_38 [1] : vector<128x128xf32> to vector<128xf32>
    %61 = vector.shape_cast %60 : vector<128xf32> to vector<128x1xf32>
    %cst_39 = arith.constant 1.280000e+02 : f32
    %62 = vector.broadcast %cst_39 : f32 to vector<128x1xf32>
    %63 = arith.divf %61, %62 : vector<128x1xf32>
    %64 = vector.broadcast %63 : vector<128x1xf32> to vector<128x128xf32>
    %65 = arith.subf %59, %64 : vector<128x128xf32>
    %66 = arith.mulf %65, %65 : vector<128x128xf32>
    %cst_40 = arith.constant dense<0.000000e+00> : vector<128xf32>
    %67 = vector.multi_reduction <add>, %66, %cst_40 [1] : vector<128x128xf32> to vector<128xf32>
    %68 = vector.shape_cast %67 : vector<128xf32> to vector<128x1xf32>
    %cst_41 = arith.constant 1.280000e+02 : f32
    %69 = vector.broadcast %cst_41 : f32 to vector<128x1xf32>
    %70 = arith.divf %68, %69 : vector<128x1xf32>
    %71 = vector.broadcast %63 : vector<128x1xf32> to vector<128x128xf32>
    %72 = arith.subf %59, %71 : vector<128x128xf32>
    %cst_42 = arith.constant 9.99999997E-7 : f32
    %73 = vector.broadcast %cst_42 : f32 to vector<128x1xf32>
    %74 = arith.addf %70, %73 : vector<128x1xf32>
    %75 = math.rsqrt %74 : vector<128x1xf32>
    %76 = vector.broadcast %75 : vector<128x1xf32> to vector<128x128xf32>
    %77 = arith.mulf %72, %76 : vector<128x128xf32>
    %c0_43 = arith.constant 0 : index
    %c0_44 = arith.constant 0 : index
    %78 = vector.load %arg9[%c0_43, %c0_44] : memref<1x128xf32, #tpu.memory_space<vmem>>, vector<1x128xf32>
    %79 = vector.broadcast %78 : vector<1x128xf32> to vector<128x128xf32>
    %80 = arith.mulf %77, %79 : vector<128x128xf32>
    %c0_45 = arith.constant 0 : index
    %c0_46 = arith.constant 0 : index
    %81 = vector.load %arg10[%c0_45, %c0_46] : memref<1x128xf32, #tpu.memory_space<vmem>>, vector<1x128xf32>
    %82 = vector.broadcast %81 : vector<1x128xf32> to vector<128x128xf32>
    %83 = arith.addf %80, %82 : vector<128x128xf32>
    %c0_47 = arith.constant 0 : index
    %c0_48 = arith.constant 0 : index
    %c0_49 = arith.constant 0 : index
    %84 = vector.load %arg11[%c0_47, %c0_48, %c0_49] : memref<1x128x128xf32, #tpu.memory_space<vmem>>, vector<1x128x128xf32>
    %85 = vector.shape_cast %84 : vector<1x128x128xf32> to vector<128x128xf32>
    %86 = vector.shape_cast %83 : vector<128x128xf32> to vector<1x128x128xf32>
    tpu.vector_store %arg11[%c0_47, %c0_48, %c0_49], %86 {strides = array<i32>} : memref<1x128x128xf32, #tpu.memory_space<vmem>>, vector<1x128x128xf32>,
    return
  }
  func.func @transform_0(%arg0: i32, %arg1: i32) -> (i32, i32, i32) {
    %c0_i32 = arith.constant 0 : i32
    %c0_i32_0 = arith.constant 0 : i32
    return %arg0, %arg1, %c0_i32 : i32, i32, i32
  }
  func.func @transform_1(%arg0: i32, %arg1: i32) -> (i32, i32, i32) {
    %c0_i32 = arith.constant 0 : i32
    %c0_i32_0 = arith.constant 0 : i32
    %c0_i32_1 = arith.constant 0 : i32
    return %arg0, %c0_i32, %c0_i32_0 : i32, i32, i32
  }
  func.func @transform_2(%arg0: i32, %arg1: i32) -> (i32, i32, i32) {
    %c0_i32 = arith.constant 0 : i32
    %c0_i32_0 = arith.constant 0 : i32
    %c0_i32_1 = arith.constant 0 : i32
    return %arg0, %c0_i32, %c0_i32_0 : i32, i32, i32
  }
  func.func @transform_3(%arg0: i32, %arg1: i32) -> (i32, i32, i32) {
    %c0_i32 = arith.constant 0 : i32
    %c0_i32_0 = arith.constant 0 : i32
    %c0_i32_1 = arith.constant 0 : i32
    %c0_i32_2 = arith.constant 0 : i32
    return %c0_i32, %c0_i32_0, %c0_i32_1 : i32, i32, i32
  }
  func.func @transform_4(%arg0: i32, %arg1: i32) -> (i32, i32, i32) {
    %c0_i32 = arith.constant 0 : i32
    %c0_i32_0 = arith.constant 0 : i32
    %c0_i32_1 = arith.constant 0 : i32
    %c0_i32_2 = arith.constant 0 : i32
    return %c0_i32, %c0_i32_0, %c0_i32_1 : i32, i32, i32
  }
  func.func @transform_5(%arg0: i32, %arg1: i32) -> (i32, i32, i32) {
    %c0_i32 = arith.constant 0 : i32
    %c0_i32_0 = arith.constant 0 : i32
    %c0_i32_1 = arith.constant 0 : i32
    %c0_i32_2 = arith.constant 0 : i32
    return %c0_i32, %c0_i32_0, %c0_i32_1 : i32, i32, i32
  }
  func.func @transform_6(%arg0: i32, %arg1: i32) -> (i32, i32, i32) {
    %c0_i32 = arith.constant 0 : i32
    %c0_i32_0 = arith.constant 0 : i32
    %c0_i32_1 = arith.constant 0 : i32
    %c0_i32_2 = arith.constant 0 : i32
    return %c0_i32, %c0_i32_0, %c0_i32_1 : i32, i32, i32
  }
  func.func @transform_7(%arg0: i32, %arg1: i32) -> (i32, i32) {
    %c0_i32 = arith.constant 0 : i32
    %c0_i32_0 = arith.constant 0 : i32
    %c0_i32_1 = arith.constant 0 : i32
    return %c0_i32, %c0_i32_0 : i32, i32
  }
  func.func @transform_8(%arg0: i32, %arg1: i32) -> (i32, i32) {
    %c0_i32 = arith.constant 0 : i32
    %c0_i32_0 = arith.constant 0 : i32
    %c0_i32_1 = arith.constant 0 : i32
    return %c0_i32, %c0_i32_0 : i32, i32
  }
  func.func @transform_9(%arg0: i32, %arg1: i32) -> (i32, i32, i32) {
    %c0_i32 = arith.constant 0 : i32
    %c0_i32_0 = arith.constant 0 : i32
    return %arg0, %arg1, %c0_i32 : i32, i32, i32
  }
}

</mosaic_0001>

<llo_original>
// kernel: tpu_custom_call.1
$region0: #{tpu_custom_call.1}
  #allocation0 [shape = 'u32[]', space=smem, size = 0x4, offset = 0x4, fixed_abs, tag = 'smem constant byte address 0x4 - core index']
  #allocation1 [shape = 'u32[144,128]{1,0:T(1,128)}', space=vmem, size = 0x12000, scoped, tag = 'internal scratch']
  #allocation2 [shape = 'bf16[2,128,128]{2,1,0:T(8,128)(2,1)}', space=vmem, size = 0x10000, scoped, tag = 'scratch operand']
  #allocation3 [shape = 'bf16[2,128,128]{2,1,0:T(8,128)(2,1)}', space=vmem, size = 0x10000, scoped, tag = 'scratch operand']
  %s0 = inlined_call_operand.hbm [shape: f32[2,128,128], index: 0, kind: input, shape index: {}]
  %s1 = inlined_call_operand.hbm [shape: f32[2,128,128], index: 1, kind: input, shape index: {}]
  %s2 = inlined_call_operand.hbm [shape: f32[2,128,128], index: 2, kind: input, shape index: {}]
  %s3 = inlined_call_operand.hbm [shape: bf16[2,128,128], index: 3, kind: input, shape index: {}]
  %s4 = inlined_call_operand.hbm [shape: bf16[2,128,128], index: 4, kind: input, shape index: {}]
  %s5 = inlined_call_operand.hbm [shape: bf16[2,128,128], index: 5, kind: input, shape index: {}]
  %s6 = inlined_call_operand.hbm [shape: bf16[2,128,128], index: 6, kind: input, shape index: {}]
  %s7 = inlined_call_operand.vmem [shape: f32[1,128], index: 7, kind: input, shape index: {}]
  %s8 = inlined_call_operand.vmem [shape: f32[1,128], index: 8, kind: input, shape index: {}]
  %s9 = inlined_call_operand.hbm [shape: f32[2,128,128], index: 9, kind: output, shape index: {}]
  %s10 = sld [smem:[#allocation0]]
  $region101: #{tpu_custom_call.1} parent=0
    _
  %s12 = ssub.s32 1, %s10
  %s13 = scalar_select 0, %s12, %s10
  $region1: #{tpu_custom_call.1} parent=0
    #allocation4 [shape = 'u8[131072]{0}', space=vmem, size = 0x20000, scoped, tag = 'input window, operand 0']
    #allocation5 [shape = 's32[2]{0}', space=sflag, size = 0x8, scoped, tag = 'scoped memory for tpu_custom_call.1']
    #allocation6 [shape = 's32[2]{0}', space=sflag, size = 0x8, scoped, tag = 'scoped memory for tpu_custom_call.1']
    #allocation7 [shape = 'u8[131072]{0}', space=vmem, size = 0x20000, scoped, tag = 'input window, operand 1']
    #allocation8 [shape = 's32[2]{0}', space=sflag, size = 0x8, scoped, tag = 'scoped memory for tpu_custom_call.1']
    #allocation9 [shape = 'u8[131072]{0}', space=vmem, size = 0x20000, scoped, tag = 'input window, operand 2']
    #allocation10 [shape = 'u8[65536]{0}', space=vmem, size = 0x10000, scoped, tag = 'input window, operand 3, single buffered']
    #allocation11 [shape = 's32[1]{0}', space=sflag, size = 0x4, scoped, tag = 'scoped memory for tpu_custom_call.1']
    #allocation12 [shape = 'u8[65536]{0}', space=vmem, size = 0x10000, scoped, tag = 'input window, operand 4, single buffered']
    #allocation13 [shape = 'u8[65536]{0}', space=vmem, size = 0x10000, scoped, tag = 'input window, operand 5, single buffered']
    #allocation14 [shape = 's32[1]{0}', space=sflag, size = 0x4, scoped, tag = 'scoped memory for tpu_custom_call.1']
    #allocation15 [shape = 'u8[65536]{0}', space=vmem, size = 0x10000, scoped, tag = 'input window, operand 6, single buffered']
    #allocation16 [shape = 'u8[131072]{0}', space=vmem, size = 0x20000, scoped, tag = 'output window, operand 0']
    %14 = vsyncpa [#allocation5], 0
    %s15 = scalar_lea.sflag [#allocation5], 1
    %16 = vsyncpa %s15, 0
    %17 = vsyncpa [#allocation8], 0
    %s18 = scalar_lea.sflag [#allocation8], 1
    %19 = vsyncpa %s18, 0
    %20 = vsyncpa [#allocation11], 0
    %21 = vsyncpa [#allocation14], 0
    %22 = vsyncpa [#allocation6], 0
    %s23 = scalar_lea.sflag [#allocation6], 1
    %24 = vsyncpa %s23, 0
    loop: start=0, step=1, limit=4
    $region2: #{tpu_custom_call.1} parent=1 // loop_pre_header
      _
    $region3: #{tpu_custom_call.1} parent=1 // loop_header
      %s26 = sphi 0, %s30
      %p27 = scmp.ge.s32.totalorder %s26, 4
      %s33 = sphi 0, %s45
      %s34 = sphi 0, %s41
      %s35 = sphi 0, %s33
      %s36 = sphi 0, %s34
      %s37 = sphi 0, %s35
      %s38 = sphi 0, %s36
      %s50 = sphi 0, %s52
      %s53 = sphi 0, %s50
      %s54 = sphi 0, %s53
      %s70 = sphi 0, %s54
      %s76 = sphi 0, %s78
      %s79 = sphi 0, %s76
      %s80 = sphi 0, %s79
      %s96 = sphi 0, %s80
      %s102 = sphi 0, %s104
      %s105 = sphi 0, %s102
      %s106 = sphi 0, %s105
      %s122 = sphi 0, %s106
      %s126 = sphi 0, %s126
      %s128 = sphi 0, %s126
      %s129 = sphi 0, %s128
      %s143 = sphi 0, %s129
      %s147 = sphi 0, %s147
      %s149 = sphi 0, %s147
      %s150 = sphi 0, %s149
      %s164 = sphi 0, %s150
      %s168 = sphi 0, %s168
      %s170 = sphi 0, %s168
      %s171 = sphi 0, %s170
      %s185 = sphi 0, %s171
      %s189 = sphi 0, %s189
      %s191 = sphi 0, %s189
      %s192 = sphi 0, %s191
      %s206 = sphi 0, %s192
      %s210 = sphi 0, %s210
      %s212 = sphi 0, %s210
      %s213 = sphi 0, %s212
      %s227 = sphi 0, %s213
      %s231 = sphi 0, %s231
      %s233 = sphi 0, %s231
      %s234 = sphi 0, %s233
      %s248 = sphi 0, %s234
      %s256 = sphi 0, %s258
      %s259 = sphi 0, %s256
      %s260 = sphi 0, %s259
      %s276 = sphi 0, %s260
    $region4: #{tpu_custom_call.1} parent=1 // loop_header_branch
      %29 = sbr.rel (%p27) target = $region8
    $region5: #{tpu_custom_call.1} parent=1 // loop_body
      %s31 = ssub.s32 %s26, 1
      %s32 = ssub.s32 %s26, 2
      %s39 = sadd.s32 1, %s34
      %p40 = scmp.ge.s32.totalorder %s39, 1
      %s41 = scalar_select %p40, 0, %s39
      %s42 = sadd.s32 1, %s33
      %s43 = scalar_select %p40, %s42, %s33
      %p44 = scmp.ge.s32.totalorder %s43, 2
      %s45 = scalar_select %p44, 0, %s43
      %s46 = ssub.s32 %s33, %s45
      %s47 = ssub.s32 %s34, %s41
      %s48 = sor.u32 %s46, %s47
      %p49 = scmp.eq.s32.totalorder %s48, 0
      %s51 = sadd.s32 %s50, 1
      %s52 = scalar_select %p49, %s50, %s51
      %p55 = pneg %p49
      %p56 = scmp.eq.s32.totalorder %s26, 1
      %p57 = por %p55, %p56
      %p58 = scmp.ne.s32.totalorder %s50, %s53
      %p59 = scmp.eq.s32.totalorder %s26, 0
      %p60 = por %p58, %p59
      %p61 = scmp.ne.s32.totalorder %s50, %s53
      %p62 = scmp.eq.s32.totalorder %s31, 1
      %p63 = por %p61, %p62
      %p64 = scmp.ne.s32.totalorder %s53, %s54
      %p65 = scmp.eq.s32.totalorder %s31, 0
      %p66 = por %p64, %p65
      %p67 = scmp.ne.s32.totalorder %s53, %s54
      %p68 = scmp.eq.s32.totalorder %s32, 1
      %p69 = por %p67, %p68
      %p71 = scmp.ne.s32.totalorder %s54, %s70
      %p72 = scmp.eq.s32.totalorder %s32, 0
      %p73 = por %p71, %p72
      %s74 = ssub.s32 %s33, %s45
      %p75 = scmp.eq.s32.totalorder %s74, 0
      %s77 = sadd.s32 %s76, 1
      %s78 = scalar_select %p75, %s76, %s77
      %p81 = pneg %p75
      %p82 = scmp.eq.s32.totalorder %s26, 1
      %p83 = por %p81, %p82
      %p84 = scmp.ne.s32.totalorder %s76, %s79
      %p85 = scmp.eq.s32.totalorder %s26, 0
      %p86 = por %p84, %p85
      %p87 = scmp.ne.s32.totalorder %s76, %s79
      %p88 = scmp.eq.s32.totalorder %s31, 1
      %p89 = por %p87, %p88
      %p90 = scmp.ne.s32.totalorder %s79, %s80
      %p91 = scmp.eq.s32.totalorder %s31, 0
      %p92 = por %p90, %p91
      %p93 = scmp.ne.s32.totalorder %s79, %s80
      %p94 = scmp.eq.s32.totalorder %s32, 1
      %p95 = por %p93, %p94
      %p97 = scmp.ne.s32.totalorder %s80, %s96
      %p98 = scmp.eq.s32.totalorder %s32, 0
      %p99 = por %p97, %p98
      %s100 = ssub.s32 %s33, %s45
      %p101 = scmp.eq.s32.totalorder %s100, 0
      %s103 = sadd.s32 %s102, 1
      %s104 = scalar_select %p101, %s102, %s103
      %p107 = pneg %p101
      %p108 = scmp.eq.s32.totalorder %s26, 1
      %p109 = por %p107, %p108
      %p110 = scmp.ne.s32.totalorder %s102, %s105
      %p111 = scmp.eq.s32.totalorder %s26, 0
      %p112 = por %p110, %p111
      %p113 = scmp.ne.s32.totalorder %s102, %s105
      %p114 = scmp.eq.s32.totalorder %s31, 1
      %p115 = por %p113, %p114
      %p116 = scmp.ne.s32.totalorder %s105, %s106
      %p117 = scmp.eq.s32.totalorder %s31, 0
      %p118 = por %p116, %p117
      %p119 = scmp.ne.s32.totalorder %s105, %s106
      %p120 = scmp.eq.s32.totalorder %s32, 1
      %p121 = por %p119, %p120
      %p123 = scmp.ne.s32.totalorder %s106, %s122
      %p124 = scmp.eq.s32.totalorder %s32, 0
      %p125 = por %p123, %p124
      %s127 = sadd.s32 %s126, 1
      %p130 = scmp.eq.s32.totalorder %s26, 1
      %p131 = scmp.ne.s32.totalorder %s126, %s128
      %p132 = scmp.eq.s32.totalorder %s26, 0
      %p133 = por %p131, %p132
      %p134 = scmp.ne.s32.totalorder %s126, %s128
      %p135 = scmp.eq.s32.totalorder %s31, 1
      %p136 = por %p134, %p135
      %p137 = scmp.ne.s32.totalorder %s128, %s129
      %p138 = scmp.eq.s32.totalorder %s31, 0
      %p139 = por %p137, %p138
      %p140 = scmp.ne.s32.totalorder %s128, %s129
      %p141 = scmp.eq.s32.totalorder %s32, 1
      %p142 = por %p140, %p141
      %p144 = scmp.ne.s32.totalorder %s129, %s143
      %p145 = scmp.eq.s32.totalorder %s32, 0
      %p146 = por %p144, %p145
      %s148 = sadd.s32 %s147, 1
      %p151 = scmp.eq.s32.totalorder %s26, 1
      %p152 = scmp.ne.s32.totalorder %s147, %s149
      %p153 = scmp.eq.s32.totalorder %s26, 0
      %p154 = por %p152, %p153
      %p155 = scmp.ne.s32.totalorder %s147, %s149
      %p156 = scmp.eq.s32.totalorder %s31, 1
      %p157 = por %p155, %p156
      %p158 = scmp.ne.s32.totalorder %s149, %s150
      %p159 = scmp.eq.s32.totalorder %s31, 0
      %p160 = por %p158, %p159
      %p161 = scmp.ne.s32.totalorder %s149, %s150
      %p162 = scmp.eq.s32.totalorder %s32, 1
      %p163 = por %p161, %p162
      %p165 = scmp.ne.s32.totalorder %s150, %s164
      %p166 = scmp.eq.s32.totalorder %s32, 0
      %p167 = por %p165, %p166
      %s169 = sadd.s32 %s168, 1
      %p172 = scmp.eq.s32.totalorder %s26, 1
      %p173 = scmp.ne.s32.totalorder %s168, %s170
      %p174 = scmp.eq.s32.totalorder %s26, 0
      %p175 = por %p173, %p174
      %p176 = scmp.ne.s32.totalorder %s168, %s170
      %p177 = scmp.eq.s32.totalorder %s31, 1
      %p178 = por %p176, %p177
      %p179 = scmp.ne.s32.totalorder %s170, %s171
      %p180 = scmp.eq.s32.totalorder %s31, 0
      %p181 = por %p179, %p180
      %p182 = scmp.ne.s32.totalorder %s170, %s171
      %p183 = scmp.eq.s32.totalorder %s32, 1
      %p184 = por %p182, %p183
      %p186 = scmp.ne.s32.totalorder %s171, %s185
      %p187 = scmp.eq.s32.totalorder %s32, 0
      %p188 = por %p186, %p187
      %s190 = sadd.s32 %s189, 1
      %p193 = scmp.eq.s32.totalorder %s26, 1
      %p194 = scmp.ne.s32.totalorder %s189, %s191
      %p195 = scmp.eq.s32.totalorder %s26, 0
      %p196 = por %p194, %p195
      %p197 = scmp.ne.s32.totalorder %s189, %s191
      %p198 = scmp.eq.s32.totalorder %s31, 1
      %p199 = por %p197, %p198
      %p200 = scmp.ne.s32.totalorder %s191, %s192
      %p201 = scmp.eq.s32.totalorder %s31, 0
      %p202 = por %p200, %p201
      %p203 = scmp.ne.s32.totalorder %s191, %s192
      %p204 = scmp.eq.s32.totalorder %s32, 1
      %p205 = por %p203, %p204
      %p207 = scmp.ne.s32.totalorder %s192, %s206
      %p208 = scmp.eq.s32.totalorder %s32, 0
      %p209 = por %p207, %p208
      %s211 = sadd.s32 %s210, 1
      %p214 = scmp.eq.s32.totalorder %s26, 1
      %p215 = scmp.ne.s32.totalorder %s210, %s212
      %p216 = scmp.eq.s32.totalorder %s26, 0
      %p217 = por %p215, %p216
      %p218 = scmp.ne.s32.totalorder %s210, %s212
      %p219 = scmp.eq.s32.totalorder %s31, 1
      %p220 = por %p218, %p219
      %p221 = scmp.ne.s32.totalorder %s212, %s213
      %p222 = scmp.eq.s32.totalorder %s31, 0
      %p223 = por %p221, %p222
      %p224 = scmp.ne.s32.totalorder %s212, %s213
      %p225 = scmp.eq.s32.totalorder %s32, 1
      %p226 = por %p224, %p225
      %p228 = scmp.ne.s32.totalorder %s213, %s227
      %p229 = scmp.eq.s32.totalorder %s32, 0
      %p230 = por %p228, %p229
      %s232 = sadd.s32 %s231, 1
      %p235 = scmp.eq.s32.totalorder %s26, 1
      %p236 = scmp.ne.s32.totalorder %s231, %s233
      %p237 = scmp.eq.s32.totalorder %s26, 0
      %p238 = por %p236, %p237
      %p239 = scmp.ne.s32.totalorder %s231, %s233
      %p240 = scmp.eq.s32.totalorder %s31, 1
      %p241 = por %p239, %p240
      %p242 = scmp.ne.s32.totalorder %s233, %s234
      %p243 = scmp.eq.s32.totalorder %s31, 0
      %p244 = por %p242, %p243
      %p245 = scmp.ne.s32.totalorder %s233, %s234
      %p246 = scmp.eq.s32.totalorder %s32, 1
      %p247 = por %p245, %p246
      %p249 = scmp.ne.s32.totalorder %s234, %s248
      %p250 = scmp.eq.s32.totalorder %s32, 0
      %p251 = por %p249, %p250
      %s252 = ssub.s32 %s33, %s45
      %s253 = ssub.s32 %s34, %s41
      %s254 = sor.u32 %s252, %s253
      %p255 = scmp.eq.s32.totalorder %s254, 0
      %s257 = sadd.s32 %s256, 1
      %s258 = scalar_select %p255, %s256, %s257
      %p261 = pneg %p255
      %p262 = scmp.eq.s32.totalorder %s26, 1
      %p263 = por %p261, %p262
      %p264 = scmp.ne.s32.totalorder %s256, %s259
      %p265 = scmp.eq.s32.totalorder %s26, 0
      %p266 = por %p264, %p265
      %p267 = scmp.ne.s32.totalorder %s256, %s259
      %p268 = scmp.eq.s32.totalorder %s31, 1
      %p269 = por %p267, %p268
      %p270 = scmp.ne.s32.totalorder %s259, %s260
      %p271 = scmp.eq.s32.totalorder %s31, 0
      %p272 = por %p270, %p271
      %p273 = scmp.ne.s32.totalorder %s259, %s260
      %p274 = scmp.eq.s32.totalorder %s32, 1
      %p275 = por %p273, %p274
      %p277 = scmp.ne.s32.totalorder %s260, %s276
      %p278 = scmp.eq.s32.totalorder %s32, 0
      %p279 = por %p277, %p278
      %p280 = scmp.le.s32.totalorder 1, %s26
      %p281 = scmp.lt.s32.totalorder %s26, 3
      %p282 = pnand %p280, %p281
      %p283 = pneg %p282
      // Predicated region
      $region9: #{tpu_custom_call.1} parent=5 // pred_check
        _
      $region10: #{tpu_custom_call.1} parent=5 // pred_check_branch
        %285 = sbr.rel (%p282) target = $region12
      $region11: #{tpu_custom_call.1} parent=5 // pred_region
        %s286 = ssub.s32 %s26, 1
        // Predicated region
        $region13: #{tpu_custom_call.1} parent=11 // pred_check
          %p287 = pneg %p139
        $region14: #{tpu_custom_call.1} parent=11 // pred_check_branch
          %289 = sbr.rel (%p287) target = $region16
        $region15: #{tpu_custom_call.1} parent=11 // pred_region
          %s291 = ssub.s32 2048, 2048
          %292 = vsyncadd [#allocation11], %s291
          %s293 = sshll.u32 [#allocation10], 4
          %s294 = int_to_ptr.vmem [resolvable:$true] %s293
          %299 = dma.hbm_to_vmem [thread:$0]  %s3, 2048, %s294, [#allocation11], 64, 64, 4
        $region16: #{tpu_custom_call.1} parent=11 // pred_fallthru
          _
        // Predicated region
        $region17: #{tpu_custom_call.1} parent=11 // pred_check
          %p300 = pneg %p160
        $region18: #{tpu_custom_call.1} parent=11 // pred_check_branch
          %302 = sbr.rel (%p300) target = $region20
        $region19: #{tpu_custom_call.1} parent=11 // pred_region
          %s304 = ssub.s32 2048, 2048
          %305 = vsyncadd [#allocation11], %s304
          %s306 = sshll.u32 [#allocation12], 4
          %s307 = int_to_ptr.vmem [resolvable:$true] %s306
          %312 = dma.hbm_to_vmem [thread:$0]  %s4, 2048, %s307, [#allocation11], 64, 64, 4
        $region20: #{tpu_custom_call.1} parent=11 // pred_fallthru
          _
        // Predicated region
        $region21: #{tpu_custom_call.1} parent=11 // pred_check
          %p313 = pneg %p181
        $region22: #{tpu_custom_call.1} parent=11 // pred_check_branch
          %315 = sbr.rel (%p313) target = $region24
        $region23: #{tpu_custom_call.1} parent=11 // pred_region
          %s317 = ssub.s32 2048, 2048
          %318 = vsyncadd [#allocation14], %s317
          %s319 = sshll.u32 [#allocation13], 4
          %s320 = int_to_ptr.vmem [resolvable:$true] %s319
          %325 = dma.hbm_to_vmem [thread:$0]  %s5, 2048, %s320, [#allocation14], 64, 64, 4
        $region24: #{tpu_custom_call.1} parent=11 // pred_fallthru
          _
        // Predicated region
        $region25: #{tpu_custom_call.1} parent=11 // pred_check
          %p326 = pneg %p202
        $region26: #{tpu_custom_call.1} parent=11 // pred_check_branch
          %328 = sbr.rel (%p326) target = $region28
        $region27: #{tpu_custom_call.1} parent=11 // pred_region
          %s330 = ssub.s32 2048, 2048
          %331 = vsyncadd [#allocation14], %s330
          %s332 = sshll.u32 [#allocation15], 4
          %s333 = int_to_ptr.vmem [resolvable:$true] %s332
          %338 = dma.hbm_to_vmem [thread:$0]  %s6, 2048, %s333, [#allocation14], 64, 64, 4
        $region28: #{tpu_custom_call.1} parent=11 // pred_fallthru
          _
        // Predicated region
        $region29: #{tpu_custom_call.1} parent=11 // pred_check
          %p339 = pneg %p223
        $region30: #{tpu_custom_call.1} parent=11 // pred_check_branch
          %341 = sbr.rel (%p339) target = $region32
        $region31: #{tpu_custom_call.1} parent=11 // pred_region
          _
        $region32: #{tpu_custom_call.1} parent=11 // pred_fallthru
          _
        // Predicated region
        $region33: #{tpu_custom_call.1} parent=11 // pred_check
          %p342 = pneg %p244
        $region34: #{tpu_custom_call.1} parent=11 // pred_check_branch
          %344 = sbr.rel (%p342) target = $region36
        $region35: #{tpu_custom_call.1} parent=11 // pred_region
          _
        $region36: #{tpu_custom_call.1} parent=11 // pred_fallthru
          _
      $region12: #{tpu_custom_call.1} parent=5 // pred_fallthru
        _
      %p345 = scmp.lt.s32.totalorder %s26, 2
      // Predicated region
      $region37: #{tpu_custom_call.1} parent=5 // pred_check
        %p346 = pneg %p345
      $region38: #{tpu_custom_call.1} parent=5 // pred_check_branch
        %348 = sbr.rel (%p346) target = $region40
      $region39: #{tpu_custom_call.1} parent=5 // pred_region
        // Predicated region
        $region41: #{tpu_custom_call.1} parent=39 // pred_check
          %p349 = pneg %p60
        $region42: #{tpu_custom_call.1} parent=39 // pred_check_branch
          %351 = sbr.rel (%p349) target = $region44
        $region43: #{tpu_custom_call.1} parent=39 // pred_region
          %s352 = sand.u32 %s50, 1
          %s353 = scalar_lea.sflag [#allocation5], %s352
          %s354 = sand.u32 %s50, 1
          %s355 = smul.addr %s354, 128
          %s356 = scalar_lea.vmem [#allocation4], %s355
          %s357 = smul.u32 16, %s34
          %s359 = ssub.s32 2048, 2048
          %360 = vsyncadd %s353, %s359
          %s361 = smul.addr %s33, 16
          %s362 = sadd.s32 %s357, %s361
          %s363 = smul.addr %s362, 128
          %s364 = scalar_lea.hbm %s0, %s363
          %s365 = sshll.u32 %s356, 4
          %s366 = int_to_ptr.vmem [resolvable:$true] %s365
          %371 = dma.hbm_to_vmem [thread:$0]  %s364, 2048, %s366, %s353, 128, 128, 8
        $region44: #{tpu_custom_call.1} parent=39 // pred_fallthru
          _
        // Predicated region
        $region45: #{tpu_custom_call.1} parent=39 // pred_check
          %p372 = pneg %p86
        $region46: #{tpu_custom_call.1} parent=39 // pred_check_branch
          %374 = sbr.rel (%p372) target = $region48
        $region47: #{tpu_custom_call.1} parent=39 // pred_region
          %s375 = sand.u32 %s26, 1
          %s376 = scalar_lea.sflag [#allocation8], %s375
          %s377 = sand.u32 %s76, 1
          %s378 = smul.addr %s377, 128
          %s379 = scalar_lea.vmem [#allocation7], %s378
          %s381 = ssub.s32 2048, 2048
          %382 = vsyncadd %s376, %s381
          %s383 = smul.addr %s33, 16
          %s384 = smul.addr %s383, 128
          %s385 = scalar_lea.hbm %s1, %s384
          %s386 = sshll.u32 %s379, 4
          %s387 = int_to_ptr.vmem [resolvable:$true] %s386
          %392 = dma.hbm_to_vmem [thread:$0]  %s385, 2048, %s387, %s376, 128, 128, 8
        $region48: #{tpu_custom_call.1} parent=39 // pred_fallthru
          _
        // Predicated region
        $region49: #{tpu_custom_call.1} parent=39 // pred_check
          %p393 = pneg %p112
        $region50: #{tpu_custom_call.1} parent=39 // pred_check_branch
          %395 = sbr.rel (%p393) target = $region52
        $region51: #{tpu_custom_call.1} parent=39 // pred_region
          %s396 = sand.u32 %s26, 1
          %s397 = scalar_lea.sflag [#allocation8], %s396
          %s398 = sand.u32 %s102, 1
          %s399 = smul.addr %s398, 128
          %s400 = scalar_lea.vmem [#allocation9], %s399
          %s402 = ssub.s32 2048, 2048
          %403 = vsyncadd %s397, %s402
          %s404 = smul.addr %s33, 16
          %s405 = smul.addr %s404, 128
          %s406 = scalar_lea.hbm %s2, %s405
          %s407 = sshll.u32 %s400, 4
          %s408 = int_to_ptr.vmem [resolvable:$true] %s407
          %413 = dma.hbm_to_vmem [thread:$0]  %s406, 2048, %s408, %s397, 128, 128, 8
        $region52: #{tpu_custom_call.1} parent=39 // pred_fallthru
          _
      $region40: #{tpu_custom_call.1} parent=5 // pred_fallthru
        _
      %p414 = scmp.le.s32.totalorder 1, %s26
      %p415 = scmp.lt.s32.totalorder %s26, 3
      %p416 = pnand %p414, %p415
      %p417 = pneg %p416
      // Predicated region
      $region53: #{tpu_custom_call.1} parent=5 // pred_check
        _
      $region54: #{tpu_custom_call.1} parent=5 // pred_check_branch
        %419 = sbr.rel (%p416) target = $region56
      $region55: #{tpu_custom_call.1} parent=5 // pred_region
        %s420 = ssub.s32 %s26, 1
        %s421 = sand.u32 %s53, 1
        %s422 = scalar_lea.sflag [#allocation5], %s421
        %s423 = sand.u32 %s53, 1
        %s424 = smul.addr %s423, 128
        %s425 = scalar_lea.vmem [#allocation4], %s424
        // Predicated region
        $region57: #{tpu_custom_call.1} parent=55 // pred_check
          %p426 = pneg %p66
        $region58: #{tpu_custom_call.1} parent=55 // pred_check_branch
          %428 = sbr.rel (%p426) target = $region60
        $region59: #{tpu_custom_call.1} parent=55 // pred_region
          %429 = dma.done %s422, 2048
        $region60: #{tpu_custom_call.1} parent=55 // pred_fallthru
          _
        %s430 = sand.u32 %s31, 1
        %s431 = scalar_lea.sflag [#allocation8], %s430
        %s432 = sand.u32 %s79, 1
        %s433 = smul.addr %s432, 128
        %s434 = scalar_lea.vmem [#allocation7], %s433
        // Predicated region
        $region61: #{tpu_custom_call.1} parent=55 // pred_check
          %p435 = pneg %p92
        $region62: #{tpu_custom_call.1} parent=55 // pred_check_branch
          %437 = sbr.rel (%p435) target = $region64
        $region63: #{tpu_custom_call.1} parent=55 // pred_region
          %438 = dma.done %s431, 2048
        $region64: #{tpu_custom_call.1} parent=55 // pred_fallthru
          _
        %s439 = sand.u32 %s31, 1
        %s440 = scalar_lea.sflag [#allocation8], %s439
        %s441 = sand.u32 %s105, 1
        %s442 = smul.addr %s441, 128
        %s443 = scalar_lea.vmem [#allocation9], %s442
        // Predicated region
        $region65: #{tpu_custom_call.1} parent=55 // pred_check
          %p444 = pneg %p118
        $region66: #{tpu_custom_call.1} parent=55 // pred_check_branch
          %446 = sbr.rel (%p444) target = $region68
        $region67: #{tpu_custom_call.1} parent=55 // pred_region
          %447 = dma.done %s440, 2048
        $region68: #{tpu_custom_call.1} parent=55 // pred_fallthru
          _
        // Predicated region
        $region69: #{tpu_custom_call.1} parent=55 // pred_check
          %p448 = pneg %p139
        $region70: #{tpu_custom_call.1} parent=55 // pred_check_branch
          %450 = sbr.rel (%p448) target = $region72
        $region71: #{tpu_custom_call.1} parent=55 // pred_region
          %451 = dma.done [#allocation11], 2048
        $region72: #{tpu_custom_call.1} parent=55 // pred_fallthru
          _
        // Predicated region
        $region73: #{tpu_custom_call.1} parent=55 // pred_check
          %p452 = pneg %p160
        $region74: #{tpu_custom_call.1} parent=55 // pred_check_branch
          %454 = sbr.rel (%p452) target = $region76
        $region75: #{tpu_custom_call.1} parent=55 // pred_region
          %455 = dma.done [#allocation11], 2048
        $region76: #{tpu_custom_call.1} parent=55 // pred_fallthru
          _
        // Predicated region
        $region77: #{tpu_custom_call.1} parent=55 // pred_check
          %p456 = pneg %p181
        $region78: #{tpu_custom_call.1} parent=55 // pred_check_branch
          %458 = sbr.rel (%p456) target = $region80
        $region79: #{tpu_custom_call.1} parent=55 // pred_region
          %459 = dma.done [#allocation14], 2048
        $region80: #{tpu_custom_call.1} parent=55 // pred_fallthru
          _
        // Predicated region
        $region81: #{tpu_custom_call.1} parent=55 // pred_check
          %p460 = pneg %p202
        $region82: #{tpu_custom_call.1} parent=55 // pred_check_branch
          %462 = sbr.rel (%p460) target = $region84
        $region83: #{tpu_custom_call.1} parent=55 // pred_region
          %463 = dma.done [#allocation14], 2048
        $region84: #{tpu_custom_call.1} parent=55 // pred_fallthru
          _
        %s464 = sand.u32 %s53, 1
        %s465 = scalar_lea.sflag [#allocation5], %s464
        %s466 = sand.u32 %s53, 1
        %s467 = smul.addr %s466, 128
        %s468 = scalar_lea.vmem [#allocation4], %s467
        %p469 = pneg %p66
        %p470 = pneg %p63
        %s471 = sand.u32 %s31, 1
        %s472 = scalar_lea.sflag [#allocation8], %s471
        %s473 = sand.u32 %s79, 1
        %s474 = smul.addr %s473, 128
        %s475 = scalar_lea.vmem [#allocation7], %s474
        %p476 = pneg %p92
        %p477 = pneg %p89
        %s478 = sand.u32 %s31, 1
        %s479 = scalar_lea.sflag [#allocation8], %s478
        %s480 = sand.u32 %s105, 1
        %s481 = smul.addr %s480, 128
        %s482 = scalar_lea.vmem [#allocation9], %s481
        %p483 = pneg %p118
        %p484 = pneg %p115
        %p485 = pneg %p139
        %p486 = pneg %p136
        %p487 = pneg %p160
        %p488 = pneg %p157
        %p489 = pneg %p181
        %p490 = pneg %p178
        %p491 = pneg %p202
        %p492 = pneg %p199
        %p493 = pneg %p223
        %p494 = pneg %p220
        %p495 = pneg %p244
        %p496 = pneg %p241
        %p497 = pneg %p272
        %p498 = pneg %p269
        %s499 = sand.u32 %s259, 1
        %s500 = scalar_lea.sflag [#allocation6], %s499
        %s501 = sand.u32 %s259, 1
        %s502 = smul.addr %s501, 128
        %s503 = scalar_lea.vmem [#allocation16], %s502
        %s504 = smul.u32 16, %s36
        %s505 = smul.u32 16, %s36
        %p507 = scmp.eq.s32.totalorder %s36, 0
        // Predicated region
        $region85: #{tpu_custom_call.1} parent=55 // pred_check
          %p508 = pneg %p507
        $region86: #{tpu_custom_call.1} parent=55 // pred_check_branch
          %510 = sbr.rel (%p508) target = $region88
        $region87: #{tpu_custom_call.1} parent=55 // pred_region
          %v511 = vld [vmem:[%s434] sm:$0xff]
          %v512 = vld [vmem:[%s434 + $0x8] sm:$0xff]
          %v513 = vld [vmem:[%s434 + $0x10] sm:$0xff]
          %v514 = vld [vmem:[%s434 + $0x18] sm:$0xff]
          %v515 = vld [vmem:[%s434 + $0x20] sm:$0xff]
          %v516 = vld [vmem:[%s434 + $0x28] sm:$0xff]
          %v517 = vld [vmem:[%s434 + $0x30] sm:$0xff]
          %v518 = vld [vmem:[%s434 + $0x38] sm:$0xff]
          %v519 = vld [vmem:[%s434 + $0x40] sm:$0xff]
          %v520 = vld [vmem:[%s434 + $0x48] sm:$0xff]
          %v521 = vld [vmem:[%s434 + $0x50] sm:$0xff]
          %v522 = vld [vmem:[%s434 + $0x58] sm:$0xff]
          %v523 = vld [vmem:[%s434 + $0x60] sm:$0xff]
          %v524 = vld [vmem:[%s434 + $0x68] sm:$0xff]
          %v525 = vld [vmem:[%s434 + $0x70] sm:$0xff]
          %v526 = vld [vmem:[%s434 + $0x78] sm:$0xff]
          %v527 = vpack.c.bf16 %v512, %v511
          %v528 = vpack.c.bf16 %v514, %v513
          %v529 = vpack.c.bf16 %v516, %v515
          %v530 = vpack.c.bf16 %v518, %v517
          %v531 = vpack.c.bf16 %v520, %v519
          %v532 = vpack.c.bf16 %v522, %v521
          %v533 = vpack.c.bf16 %v524, %v523
          %v534 = vpack.c.bf16 %v526, %v525
          %v535 = vld [vmem:[%s443] sm:$0xff]
          %v536 = vld [vmem:[%s443 + $0x8] sm:$0xff]
          %v537 = vld [vmem:[%s443 + $0x10] sm:$0xff]
          %v538 = vld [vmem:[%s443 + $0x18] sm:$0xff]
          %v539 = vld [vmem:[%s443 + $0x20] sm:$0xff]
          %v540 = vld [vmem:[%s443 + $0x28] sm:$0xff]
          %v541 = vld [vmem:[%s443 + $0x30] sm:$0xff]
          %v542 = vld [vmem:[%s443 + $0x38] sm:$0xff]
          %v543 = vld [vmem:[%s443 + $0x40] sm:$0xff]
          %v544 = vld [vmem:[%s443 + $0x48] sm:$0xff]
          %v545 = vld [vmem:[%s443 + $0x50] sm:$0xff]
          %v546 = vld [vmem:[%s443 + $0x58] sm:$0xff]
          %v547 = vld [vmem:[%s443 + $0x60] sm:$0xff]
          %v548 = vld [vmem:[%s443 + $0x68] sm:$0xff]
          %v549 = vld [vmem:[%s443 + $0x70] sm:$0xff]
          %v550 = vld [vmem:[%s443 + $0x78] sm:$0xff]
          %v551 = vpack.c.bf16 %v536, %v535
          %v552 = vpack.c.bf16 %v538, %v537
          %v553 = vpack.c.bf16 %v540, %v539
          %v554 = vpack.c.bf16 %v542, %v541
          %v555 = vpack.c.bf16 %v544, %v543
          %v556 = vpack.c.bf16 %v546, %v545
          %v557 = vpack.c.bf16 %v548, %v547
          %v558 = vpack.c.bf16 %v550, %v549
          %v559 = vld [vmem:[#allocation12] sm:$0xf]
          %v560 = vld [vmem:[#allocation12 + $0x4] sm:$0xf]
          %v561 = vld [vmem:[#allocation12 + $0x8] sm:$0xf]
          %v562 = vld [vmem:[#allocation12 + $0xc] sm:$0xf]
          %v563 = vld [vmem:[#allocation12 + $0x10] sm:$0xf]
          %v564 = vld [vmem:[#allocation12 + $0x14] sm:$0xf]
          %v565 = vld [vmem:[#allocation12 + $0x18] sm:$0xf]
          %v566 = vld [vmem:[#allocation12 + $0x1c] sm:$0xf]
          %v567 = vld [vmem:[#allocation12 + $0x20] sm:$0xf]
          %v568 = vld [vmem:[#allocation12 + $0x24] sm:$0xf]
          %v569 = vld [vmem:[#allocation12 + $0x28] sm:$0xf]
          %v570 = vld [vmem:[#allocation12 + $0x2c] sm:$0xf]
          %v571 = vld [vmem:[#allocation12 + $0x30] sm:$0xf]
          %v572 = vld [vmem:[#allocation12 + $0x34] sm:$0xf]
          %v573 = vld [vmem:[#allocation12 + $0x38] sm:$0xf]
          %v574 = vld [vmem:[#allocation12 + $0x3c] sm:$0xf]
          %v591 = vunpack.c.l.b16 %v559
          %v592 = vunpack.c.l.b16 %v560
          %v593 = vunpack.c.l.b16 %v561
          %v594 = vunpack.c.l.b16 %v562
          %v595 = vunpack.c.l.b16 %v563
          %v596 = vunpack.c.l.b16 %v564
          %v597 = vunpack.c.l.b16 %v565
          %v598 = vunpack.c.l.b16 %v566
          %v599 = vunpack.c.l.b16 %v567
          %v600 = vunpack.c.l.b16 %v568
          %v601 = vunpack.c.l.b16 %v569
          %v602 = vunpack.c.l.b16 %v570
          %v603 = vunpack.c.l.b16 %v571
          %v604 = vunpack.c.l.b16 %v572
          %v605 = vunpack.c.l.b16 %v573
          %v606 = vunpack.c.l.b16 %v574
          %v607 = vpack.c.b16 %v592, %v591
          %v608 = vpack.c.b16 %v594, %v593
          %v609 = vpack.c.b16 %v596, %v595
          %v610 = vpack.c.b16 %v598, %v597
          %v611 = vpack.c.b16 %v600, %v599
          %v612 = vpack.c.b16 %v602, %v601
          %v613 = vpack.c.b16 %v604, %v603
          %v614 = vpack.c.b16 %v606, %v605
          %623 = vmatprep.subr.bf16.mxu0 0
          %624 = vmatpush1.bf16.msra.mxu0 %v614
          %625 = vmatprep.subr.bf16.mxu0 0
          %626 = vmatpush1.bf16.msra.mxu0 %v613
          %627 = vmatprep.subr.bf16.mxu0 0
          %628 = vmatpush1.bf16.msra.mxu0 %v612
          %629 = vmatprep.subr.bf16.mxu0 0
          %630 = vmatpush1.bf16.msra.mxu0 %v611
          %631 = vmatprep.subr.bf16.mxu0 0
          %632 = vmatpush1.bf16.msra.mxu0 %v610
          %633 = vmatprep.subr.bf16.mxu0 0
          %634 = vmatpush1.bf16.msra.mxu0 %v609
          %635 = vmatprep.subr.bf16.mxu0 0
          %636 = vmatpush1.bf16.msra.mxu0 %v608
          %637 = vmatprep.subr.bf16.mxu0 0
          %638 = vmatpush1.bf16.msra.mxu0 %v607
          %639 = vmatprep.subr.bf16.mxu0 0
          %640 = vmatpush2.bf16.msra.mxu0 0
          %641 = vmatprep.subr.bf16.mxu0 0
          %642 = vmatpush2.bf16.msra.mxu0 0
          %643 = vmatprep.subr.bf16.mxu0 0
          %644 = vmatpush2.bf16.msra.mxu0 0
          %645 = vmatprep.subr.bf16.mxu0 0
          %646 = vmatpush2.bf16.msra.mxu0 0
          %647 = vmatprep.subr.bf16.mxu0 0
          %648 = vmatpush2.bf16.msra.mxu0 0
          %649 = vmatprep.subr.bf16.mxu0 0
          %650 = vmatpush2.bf16.msra.mxu0 0
          %651 = vmatprep.subr.bf16.mxu0 0
          %652 = vmatpush2.bf16.msra.mxu0 0
          %653 = vmatprep.subr.bf16.mxu0 0
          %654 = vmatpush2.bf16.msra.mxu0 0
          %655 = vmatprep.mubr.bf16.mxu0 0
          %656 = vmatmul.mubr.bf16.gmra.mxu0 %v527
          %v657 = vpop.f32.mrf.mxu0
          %v658 = vadd.f32 0.0, %v657
          %v659 = vpop.f32.mrf.mxu0
          %v660 = vpop.f32.mrf.mxu0
          %v661 = vadd.f32 0.0, %v660
          %v662 = vpop.f32.mrf.mxu0
          %663 = vmatprep.mubr.bf16.mxu0 0
          %664 = vmatmul.mubr.bf16.gmra.mxu0 %v528
          %v665 = vpop.f32.mrf.mxu0
          %v666 = vadd.f32 0.0, %v665
          %v667 = vpop.f32.mrf.mxu0
          %v668 = vpop.f32.mrf.mxu0
          %v669 = vadd.f32 0.0, %v668
          %v670 = vpop.f32.mrf.mxu0
          %671 = vmatprep.mubr.bf16.mxu0 0
          %672 = vmatmul.mubr.bf16.gmra.mxu0 %v529
          %v673 = vpop.f32.mrf.mxu0
          %v674 = vadd.f32 0.0, %v673
          %v675 = vpop.f32.mrf.mxu0
          %v676 = vpop.f32.mrf.mxu0
          %v677 = vadd.f32 0.0, %v676
          %v678 = vpop.f32.mrf.mxu0
          %679 = vmatprep.mubr.bf16.mxu0 0
          %680 = vmatmul.mubr.bf16.gmra.mxu0 %v530
          %v681 = vpop.f32.mrf.mxu0
          %v682 = vadd.f32 0.0, %v681
          %v683 = vpop.f32.mrf.mxu0
          %v684 = vpop.f32.mrf.mxu0
          %v685 = vadd.f32 0.0, %v684
          %v686 = vpop.f32.mrf.mxu0
          %687 = vmatprep.mubr.bf16.mxu0 0
          %688 = vmatmul.mubr.bf16.gmra.mxu0 %v531
          %v689 = vpop.f32.mrf.mxu0
          %v690 = vadd.f32 0.0, %v689
          %v691 = vpop.f32.mrf.mxu0
          %v692 = vpop.f32.mrf.mxu0
          %v693 = vadd.f32 0.0, %v692
          %v694 = vpop.f32.mrf.mxu0
          %695 = vmatprep.mubr.bf16.mxu0 0
          %696 = vmatmul.mubr.bf16.gmra.mxu0 %v532
          %v697 = vpop.f32.mrf.mxu0
          %v698 = vadd.f32 0.0, %v697
          %v699 = vpop.f32.mrf.mxu0
          %v700 = vpop.f32.mrf.mxu0
          %v701 = vadd.f32 0.0, %v700
          %v702 = vpop.f32.mrf.mxu0
          %703 = vmatprep.mubr.bf16.mxu0 0
          %704 = vmatmul.mubr.bf16.gmra.mxu0 %v533
          %v705 = vpop.f32.mrf.mxu0
          %v706 = vadd.f32 0.0, %v705
          %v707 = vpop.f32.mrf.mxu0
          %v708 = vpop.f32.mrf.mxu0
          %v709 = vadd.f32 0.0, %v708
          %v710 = vpop.f32.mrf.mxu0
          %711 = vmatprep.mubr.bf16.mxu0 0
          %712 = vmatmul.mubr.bf16.gmra.mxu0 %v534
          %v713 = vpop.f32.mrf.mxu0
          %v714 = vadd.f32 0.0, %v713
          %v715 = vpop.f32.mrf.mxu0
          %v716 = vpop.f32.mrf.mxu0
          %v717 = vadd.f32 0.0, %v716
          %v718 = vpop.f32.mrf.mxu0
          %719 = vdwg.mxu0
          %v720 = vpack.c.bf16 %v661, %v658
          %v721 = vpack.c.bf16 %v669, %v666
          %v722 = vpack.c.bf16 %v677, %v674
          %v723 = vpack.c.bf16 %v685, %v682
          %v724 = vpack.c.bf16 %v693, %v690
          %v725 = vpack.c.bf16 %v701, %v698
          %v726 = vpack.c.bf16 %v709, %v706
          %v727 = vpack.c.bf16 %v717, %v714
          %v736 = vunpack.c.l.b16 %v720
          %v737 = vunpack.c.h.b16 %v720
          %v738 = vunpack.c.l.b16 %v721
          %v739 = vunpack.c.h.b16 %v721
          %v740 = vunpack.c.l.b16 %v722
          %v741 = vunpack.c.h.b16 %v722
          %v742 = vunpack.c.l.b16 %v723
          %v743 = vunpack.c.h.b16 %v723
          %v744 = vunpack.c.l.b16 %v724
          %v745 = vunpack.c.h.b16 %v724
          %v746 = vunpack.c.l.b16 %v725
          %v747 = vunpack.c.h.b16 %v725
          %v748 = vunpack.c.l.b16 %v726
          %v749 = vunpack.c.h.b16 %v726
          %v750 = vunpack.c.l.b16 %v727
          %v751 = vunpack.c.h.b16 %v727
          %v752 = vpack.c.b16 %v736, %v736
          %v753 = vpack.c.b16 %v737, %v737
          %v754 = vpack.c.b16 %v738, %v738
          %v755 = vpack.c.b16 %v739, %v739
          %v756 = vpack.c.b16 %v740, %v740
          %v757 = vpack.c.b16 %v741, %v741
          %v758 = vpack.c.b16 %v742, %v742
          %v759 = vpack.c.b16 %v743, %v743
          %v760 = vpack.c.b16 %v744, %v744
          %v761 = vpack.c.b16 %v745, %v745
          %v762 = vpack.c.b16 %v746, %v746
          %v763 = vpack.c.b16 %v747, %v747
          %v764 = vpack.c.b16 %v748, %v748
          %v765 = vpack.c.b16 %v749, %v749
          %v766 = vpack.c.b16 %v750, %v750
          %v767 = vpack.c.b16 %v751, %v751
          %784 = vst [vmem:[#allocation2] sm:$0xf] %v752
          %785 = vst [vmem:[#allocation2 + $0x4] sm:$0xf] %v753
          %786 = vst [vmem:[#allocation2 + $0x8] sm:$0xf] %v754
          %787 = vst [vmem:[#allocation2 + $0xc] sm:$0xf] %v755
          %788 = vst [vmem:[#allocation2 + $0x10] sm:$0xf] %v756
          %789 = vst [vmem:[#allocation2 + $0x14] sm:$0xf] %v757
          %790 = vst [vmem:[#allocation2 + $0x18] sm:$0xf] %v758
          %791 = vst [vmem:[#allocation2 + $0x1c] sm:$0xf] %v759
          %792 = vst [vmem:[#allocation2 + $0x20] sm:$0xf] %v760
          %793 = vst [vmem:[#allocation2 + $0x24] sm:$0xf] %v761
          %794 = vst [vmem:[#allocation2 + $0x28] sm:$0xf] %v762
          %795 = vst [vmem:[#allocation2 + $0x2c] sm:$0xf] %v763
          %796 = vst [vmem:[#allocation2 + $0x30] sm:$0xf] %v764
          %797 = vst [vmem:[#allocation2 + $0x34] sm:$0xf] %v765
          %798 = vst [vmem:[#allocation2 + $0x38] sm:$0xf] %v766
          %799 = vst [vmem:[#allocation2 + $0x3c] sm:$0xf] %v767
          %v800 = vld [vmem:[#allocation13] sm:$0xf]
          %v801 = vld [vmem:[#allocation13 + $0x4] sm:$0xf]
          %v802 = vld [vmem:[#allocation13 + $0x8] sm:$0xf]
          %v803 = vld [vmem:[#allocation13 + $0xc] sm:$0xf]
          %v804 = vld [vmem:[#allocation13 + $0x10] sm:$0xf]
          %v805 = vld [vmem:[#allocation13 + $0x14] sm:$0xf]
          %v806 = vld [vmem:[#allocation13 + $0x18] sm:$0xf]
          %v807 = vld [vmem:[#allocation13 + $0x1c] sm:$0xf]
          %v808 = vld [vmem:[#allocation13 + $0x20] sm:$0xf]
          %v809 = vld [vmem:[#allocation13 + $0x24] sm:$0xf]
          %v810 = vld [vmem:[#allocation13 + $0x28] sm:$0xf]
          %v811 = vld [vmem:[#allocation13 + $0x2c] sm:$0xf]
          %v812 = vld [vmem:[#allocation13 + $0x30] sm:$0xf]
          %v813 = vld [vmem:[#allocation13 + $0x34] sm:$0xf]
          %v814 = vld [vmem:[#allocation13 + $0x38] sm:$0xf]
          %v815 = vld [vmem:[#allocation13 + $0x3c] sm:$0xf]
          %v832 = vunpack.c.l.b16 %v800
          %v833 = vunpack.c.l.b16 %v801
          %v834 = vunpack.c.l.b16 %v802
          %v835 = vunpack.c.l.b16 %v803
          %v836 = vunpack.c.l.b16 %v804
          %v837 = vunpack.c.l.b16 %v805
          %v838 = vunpack.c.l.b16 %v806
          %v839 = vunpack.c.l.b16 %v807
          %v840 = vunpack.c.l.b16 %v808
          %v841 = vunpack.c.l.b16 %v809
          %v842 = vunpack.c.l.b16 %v810
          %v843 = vunpack.c.l.b16 %v811
          %v844 = vunpack.c.l.b16 %v812
          %v845 = vunpack.c.l.b16 %v813
          %v846 = vunpack.c.l.b16 %v814
          %v847 = vunpack.c.l.b16 %v815
          %v848 = vpack.c.b16 %v833, %v832
          %v849 = vpack.c.b16 %v835, %v834
          %v850 = vpack.c.b16 %v837, %v836
          %v851 = vpack.c.b16 %v839, %v838
          %v852 = vpack.c.b16 %v841, %v840
          %v853 = vpack.c.b16 %v843, %v842
          %v854 = vpack.c.b16 %v845, %v844
          %v855 = vpack.c.b16 %v847, %v846
          %864 = vmatprep.subr.bf16.mxu0 0
          %865 = vmatpush1.bf16.msra.mxu0 %v855
          %866 = vmatprep.subr.bf16.mxu0 0
          %867 = vmatpush1.bf16.msra.mxu0 %v854
          %868 = vmatprep.subr.bf16.mxu0 0
          %869 = vmatpush1.bf16.msra.mxu0 %v853
          %870 = vmatprep.subr.bf16.mxu0 0
          %871 = vmatpush1.bf16.msra.mxu0 %v852
          %872 = vmatprep.subr.bf16.mxu0 0
          %873 = vmatpush1.bf16.msra.mxu0 %v851
          %874 = vmatprep.subr.bf16.mxu0 0
          %875 = vmatpush1.bf16.msra.mxu0 %v850
          %876 = vmatprep.subr.bf16.mxu0 0
          %877 = vmatpush1.bf16.msra.mxu0 %v849
          %878 = vmatprep.subr.bf16.mxu0 0
          %879 = vmatpush1.bf16.msra.mxu0 %v848
          %880 = vmatprep.subr.bf16.mxu0 0
          %881 = vmatpush2.bf16.msra.mxu0 0
          %882 = vmatprep.subr.bf16.mxu0 0
          %883 = vmatpush2.bf16.msra.mxu0 0
          %884 = vmatprep.subr.bf16.mxu0 0
          %885 = vmatpush2.bf16.msra.mxu0 0
          %886 = vmatprep.subr.bf16.mxu0 0
          %887 = vmatpush2.bf16.msra.mxu0 0
          %888 = vmatprep.subr.bf16.mxu0 0
          %889 = vmatpush2.bf16.msra.mxu0 0
          %890 = vmatprep.subr.bf16.mxu0 0
          %891 = vmatpush2.bf16.msra.mxu0 0
          %892 = vmatprep.subr.bf16.mxu0 0
          %893 = vmatpush2.bf16.msra.mxu0 0
          %894 = vmatprep.subr.bf16.mxu0 0
          %895 = vmatpush2.bf16.msra.mxu0 0
          %896 = vmatprep.mubr.bf16.mxu0 0
          %897 = vmatmul.mubr.bf16.gmra.mxu0 %v551
          %v898 = vpop.f32.mrf.mxu0
          %v899 = vadd.f32 0.0, %v898
          %v900 = vpop.f32.mrf.mxu0
          %v901 = vpop.f32.mrf.mxu0
          %v902 = vadd.f32 0.0, %v901
          %v903 = vpop.f32.mrf.mxu0
          %904 = vmatprep.mubr.bf16.mxu0 0
          %905 = vmatmul.mubr.bf16.gmra.mxu0 %v552
          %v906 = vpop.f32.mrf.mxu0
          %v907 = vadd.f32 0.0, %v906
          %v908 = vpop.f32.mrf.mxu0
          %v909 = vpop.f32.mrf.mxu0
          %v910 = vadd.f32 0.0, %v909
          %v911 = vpop.f32.mrf.mxu0
          %912 = vmatprep.mubr.bf16.mxu0 0
          %913 = vmatmul.mubr.bf16.gmra.mxu0 %v553
          %v914 = vpop.f32.mrf.mxu0
          %v915 = vadd.f32 0.0, %v914
          %v916 = vpop.f32.mrf.mxu0
          %v917 = vpop.f32.mrf.mxu0
          %v918 = vadd.f32 0.0, %v917
          %v919 = vpop.f32.mrf.mxu0
          %920 = vmatprep.mubr.bf16.mxu0 0
          %921 = vmatmul.mubr.bf16.gmra.mxu0 %v554
          %v922 = vpop.f32.mrf.mxu0
          %v923 = vadd.f32 0.0, %v922
          %v924 = vpop.f32.mrf.mxu0
          %v925 = vpop.f32.mrf.mxu0
          %v926 = vadd.f32 0.0, %v925
          %v927 = vpop.f32.mrf.mxu0
          %928 = vmatprep.mubr.bf16.mxu0 0
          %929 = vmatmul.mubr.bf16.gmra.mxu0 %v555
          %v930 = vpop.f32.mrf.mxu0
          %v931 = vadd.f32 0.0, %v930
          %v932 = vpop.f32.mrf.mxu0
          %v933 = vpop.f32.mrf.mxu0
          %v934 = vadd.f32 0.0, %v933
          %v935 = vpop.f32.mrf.mxu0
          %936 = vmatprep.mubr.bf16.mxu0 0
          %937 = vmatmul.mubr.bf16.gmra.mxu0 %v556
          %v938 = vpop.f32.mrf.mxu0
          %v939 = vadd.f32 0.0, %v938
          %v940 = vpop.f32.mrf.mxu0
          %v941 = vpop.f32.mrf.mxu0
          %v942 = vadd.f32 0.0, %v941
          %v943 = vpop.f32.mrf.mxu0
          %944 = vmatprep.mubr.bf16.mxu0 0
          %945 = vmatmul.mubr.bf16.gmra.mxu0 %v557
          %v946 = vpop.f32.mrf.mxu0
          %v947 = vadd.f32 0.0, %v946
          %v948 = vpop.f32.mrf.mxu0
          %v949 = vpop.f32.mrf.mxu0
          %v950 = vadd.f32 0.0, %v949
          %v951 = vpop.f32.mrf.mxu0
          %952 = vmatprep.mubr.bf16.mxu0 0
          %953 = vmatmul.mubr.bf16.gmra.mxu0 %v558
          %v954 = vpop.f32.mrf.mxu0
          %v955 = vadd.f32 0.0, %v954
          %v956 = vpop.f32.mrf.mxu0
          %v957 = vpop.f32.mrf.mxu0
          %v958 = vadd.f32 0.0, %v957
          %v959 = vpop.f32.mrf.mxu0
          %960 = vdwg.mxu0
          %v961 = vpack.c.bf16 %v902, %v899
          %v962 = vpack.c.bf16 %v910, %v907
          %v963 = vpack.c.bf16 %v918, %v915
          %v964 = vpack.c.bf16 %v926, %v923
          %v965 = vpack.c.bf16 %v934, %v931
          %v966 = vpack.c.bf16 %v942, %v939
          %v967 = vpack.c.bf16 %v950, %v947
          %v968 = vpack.c.bf16 %v958, %v955
          %v977 = vunpack.c.l.b16 %v961
          %v978 = vunpack.c.h.b16 %v961
          %v979 = vunpack.c.l.b16 %v962
          %v980 = vunpack.c.h.b16 %v962
          %v981 = vunpack.c.l.b16 %v963
          %v982 = vunpack.c.h.b16 %v963
          %v983 = vunpack.c.l.b16 %v964
          %v984 = vunpack.c.h.b16 %v964
          %v985 = vunpack.c.l.b16 %v965
          %v986 = vunpack.c.h.b16 %v965
          %v987 = vunpack.c.l.b16 %v966
          %v988 = vunpack.c.h.b16 %v966
          %v989 = vunpack.c.l.b16 %v967
          %v990 = vunpack.c.h.b16 %v967
          %v991 = vunpack.c.l.b16 %v968
          %v992 = vunpack.c.h.b16 %v968
          %v993 = vpack.c.b16 %v977, %v977
          %v994 = vpack.c.b16 %v978, %v978
          %v995 = vpack.c.b16 %v979, %v979
          %v996 = vpack.c.b16 %v980, %v980
          %v997 = vpack.c.b16 %v981, %v981
          %v998 = vpack.c.b16 %v982, %v982
          %v999 = vpack.c.b16 %v983, %v983
          %v1000 = vpack.c.b16 %v984, %v984
          %v1001 = vpack.c.b16 %v985, %v985
          %v1002 = vpack.c.b16 %v986, %v986
          %v1003 = vpack.c.b16 %v987, %v987
          %v1004 = vpack.c.b16 %v988, %v988
          %v1005 = vpack.c.b16 %v989, %v989
          %v1006 = vpack.c.b16 %v990, %v990
          %v1007 = vpack.c.b16 %v991, %v991
          %v1008 = vpack.c.b16 %v992, %v992
          %1025 = vst [vmem:[#allocation3] sm:$0xf] %v993
          %1026 = vst [vmem:[#allocation3 + $0x4] sm:$0xf] %v994
          %1027 = vst [vmem:[#allocation3 + $0x8] sm:$0xf] %v995
          %1028 = vst [vmem:[#allocation3 + $0xc] sm:$0xf] %v996
          %1029 = vst [vmem:[#allocation3 + $0x10] sm:$0xf] %v997
          %1030 = vst [vmem:[#allocation3 + $0x14] sm:$0xf] %v998
          %1031 = vst [vmem:[#allocation3 + $0x18] sm:$0xf] %v999
          %1032 = vst [vmem:[#allocation3 + $0x1c] sm:$0xf] %v1000
          %1033 = vst [vmem:[#allocation3 + $0x20] sm:$0xf] %v1001
          %1034 = vst [vmem:[#allocation3 + $0x24] sm:$0xf] %v1002
          %1035 = vst [vmem:[#allocation3 + $0x28] sm:$0xf] %v1003
          %1036 = vst [vmem:[#allocation3 + $0x2c] sm:$0xf] %v1004
          %1037 = vst [vmem:[#allocation3 + $0x30] sm:$0xf] %v1005
          %1038 = vst [vmem:[#allocation3 + $0x34] sm:$0xf] %v1006
          %1039 = vst [vmem:[#allocation3 + $0x38] sm:$0xf] %v1007
          %1040 = vst [vmem:[#allocation3 + $0x3c] sm:$0xf] %v1008
          %s1041 = scalar_lea.vmem [#allocation12], 64
          %v1042 = vld [vmem:[%s1041] sm:$0xf]
          %v1043 = vld [vmem:[%s1041 + $0x4] sm:$0xf]
          %v1044 = vld [vmem:[%s1041 + $0x8] sm:$0xf]
          %v1045 = vld [vmem:[%s1041 + $0xc] sm:$0xf]
          %v1046 = vld [vmem:[%s1041 + $0x10] sm:$0xf]
          %v1047 = vld [vmem:[%s1041 + $0x14] sm:$0xf]
          %v1048 = vld [vmem:[%s1041 + $0x18] sm:$0xf]
          %v1049 = vld [vmem:[%s1041 + $0x1c] sm:$0xf]
          %v1050 = vld [vmem:[%s1041 + $0x20] sm:$0xf]
          %v1051 = vld [vmem:[%s1041 + $0x24] sm:$0xf]
          %v1052 = vld [vmem:[%s1041 + $0x28] sm:$0xf]
          %v1053 = vld [vmem:[%s1041 + $0x2c] sm:$0xf]
          %v1054 = vld [vmem:[%s1041 + $0x30] sm:$0xf]
          %v1055 = vld [vmem:[%s1041 + $0x34] sm:$0xf]
          %v1056 = vld [vmem:[%s1041 + $0x38] sm:$0xf]
          %v1057 = vld [vmem:[%s1041 + $0x3c] sm:$0xf]
          %v1074 = vunpack.c.l.b16 %v1042
          %v1075 = vunpack.c.l.b16 %v1043
          %v1076 = vunpack.c.l.b16 %v1044
          %v1077 = vunpack.c.l.b16 %v1045
          %v1078 = vunpack.c.l.b16 %v1046
          %v1079 = vunpack.c.l.b16 %v1047
          %v1080 = vunpack.c.l.b16 %v1048
          %v1081 = vunpack.c.l.b16 %v1049
          %v1082 = vunpack.c.l.b16 %v1050
          %v1083 = vunpack.c.l.b16 %v1051
          %v1084 = vunpack.c.l.b16 %v1052
          %v1085 = vunpack.c.l.b16 %v1053
          %v1086 = vunpack.c.l.b16 %v1054
          %v1087 = vunpack.c.l.b16 %v1055
          %v1088 = vunpack.c.l.b16 %v1056
          %v1089 = vunpack.c.l.b16 %v1057
          %v1090 = vpack.c.b16 %v1075, %v1074
          %v1091 = vpack.c.b16 %v1077, %v1076
          %v1092 = vpack.c.b16 %v1079, %v1078
          %v1093 = vpack.c.b16 %v1081, %v1080
          %v1094 = vpack.c.b16 %v1083, %v1082
          %v1095 = vpack.c.b16 %v1085, %v1084
          %v1096 = vpack.c.b16 %v1087, %v1086
          %v1097 = vpack.c.b16 %v1089, %v1088
          %1106 = vmatprep.subr.bf16.mxu0 0
          %1107 = vmatpush1.bf16.msra.mxu0 %v1097
          %1108 = vmatprep.subr.bf16.mxu0 0
          %1109 = vmatpush1.bf16.msra.mxu0 %v1096
          %1110 = vmatprep.subr.bf16.mxu0 0
          %1111 = vmatpush1.bf16.msra.mxu0 %v1095
          %1112 = vmatprep.subr.bf16.mxu0 0
          %1113 = vmatpush1.bf16.msra.mxu0 %v1094
          %1114 = vmatprep.subr.bf16.mxu0 0
          %1115 = vmatpush1.bf16.msra.mxu0 %v1093
          %1116 = vmatprep.subr.bf16.mxu0 0
          %1117 = vmatpush1.bf16.msra.mxu0 %v1092
          %1118 = vmatprep.subr.bf16.mxu0 0
          %1119 = vmatpush1.bf16.msra.mxu0 %v1091
          %1120 = vmatprep.subr.bf16.mxu0 0
          %1121 = vmatpush1.bf16.msra.mxu0 %v1090
          %1122 = vmatprep.subr.bf16.mxu0 0
          %1123 = vmatpush2.bf16.msra.mxu0 0
          %1124 = vmatprep.subr.bf16.mxu0 0
          %1125 = vmatpush2.bf16.msra.mxu0 0
          %1126 = vmatprep.subr.bf16.mxu0 0
          %1127 = vmatpush2.bf16.msra.mxu0 0
          %1128 = vmatprep.subr.bf16.mxu0 0
          %1129 = vmatpush2.bf16.msra.mxu0 0
          %1130 = vmatprep.subr.bf16.mxu0 0
          %1131 = vmatpush2.bf16.msra.mxu0 0
          %1132 = vmatprep.subr.bf16.mxu0 0
          %1133 = vmatpush2.bf16.msra.mxu0 0
          %1134 = vmatprep.subr.bf16.mxu0 0
          %1135 = vmatpush2.bf16.msra.mxu0 0
          %1136 = vmatprep.subr.bf16.mxu0 0
          %1137 = vmatpush2.bf16.msra.mxu0 0
          %1138 = vmatprep.mubr.bf16.mxu0 0
          %1139 = vmatmul.mubr.bf16.gmra.mxu0 %v527
          %v1140 = vpop.f32.mrf.mxu0
          %v1141 = vadd.f32 0.0, %v1140
          %v1142 = vpop.f32.mrf.mxu0
          %v1143 = vpop.f32.mrf.mxu0
          %v1144 = vadd.f32 0.0, %v1143
          %v1145 = vpop.f32.mrf.mxu0
          %1146 = vmatprep.mubr.bf16.mxu0 0
          %1147 = vmatmul.mubr.bf16.gmra.mxu0 %v528
          %v1148 = vpop.f32.mrf.mxu0
          %v1149 = vadd.f32 0.0, %v1148
          %v1150 = vpop.f32.mrf.mxu0
          %v1151 = vpop.f32.mrf.mxu0
          %v1152 = vadd.f32 0.0, %v1151
          %v1153 = vpop.f32.mrf.mxu0
          %1154 = vmatprep.mubr.bf16.mxu0 0
          %1155 = vmatmul.mubr.bf16.gmra.mxu0 %v529
          %v1156 = vpop.f32.mrf.mxu0
          %v1157 = vadd.f32 0.0, %v1156
          %v1158 = vpop.f32.mrf.mxu0
          %v1159 = vpop.f32.mrf.mxu0
          %v1160 = vadd.f32 0.0, %v1159
          %v1161 = vpop.f32.mrf.mxu0
          %1162 = vmatprep.mubr.bf16.mxu0 0
          %1163 = vmatmul.mubr.bf16.gmra.mxu0 %v530
          %v1164 = vpop.f32.mrf.mxu0
          %v1165 = vadd.f32 0.0, %v1164
          %v1166 = vpop.f32.mrf.mxu0
          %v1167 = vpop.f32.mrf.mxu0
          %v1168 = vadd.f32 0.0, %v1167
          %v1169 = vpop.f32.mrf.mxu0
          %1170 = vmatprep.mubr.bf16.mxu0 0
          %1171 = vmatmul.mubr.bf16.gmra.mxu0 %v531
          %v1172 = vpop.f32.mrf.mxu0
          %v1173 = vadd.f32 0.0, %v1172
          %v1174 = vpop.f32.mrf.mxu0
          %v1175 = vpop.f32.mrf.mxu0
          %v1176 = vadd.f32 0.0, %v1175
          %v1177 = vpop.f32.mrf.mxu0
          %1178 = vmatprep.mubr.bf16.mxu0 0
          %1179 = vmatmul.mubr.bf16.gmra.mxu0 %v532
          %v1180 = vpop.f32.mrf.mxu0
          %v1181 = vadd.f32 0.0, %v1180
          %v1182 = vpop.f32.mrf.mxu0
          %v1183 = vpop.f32.mrf.mxu0
          %v1184 = vadd.f32 0.0, %v1183
          %v1185 = vpop.f32.mrf.mxu0
          %1186 = vmatprep.mubr.bf16.mxu0 0
          %1187 = vmatmul.mubr.bf16.gmra.mxu0 %v533
          %v1188 = vpop.f32.mrf.mxu0
          %v1189 = vadd.f32 0.0, %v1188
          %v1190 = vpop.f32.mrf.mxu0
          %v1191 = vpop.f32.mrf.mxu0
          %v1192 = vadd.f32 0.0, %v1191
          %v1193 = vpop.f32.mrf.mxu0
          %1194 = vmatprep.mubr.bf16.mxu0 0
          %1195 = vmatmul.mubr.bf16.gmra.mxu0 %v534
          %v1196 = vpop.f32.mrf.mxu0
          %v1197 = vadd.f32 0.0, %v1196
          %v1198 = vpop.f32.mrf.mxu0
          %v1199 = vpop.f32.mrf.mxu0
          %v1200 = vadd.f32 0.0, %v1199
          %v1201 = vpop.f32.mrf.mxu0
          %1202 = vdwg.mxu0
          %v1203 = vpack.c.bf16 %v1144, %v1141
          %v1204 = vpack.c.bf16 %v1152, %v1149
          %v1205 = vpack.c.bf16 %v1160, %v1157
          %v1206 = vpack.c.bf16 %v1168, %v1165
          %v1207 = vpack.c.bf16 %v1176, %v1173
          %v1208 = vpack.c.bf16 %v1184, %v1181
          %v1209 = vpack.c.bf16 %v1192, %v1189
          %v1210 = vpack.c.bf16 %v1200, %v1197
          %v1219 = vunpack.c.l.b16 %v1203
          %v1220 = vunpack.c.h.b16 %v1203
          %v1221 = vunpack.c.l.b16 %v1204
          %v1222 = vunpack.c.h.b16 %v1204
          %v1223 = vunpack.c.l.b16 %v1205
          %v1224 = vunpack.c.h.b16 %v1205
          %v1225 = vunpack.c.l.b16 %v1206
          %v1226 = vunpack.c.h.b16 %v1206
          %v1227 = vunpack.c.l.b16 %v1207
          %v1228 = vunpack.c.h.b16 %v1207
          %v1229 = vunpack.c.l.b16 %v1208
          %v1230 = vunpack.c.h.b16 %v1208
          %v1231 = vunpack.c.l.b16 %v1209
          %v1232 = vunpack.c.h.b16 %v1209
          %v1233 = vunpack.c.l.b16 %v1210
          %v1234 = vunpack.c.h.b16 %v1210
          %v1235 = vpack.c.b16 %v1219, %v1219
          %v1236 = vpack.c.b16 %v1220, %v1220
          %v1237 = vpack.c.b16 %v1221, %v1221
          %v1238 = vpack.c.b16 %v1222, %v1222
          %v1239 = vpack.c.b16 %v1223, %v1223
          %v1240 = vpack.c.b16 %v1224, %v1224
          %v1241 = vpack.c.b16 %v1225, %v1225
          %v1242 = vpack.c.b16 %v1226, %v1226
          %v1243 = vpack.c.b16 %v1227, %v1227
          %v1244 = vpack.c.b16 %v1228, %v1228
          %v1245 = vpack.c.b16 %v1229, %v1229
          %v1246 = vpack.c.b16 %v1230, %v1230
          %v1247 = vpack.c.b16 %v1231, %v1231
          %v1248 = vpack.c.b16 %v1232, %v1232
          %v1249 = vpack.c.b16 %v1233, %v1233
          %v1250 = vpack.c.b16 %v1234, %v1234
          %s1267 = scalar_lea.vmem [#allocation2], 64
          %1268 = vst [vmem:[%s1267] sm:$0xf] %v1235
          %1269 = vst [vmem:[%s1267 + $0x4] sm:$0xf] %v1236
          %1270 = vst [vmem:[%s1267 + $0x8] sm:$0xf] %v1237
          %1271 = vst [vmem:[%s1267 + $0xc] sm:$0xf] %v1238
          %1272 = vst [vmem:[%s1267 + $0x10] sm:$0xf] %v1239
          %1273 = vst [vmem:[%s1267 + $0x14] sm:$0xf] %v1240
          %1274 = vst [vmem:[%s1267 + $0x18] sm:$0xf] %v1241
          %1275 = vst [vmem:[%s1267 + $0x1c] sm:$0xf] %v1242
          %1276 = vst [vmem:[%s1267 + $0x20] sm:$0xf] %v1243
          %1277 = vst [vmem:[%s1267 + $0x24] sm:$0xf] %v1244
          %1278 = vst [vmem:[%s1267 + $0x28] sm:$0xf] %v1245
          %1279 = vst [vmem:[%s1267 + $0x2c] sm:$0xf] %v1246
          %1280 = vst [vmem:[%s1267 + $0x30] sm:$0xf] %v1247
          %1281 = vst [vmem:[%s1267 + $0x34] sm:$0xf] %v1248
          %1282 = vst [vmem:[%s1267 + $0x38] sm:$0xf] %v1249
          %1283 = vst [vmem:[%s1267 + $0x3c] sm:$0xf] %v1250
          %s1284 = scalar_lea.vmem [#allocation13], 64
          %v1285 = vld [vmem:[%s1284] sm:$0xf]
          %v1286 = vld [vmem:[%s1284 + $0x4] sm:$0xf]
          %v1287 = vld [vmem:[%s1284 + $0x8] sm:$0xf]
          %v1288 = vld [vmem:[%s1284 + $0xc] sm:$0xf]
          %v1289 = vld [vmem:[%s1284 + $0x10] sm:$0xf]
          %v1290 = vld [vmem:[%s1284 + $0x14] sm:$0xf]
          %v1291 = vld [vmem:[%s1284 + $0x18] sm:$0xf]
          %v1292 = vld [vmem:[%s1284 + $0x1c] sm:$0xf]
          %v1293 = vld [vmem:[%s1284 + $0x20] sm:$0xf]
          %v1294 = vld [vmem:[%s1284 + $0x24] sm:$0xf]
          %v1295 = vld [vmem:[%s1284 + $0x28] sm:$0xf]
          %v1296 = vld [vmem:[%s1284 + $0x2c] sm:$0xf]
          %v1297 = vld [vmem:[%s1284 + $0x30] sm:$0xf]
          %v1298 = vld [vmem:[%s1284 + $0x34] sm:$0xf]
          %v1299 = vld [vmem:[%s1284 + $0x38] sm:$0xf]
          %v1300 = vld [vmem:[%s1284 + $0x3c] sm:$0xf]
          %v1317 = vunpack.c.l.b16 %v1285
          %v1318 = vunpack.c.l.b16 %v1286
          %v1319 = vunpack.c.l.b16 %v1287
          %v1320 = vunpack.c.l.b16 %v1288
          %v1321 = vunpack.c.l.b16 %v1289
          %v1322 = vunpack.c.l.b16 %v1290
          %v1323 = vunpack.c.l.b16 %v1291
          %v1324 = vunpack.c.l.b16 %v1292
          %v1325 = vunpack.c.l.b16 %v1293
          %v1326 = vunpack.c.l.b16 %v1294
          %v1327 = vunpack.c.l.b16 %v1295
          %v1328 = vunpack.c.l.b16 %v1296
          %v1329 = vunpack.c.l.b16 %v1297
          %v1330 = vunpack.c.l.b16 %v1298
          %v1331 = vunpack.c.l.b16 %v1299
          %v1332 = vunpack.c.l.b16 %v1300
          %v1333 = vpack.c.b16 %v1318, %v1317
          %v1334 = vpack.c.b16 %v1320, %v1319
          %v1335 = vpack.c.b16 %v1322, %v1321
          %v1336 = vpack.c.b16 %v1324, %v1323
          %v1337 = vpack.c.b16 %v1326, %v1325
          %v1338 = vpack.c.b16 %v1328, %v1327
          %v1339 = vpack.c.b16 %v1330, %v1329
          %v1340 = vpack.c.b16 %v1332, %v1331
          %1349 = vmatprep.subr.bf16.mxu0 0
          %1350 = vmatpush1.bf16.msra.mxu0 %v1340
          %1351 = vmatprep.subr.bf16.mxu0 0
          %1352 = vmatpush1.bf16.msra.mxu0 %v1339
          %1353 = vmatprep.subr.bf16.mxu0 0
          %1354 = vmatpush1.bf16.msra.mxu0 %v1338
          %1355 = vmatprep.subr.bf16.mxu0 0
          %1356 = vmatpush1.bf16.msra.mxu0 %v1337
          %1357 = vmatprep.subr.bf16.mxu0 0
          %1358 = vmatpush1.bf16.msra.mxu0 %v1336
          %1359 = vmatprep.subr.bf16.mxu0 0
          %1360 = vmatpush1.bf16.msra.mxu0 %v1335
          %1361 = vmatprep.subr.bf16.mxu0 0
          %1362 = vmatpush1.bf16.msra.mxu0 %v1334
          %1363 = vmatprep.subr.bf16.mxu0 0
          %1364 = vmatpush1.bf16.msra.mxu0 %v1333
          %1365 = vmatprep.subr.bf16.mxu0 0
          %1366 = vmatpush2.bf16.msra.mxu0 0
          %1367 = vmatprep.subr.bf16.mxu0 0
          %1368 = vmatpush2.bf16.msra.mxu0 0
          %1369 = vmatprep.subr.bf16.mxu0 0
          %1370 = vmatpush2.bf16.msra.mxu0 0
          %1371 = vmatprep.subr.bf16.mxu0 0
          %1372 = vmatpush2.bf16.msra.mxu0 0
          %1373 = vmatprep.subr.bf16.mxu0 0
          %1374 = vmatpush2.bf16.msra.mxu0 0
          %1375 = vmatprep.subr.bf16.mxu0 0
          %1376 = vmatpush2.bf16.msra.mxu0 0
          %1377 = vmatprep.subr.bf16.mxu0 0
          %1378 = vmatpush2.bf16.msra.mxu0 0
          %1379 = vmatprep.subr.bf16.mxu0 0
          %1380 = vmatpush2.bf16.msra.mxu0 0
          %1381 = vmatprep.mubr.bf16.mxu0 0
          %1382 = vmatmul.mubr.bf16.gmra.mxu0 %v551
          %v1383 = vpop.f32.mrf.mxu0
          %v1384 = vadd.f32 0.0, %v1383
          %v1385 = vpop.f32.mrf.mxu0
          %v1386 = vpop.f32.mrf.mxu0
          %v1387 = vadd.f32 0.0, %v1386
          %v1388 = vpop.f32.mrf.mxu0
          %1389 = vmatprep.mubr.bf16.mxu0 0
          %1390 = vmatmul.mubr.bf16.gmra.mxu0 %v552
          %v1391 = vpop.f32.mrf.mxu0
          %v1392 = vadd.f32 0.0, %v1391
          %v1393 = vpop.f32.mrf.mxu0
          %v1394 = vpop.f32.mrf.mxu0
          %v1395 = vadd.f32 0.0, %v1394
          %v1396 = vpop.f32.mrf.mxu0
          %1397 = vmatprep.mubr.bf16.mxu0 0
          %1398 = vmatmul.mubr.bf16.gmra.mxu0 %v553
          %v1399 = vpop.f32.mrf.mxu0
          %v1400 = vadd.f32 0.0, %v1399
          %v1401 = vpop.f32.mrf.mxu0
          %v1402 = vpop.f32.mrf.mxu0
          %v1403 = vadd.f32 0.0, %v1402
          %v1404 = vpop.f32.mrf.mxu0
          %1405 = vmatprep.mubr.bf16.mxu0 0
          %1406 = vmatmul.mubr.bf16.gmra.mxu0 %v554
          %v1407 = vpop.f32.mrf.mxu0
          %v1408 = vadd.f32 0.0, %v1407
          %v1409 = vpop.f32.mrf.mxu0
          %v1410 = vpop.f32.mrf.mxu0
          %v1411 = vadd.f32 0.0, %v1410
          %v1412 = vpop.f32.mrf.mxu0
          %1413 = vmatprep.mubr.bf16.mxu0 0
          %1414 = vmatmul.mubr.bf16.gmra.mxu0 %v555
          %v1415 = vpop.f32.mrf.mxu0
          %v1416 = vadd.f32 0.0, %v1415
          %v1417 = vpop.f32.mrf.mxu0
          %v1418 = vpop.f32.mrf.mxu0
          %v1419 = vadd.f32 0.0, %v1418
          %v1420 = vpop.f32.mrf.mxu0
          %1421 = vmatprep.mubr.bf16.mxu0 0
          %1422 = vmatmul.mubr.bf16.gmra.mxu0 %v556
          %v1423 = vpop.f32.mrf.mxu0
          %v1424 = vadd.f32 0.0, %v1423
          %v1425 = vpop.f32.mrf.mxu0
          %v1426 = vpop.f32.mrf.mxu0
          %v1427 = vadd.f32 0.0, %v1426
          %v1428 = vpop.f32.mrf.mxu0
          %1429 = vmatprep.mubr.bf16.mxu0 0
          %1430 = vmatmul.mubr.bf16.gmra.mxu0 %v557
          %v1431 = vpop.f32.mrf.mxu0
          %v1432 = vadd.f32 0.0, %v1431
          %v1433 = vpop.f32.mrf.mxu0
          %v1434 = vpop.f32.mrf.mxu0
          %v1435 = vadd.f32 0.0, %v1434
          %v1436 = vpop.f32.mrf.mxu0
          %1437 = vmatprep.mubr.bf16.mxu0 0
          %1438 = vmatmul.mubr.bf16.gmra.mxu0 %v558
          %v1439 = vpop.f32.mrf.mxu0
          %v1440 = vadd.f32 0.0, %v1439
          %v1441 = vpop.f32.mrf.mxu0
          %v1442 = vpop.f32.mrf.mxu0
          %v1443 = vadd.f32 0.0, %v1442
          %v1444 = vpop.f32.mrf.mxu0
          %1445 = vdwg.mxu0
          %v1446 = vpack.c.bf16 %v1387, %v1384
          %v1447 = vpack.c.bf16 %v1395, %v1392
          %v1448 = vpack.c.bf16 %v1403, %v1400
          %v1449 = vpack.c.bf16 %v1411, %v1408
          %v1450 = vpack.c.bf16 %v1419, %v1416
          %v1451 = vpack.c.bf16 %v1427, %v1424
          %v1452 = vpack.c.bf16 %v1435, %v1432
          %v1453 = vpack.c.bf16 %v1443, %v1440
          %v1462 = vunpack.c.l.b16 %v1446
          %v1463 = vunpack.c.h.b16 %v1446
          %v1464 = vunpack.c.l.b16 %v1447
          %v1465 = vunpack.c.h.b16 %v1447
          %v1466 = vunpack.c.l.b16 %v1448
          %v1467 = vunpack.c.h.b16 %v1448
          %v1468 = vunpack.c.l.b16 %v1449
          %v1469 = vunpack.c.h.b16 %v1449
          %v1470 = vunpack.c.l.b16 %v1450
          %v1471 = vunpack.c.h.b16 %v1450
          %v1472 = vunpack.c.l.b16 %v1451
          %v1473 = vunpack.c.h.b16 %v1451
          %v1474 = vunpack.c.l.b16 %v1452
          %v1475 = vunpack.c.h.b16 %v1452
          %v1476 = vunpack.c.l.b16 %v1453
          %v1477 = vunpack.c.h.b16 %v1453
          %v1478 = vpack.c.b16 %v1462, %v1462
          %v1479 = vpack.c.b16 %v1463, %v1463
          %v1480 = vpack.c.b16 %v1464, %v1464
          %v1481 = vpack.c.b16 %v1465, %v1465
          %v1482 = vpack.c.b16 %v1466, %v1466
          %v1483 = vpack.c.b16 %v1467, %v1467
          %v1484 = vpack.c.b16 %v1468, %v1468
          %v1485 = vpack.c.b16 %v1469, %v1469
          %v1486 = vpack.c.b16 %v1470, %v1470
          %v1487 = vpack.c.b16 %v1471, %v1471
          %v1488 = vpack.c.b16 %v1472, %v1472
          %v1489 = vpack.c.b16 %v1473, %v1473
          %v1490 = vpack.c.b16 %v1474, %v1474
          %v1491 = vpack.c.b16 %v1475, %v1475
          %v1492 = vpack.c.b16 %v1476, %v1476
          %v1493 = vpack.c.b16 %v1477, %v1477
          %s1510 = scalar_lea.vmem [#allocation3], 64
          %1511 = vst [vmem:[%s1510] sm:$0xf] %v1478
          %1512 = vst [vmem:[%s1510 + $0x4] sm:$0xf] %v1479
          %1513 = vst [vmem:[%s1510 + $0x8] sm:$0xf] %v1480
          %1514 = vst [vmem:[%s1510 + $0xc] sm:$0xf] %v1481
          %1515 = vst [vmem:[%s1510 + $0x10] sm:$0xf] %v1482
          %1516 = vst [vmem:[%s1510 + $0x14] sm:$0xf] %v1483
          %1517 = vst [vmem:[%s1510 + $0x18] sm:$0xf] %v1484
          %1518 = vst [vmem:[%s1510 + $0x1c] sm:$0xf] %v1485
          %1519 = vst [vmem:[%s1510 + $0x20] sm:$0xf] %v1486
          %1520 = vst [vmem:[%s1510 + $0x24] sm:$0xf] %v1487
          %1521 = vst [vmem:[%s1510 + $0x28] sm:$0xf] %v1488
          %1522 = vst [vmem:[%s1510 + $0x2c] sm:$0xf] %v1489
          %1523 = vst [vmem:[%s1510 + $0x30] sm:$0xf] %v1490
          %1524 = vst [vmem:[%s1510 + $0x34] sm:$0xf] %v1491
          %1525 = vst [vmem:[%s1510 + $0x38] sm:$0xf] %v1492
          %1526 = vst [vmem:[%s1510 + $0x3c] sm:$0xf] %v1493
        $region88: #{tpu_custom_call.1} parent=55 // pred_fallthru
          _
        %v1527 = vld [vmem:[%s425] sm:$0xff]
        %v1528 = vld [vmem:[%s425 + $0x8] sm:$0xff]
        %v1529 = vld [vmem:[%s425 + $0x10] sm:$0xff]
        %v1530 = vld [vmem:[%s425 + $0x18] sm:$0xff]
        %v1531 = vld [vmem:[%s425 + $0x20] sm:$0xff]
        %v1532 = vld [vmem:[%s425 + $0x28] sm:$0xff]
        %v1533 = vld [vmem:[%s425 + $0x30] sm:$0xff]
        %v1534 = vld [vmem:[%s425 + $0x38] sm:$0xff]
        %v1535 = vld [vmem:[%s425 + $0x40] sm:$0xff]
        %v1536 = vld [vmem:[%s425 + $0x48] sm:$0xff]
        %v1537 = vld [vmem:[%s425 + $0x50] sm:$0xff]
        %v1538 = vld [vmem:[%s425 + $0x58] sm:$0xff]
        %v1539 = vld [vmem:[%s425 + $0x60] sm:$0xff]
        %v1540 = vld [vmem:[%s425 + $0x68] sm:$0xff]
        %v1541 = vld [vmem:[%s425 + $0x70] sm:$0xff]
        %v1542 = vld [vmem:[%s425 + $0x78] sm:$0xff]
        %v1543 = vpack.c.bf16 %v1528, %v1527
        %v1544 = vpack.c.bf16 %v1530, %v1529
        %v1545 = vpack.c.bf16 %v1532, %v1531
        %v1546 = vpack.c.bf16 %v1534, %v1533
        %v1547 = vpack.c.bf16 %v1536, %v1535
        %v1548 = vpack.c.bf16 %v1538, %v1537
        %v1549 = vpack.c.bf16 %v1540, %v1539
        %v1550 = vpack.c.bf16 %v1542, %v1541
        %v1551 = vld [vmem:[#allocation10] sm:$0xf]
        %v1552 = vld [vmem:[#allocation10 + $0x4] sm:$0xf]
        %v1553 = vld [vmem:[#allocation10 + $0x8] sm:$0xf]
        %v1554 = vld [vmem:[#allocation10 + $0xc] sm:$0xf]
        %v1555 = vld [vmem:[#allocation10 + $0x10] sm:$0xf]
        %v1556 = vld [vmem:[#allocation10 + $0x14] sm:$0xf]
        %v1557 = vld [vmem:[#allocation10 + $0x18] sm:$0xf]
        %v1558 = vld [vmem:[#allocation10 + $0x1c] sm:$0xf]
        %v1559 = vld [vmem:[#allocation10 + $0x20] sm:$0xf]
        %v1560 = vld [vmem:[#allocation10 + $0x24] sm:$0xf]
        %v1561 = vld [vmem:[#allocation10 + $0x28] sm:$0xf]
        %v1562 = vld [vmem:[#allocation10 + $0x2c] sm:$0xf]
        %v1563 = vld [vmem:[#allocation10 + $0x30] sm:$0xf]
        %v1564 = vld [vmem:[#allocation10 + $0x34] sm:$0xf]
        %v1565 = vld [vmem:[#allocation10 + $0x38] sm:$0xf]
        %v1566 = vld [vmem:[#allocation10 + $0x3c] sm:$0xf]
        %v1583 = vunpack.c.l.b16 %v1551
        %v1584 = vunpack.c.l.b16 %v1552
        %v1585 = vunpack.c.l.b16 %v1553
        %v1586 = vunpack.c.l.b16 %v1554
        %v1587 = vunpack.c.l.b16 %v1555
        %v1588 = vunpack.c.l.b16 %v1556
        %v1589 = vunpack.c.l.b16 %v1557
        %v1590 = vunpack.c.l.b16 %v1558
        %v1591 = vunpack.c.l.b16 %v1559
        %v1592 = vunpack.c.l.b16 %v1560
        %v1593 = vunpack.c.l.b16 %v1561
        %v1594 = vunpack.c.l.b16 %v1562
        %v1595 = vunpack.c.l.b16 %v1563
        %v1596 = vunpack.c.l.b16 %v1564
        %v1597 = vunpack.c.l.b16 %v1565
        %v1598 = vunpack.c.l.b16 %v1566
        %v1599 = vpack.c.b16 %v1584, %v1583
        %v1600 = vpack.c.b16 %v1586, %v1585
        %v1601 = vpack.c.b16 %v1588, %v1587
        %v1602 = vpack.c.b16 %v1590, %v1589
        %v1603 = vpack.c.b16 %v1592, %v1591
        %v1604 = vpack.c.b16 %v1594, %v1593
        %v1605 = vpack.c.b16 %v1596, %v1595
        %v1606 = vpack.c.b16 %v1598, %v1597
        %1615 = vmatprep.subr.bf16.mxu0 0
        %1616 = vmatpush1.bf16.msra.mxu0 %v1606
        %1617 = vmatprep.subr.bf16.mxu0 0
        %1618 = vmatpush1.bf16.msra.mxu0 %v1605
        %1619 = vmatprep.subr.bf16.mxu0 0
        %1620 = vmatpush1.bf16.msra.mxu0 %v1604
        %1621 = vmatprep.subr.bf16.mxu0 0
        %1622 = vmatpush1.bf16.msra.mxu0 %v1603
        %1623 = vmatprep.subr.bf16.mxu0 0
        %1624 = vmatpush1.bf16.msra.mxu0 %v1602
        %1625 = vmatprep.subr.bf16.mxu0 0
        %1626 = vmatpush1.bf16.msra.mxu0 %v1601
        %1627 = vmatprep.subr.bf16.mxu0 0
        %1628 = vmatpush1.bf16.msra.mxu0 %v1600
        %1629 = vmatprep.subr.bf16.mxu0 0
        %1630 = vmatpush1.bf16.msra.mxu0 %v1599
        %1631 = vmatprep.subr.bf16.mxu0 0
        %1632 = vmatpush2.bf16.msra.mxu0 0
        %1633 = vmatprep.subr.bf16.mxu0 0
        %1634 = vmatpush2.bf16.msra.mxu0 0
        %1635 = vmatprep.subr.bf16.mxu0 0
        %1636 = vmatpush2.bf16.msra.mxu0 0
        %1637 = vmatprep.subr.bf16.mxu0 0
        %1638 = vmatpush2.bf16.msra.mxu0 0
        %1639 = vmatprep.subr.bf16.mxu0 0
        %1640 = vmatpush2.bf16.msra.mxu0 0
        %1641 = vmatprep.subr.bf16.mxu0 0
        %1642 = vmatpush2.bf16.msra.mxu0 0
        %1643 = vmatprep.subr.bf16.mxu0 0
        %1644 = vmatpush2.bf16.msra.mxu0 0
        %1645 = vmatprep.subr.bf16.mxu0 0
        %1646 = vmatpush2.bf16.msra.mxu0 0
        %1647 = vmatprep.mubr.bf16.mxu0 0
        %1648 = vmatmul.mubr.bf16.gmra.mxu0 %v1543
        %v1649 = vpop.f32.mrf.mxu0
        %v1650 = vadd.f32 0.0, %v1649
        %v1651 = vpop.f32.mrf.mxu0
        %v1652 = vpop.f32.mrf.mxu0
        %v1653 = vadd.f32 0.0, %v1652
        %v1654 = vpop.f32.mrf.mxu0
        %1655 = vmatprep.mubr.bf16.mxu0 0
        %1656 = vmatmul.mubr.bf16.gmra.mxu0 %v1544
        %v1657 = vpop.f32.mrf.mxu0
        %v1658 = vadd.f32 0.0, %v1657
        %v1659 = vpop.f32.mrf.mxu0
        %v1660 = vpop.f32.mrf.mxu0
        %v1661 = vadd.f32 0.0, %v1660
        %v1662 = vpop.f32.mrf.mxu0
        %1663 = vmatprep.mubr.bf16.mxu0 0
        %1664 = vmatmul.mubr.bf16.gmra.mxu0 %v1545
        %v1665 = vpop.f32.mrf.mxu0
        %v1666 = vadd.f32 0.0, %v1665
        %v1667 = vpop.f32.mrf.mxu0
        %v1668 = vpop.f32.mrf.mxu0
        %v1669 = vadd.f32 0.0, %v1668
        %v1670 = vpop.f32.mrf.mxu0
        %1671 = vmatprep.mubr.bf16.mxu0 0
        %1672 = vmatmul.mubr.bf16.gmra.mxu0 %v1546
        %v1673 = vpop.f32.mrf.mxu0
        %v1674 = vadd.f32 0.0, %v1673
        %v1675 = vpop.f32.mrf.mxu0
        %v1676 = vpop.f32.mrf.mxu0
        %v1677 = vadd.f32 0.0, %v1676
        %v1678 = vpop.f32.mrf.mxu0
        %1679 = vmatprep.mubr.bf16.mxu0 0
        %1680 = vmatmul.mubr.bf16.gmra.mxu0 %v1547
        %v1681 = vpop.f32.mrf.mxu0
        %v1682 = vadd.f32 0.0, %v1681
        %v1683 = vpop.f32.mrf.mxu0
        %v1684 = vpop.f32.mrf.mxu0
        %v1685 = vadd.f32 0.0, %v1684
        %v1686 = vpop.f32.mrf.mxu0
        %1687 = vmatprep.mubr.bf16.mxu0 0
        %1688 = vmatmul.mubr.bf16.gmra.mxu0 %v1548
        %v1689 = vpop.f32.mrf.mxu0
        %v1690 = vadd.f32 0.0, %v1689
        %v1691 = vpop.f32.mrf.mxu0
        %v1692 = vpop.f32.mrf.mxu0
        %v1693 = vadd.f32 0.0, %v1692
        %v1694 = vpop.f32.mrf.mxu0
        %1695 = vmatprep.mubr.bf16.mxu0 0
        %1696 = vmatmul.mubr.bf16.gmra.mxu0 %v1549
        %v1697 = vpop.f32.mrf.mxu0
        %v1698 = vadd.f32 0.0, %v1697
        %v1699 = vpop.f32.mrf.mxu0
        %v1700 = vpop.f32.mrf.mxu0
        %v1701 = vadd.f32 0.0, %v1700
        %v1702 = vpop.f32.mrf.mxu0
        %1703 = vmatprep.mubr.bf16.mxu0 0
        %1704 = vmatmul.mubr.bf16.gmra.mxu0 %v1550
        %v1705 = vpop.f32.mrf.mxu0
        %v1706 = vadd.f32 0.0, %v1705
        %v1707 = vpop.f32.mrf.mxu0
        %v1708 = vpop.f32.mrf.mxu0
        %v1709 = vadd.f32 0.0, %v1708
        %v1710 = vpop.f32.mrf.mxu0
        %1711 = vdwg.mxu0
        %v1712 = vpack.c.bf16 %v1653, %v1650
        %v1713 = vpack.c.bf16 %v1661, %v1658
        %v1714 = vpack.c.bf16 %v1669, %v1666
        %v1715 = vpack.c.bf16 %v1677, %v1674
        %v1716 = vpack.c.bf16 %v1685, %v1682
        %v1717 = vpack.c.bf16 %v1693, %v1690
        %v1718 = vpack.c.bf16 %v1701, %v1698
        %v1719 = vpack.c.bf16 %v1709, %v1706
        %v1720 = vld [vmem:[#allocation2] sm:$0xf]
        %v1721 = vld [vmem:[#allocation2 + $0x4] sm:$0xf]
        %v1722 = vld [vmem:[#allocation2 + $0x8] sm:$0xf]
        %v1723 = vld [vmem:[#allocation2 + $0xc] sm:$0xf]
        %v1724 = vld [vmem:[#allocation2 + $0x10] sm:$0xf]
        %v1725 = vld [vmem:[#allocation2 + $0x14] sm:$0xf]
        %v1726 = vld [vmem:[#allocation2 + $0x18] sm:$0xf]
        %v1727 = vld [vmem:[#allocation2 + $0x1c] sm:$0xf]
        %v1728 = vld [vmem:[#allocation2 + $0x20] sm:$0xf]
        %v1729 = vld [vmem:[#allocation2 + $0x24] sm:$0xf]
        %v1730 = vld [vmem:[#allocation2 + $0x28] sm:$0xf]
        %v1731 = vld [vmem:[#allocation2 + $0x2c] sm:$0xf]
        %v1732 = vld [vmem:[#allocation2 + $0x30] sm:$0xf]
        %v1733 = vld [vmem:[#allocation2 + $0x34] sm:$0xf]
        %v1734 = vld [vmem:[#allocation2 + $0x38] sm:$0xf]
        %v1735 = vld [vmem:[#allocation2 + $0x3c] sm:$0xf]
        %v1736 = vld [vmem:[#allocation3] sm:$0xf]
        %v1737 = vld [vmem:[#allocation3 + $0x4] sm:$0xf]
        %v1738 = vld [vmem:[#allocation3 + $0x8] sm:$0xf]
        %v1739 = vld [vmem:[#allocation3 + $0xc] sm:$0xf]
        %v1740 = vld [vmem:[#allocation3 + $0x10] sm:$0xf]
        %v1741 = vld [vmem:[#allocation3 + $0x14] sm:$0xf]
        %v1742 = vld [vmem:[#allocation3 + $0x18] sm:$0xf]
        %v1743 = vld [vmem:[#allocation3 + $0x1c] sm:$0xf]
        %v1744 = vld [vmem:[#allocation3 + $0x20] sm:$0xf]
        %v1745 = vld [vmem:[#allocation3 + $0x24] sm:$0xf]
        %v1746 = vld [vmem:[#allocation3 + $0x28] sm:$0xf]
        %v1747 = vld [vmem:[#allocation3 + $0x2c] sm:$0xf]
        %v1748 = vld [vmem:[#allocation3 + $0x30] sm:$0xf]
        %v1749 = vld [vmem:[#allocation3 + $0x34] sm:$0xf]
        %v1750 = vld [vmem:[#allocation3 + $0x38] sm:$0xf]
        %v1751 = vld [vmem:[#allocation3 + $0x3c] sm:$0xf]
        %v1768 = vunpack.c.l.b16 %v1720
        %v1769 = vunpack.c.l.b16 %v1721
        %v1770 = vunpack.c.l.b16 %v1722
        %v1771 = vunpack.c.l.b16 %v1723
        %v1772 = vunpack.c.l.b16 %v1724
        %v1773 = vunpack.c.l.b16 %v1725
        %v1774 = vunpack.c.l.b16 %v1726
        %v1775 = vunpack.c.l.b16 %v1727
        %v1776 = vunpack.c.l.b16 %v1728
        %v1777 = vunpack.c.l.b16 %v1729
        %v1778 = vunpack.c.l.b16 %v1730
        %v1779 = vunpack.c.l.b16 %v1731
        %v1780 = vunpack.c.l.b16 %v1732
        %v1781 = vunpack.c.l.b16 %v1733
        %v1782 = vunpack.c.l.b16 %v1734
        %v1783 = vunpack.c.l.b16 %v1735
        %v1784 = vpack.c.b16 %v1769, %v1768
        %v1785 = vpack.c.b16 %v1771, %v1770
        %v1786 = vpack.c.b16 %v1773, %v1772
        %v1787 = vpack.c.b16 %v1775, %v1774
        %v1788 = vpack.c.b16 %v1777, %v1776
        %v1789 = vpack.c.b16 %v1779, %v1778
        %v1790 = vpack.c.b16 %v1781, %v1780
        %v1791 = vpack.c.b16 %v1783, %v1782
        %1800 = vmatprep.subr.bf16.mxu0 0
        %1801 = vmatpush1.bf16.xpose.msra.mxu0 %v1791
        %1802 = vmatprep.subr.bf16.mxu0 0
        %1803 = vmatpush1.bf16.xpose.msra.mxu0 %v1790
        %1804 = vmatprep.subr.bf16.mxu0 0
        %1805 = vmatpush1.bf16.xpose.msra.mxu0 %v1789
        %1806 = vmatprep.subr.bf16.mxu0 0
        %1807 = vmatpush1.bf16.xpose.msra.mxu0 %v1788
        %1808 = vmatprep.subr.bf16.mxu0 0
        %1809 = vmatpush1.bf16.xpose.msra.mxu0 %v1787
        %1810 = vmatprep.subr.bf16.mxu0 0
        %1811 = vmatpush1.bf16.xpose.msra.mxu0 %v1786
        %1812 = vmatprep.subr.bf16.mxu0 0
        %1813 = vmatpush1.bf16.xpose.msra.mxu0 %v1785
        %1814 = vmatprep.subr.bf16.mxu0 0
        %1815 = vmatpush1.bf16.xpose.msra.mxu0 %v1784
        %1816 = vmatprep.subr.bf16.mxu0 0
        %1817 = vmatpush2.bf16.xpose.msra.mxu0 0
        %1818 = vmatprep.subr.bf16.mxu0 0
        %1819 = vmatpush2.bf16.xpose.msra.mxu0 0
        %1820 = vmatprep.subr.bf16.mxu0 0
        %1821 = vmatpush2.bf16.xpose.msra.mxu0 0
        %1822 = vmatprep.subr.bf16.mxu0 0
        %1823 = vmatpush2.bf16.xpose.msra.mxu0 0
        %1824 = vmatprep.subr.bf16.mxu0 0
        %1825 = vmatpush2.bf16.xpose.msra.mxu0 0
        %1826 = vmatprep.subr.bf16.mxu0 0
        %1827 = vmatpush2.bf16.xpose.msra.mxu0 0
        %1828 = vmatprep.subr.bf16.mxu0 0
        %1829 = vmatpush2.bf16.xpose.msra.mxu0 0
        %1830 = vmatprep.subr.bf16.mxu0 0
        %1831 = vmatpush2.bf16.xpose.msra.mxu0 0
        %1832 = vmatprep.mubr.bf16.mxu0 0
        %1833 = vmatmul.mubr.bf16.gmra.mxu0 %v1712
        %v1834 = vpop.f32.mrf.mxu0
        %v1835 = vadd.f32 0.0, %v1834
        %v1836 = vpop.f32.mrf.mxu0
        %v1837 = vpop.f32.mrf.mxu0
        %v1838 = vadd.f32 0.0, %v1837
        %v1839 = vpop.f32.mrf.mxu0
        %1840 = vmatprep.mubr.bf16.mxu0 0
        %1841 = vmatmul.mubr.bf16.gmra.mxu0 %v1713
        %v1842 = vpop.f32.mrf.mxu0
        %v1843 = vadd.f32 0.0, %v1842
        %v1844 = vpop.f32.mrf.mxu0
        %v1845 = vpop.f32.mrf.mxu0
        %v1846 = vadd.f32 0.0, %v1845
        %v1847 = vpop.f32.mrf.mxu0
        %1848 = vmatprep.mubr.bf16.mxu0 0
        %1849 = vmatmul.mubr.bf16.gmra.mxu0 %v1714
        %v1850 = vpop.f32.mrf.mxu0
        %v1851 = vadd.f32 0.0, %v1850
        %v1852 = vpop.f32.mrf.mxu0
        %v1853 = vpop.f32.mrf.mxu0
        %v1854 = vadd.f32 0.0, %v1853
        %v1855 = vpop.f32.mrf.mxu0
        %1856 = vmatprep.mubr.bf16.mxu0 0
        %1857 = vmatmul.mubr.bf16.gmra.mxu0 %v1715
        %v1858 = vpop.f32.mrf.mxu0
        %v1859 = vadd.f32 0.0, %v1858
        %v1860 = vpop.f32.mrf.mxu0
        %v1861 = vpop.f32.mrf.mxu0
        %v1862 = vadd.f32 0.0, %v1861
        %v1863 = vpop.f32.mrf.mxu0
        %1864 = vmatprep.mubr.bf16.mxu0 0
        %1865 = vmatmul.mubr.bf16.gmra.mxu0 %v1716
        %v1866 = vpop.f32.mrf.mxu0
        %v1867 = vadd.f32 0.0, %v1866
        %v1868 = vpop.f32.mrf.mxu0
        %v1869 = vpop.f32.mrf.mxu0
        %v1870 = vadd.f32 0.0, %v1869
        %v1871 = vpop.f32.mrf.mxu0
        %1872 = vmatprep.mubr.bf16.mxu0 0
        %1873 = vmatmul.mubr.bf16.gmra.mxu0 %v1717
        %v1874 = vpop.f32.mrf.mxu0
        %v1875 = vadd.f32 0.0, %v1874
        %v1876 = vpop.f32.mrf.mxu0
        %v1877 = vpop.f32.mrf.mxu0
        %v1878 = vadd.f32 0.0, %v1877
        %v1879 = vpop.f32.mrf.mxu0
        %1880 = vmatprep.mubr.bf16.mxu0 0
        %1881 = vmatmul.mubr.bf16.gmra.mxu0 %v1718
        %v1882 = vpop.f32.mrf.mxu0
        %v1883 = vadd.f32 0.0, %v1882
        %v1884 = vpop.f32.mrf.mxu0
        %v1885 = vpop.f32.mrf.mxu0
        %v1886 = vadd.f32 0.0, %v1885
        %v1887 = vpop.f32.mrf.mxu0
        %1888 = vmatprep.mubr.bf16.mxu0 0
        %1889 = vmatmul.mubr.bf16.gmra.mxu0 %v1719
        %v1890 = vpop.f32.mrf.mxu0
        %v1891 = vadd.f32 0.0, %v1890
        %v1892 = vpop.f32.mrf.mxu0
        %v1893 = vpop.f32.mrf.mxu0
        %v1894 = vadd.f32 0.0, %v1893
        %v1895 = vpop.f32.mrf.mxu0
        %1896 = vdwg.mxu0
        %1897 = vmax.xlane.f32.xlu0 %v1835
        %v1898 = vpop.xlane.xlu0 %1897
        %1899 = vmax.xlane.f32.xlu0 %v1838
        %v1900 = vpop.xlane.xlu0 %1899
        %1901 = vmax.xlane.f32.xlu0 %v1843
        %v1902 = vpop.xlane.xlu0 %1901
        %1903 = vmax.xlane.f32.xlu0 %v1846
        %v1904 = vpop.xlane.xlu0 %1903
        %1905 = vmax.xlane.f32.xlu0 %v1851
        %v1906 = vpop.xlane.xlu0 %1905
        %1907 = vmax.xlane.f32.xlu0 %v1854
        %v1908 = vpop.xlane.xlu0 %1907
        %1909 = vmax.xlane.f32.xlu0 %v1859
        %v1910 = vpop.xlane.xlu0 %1909
        %1911 = vmax.xlane.f32.xlu0 %v1862
        %v1912 = vpop.xlane.xlu0 %1911
        %1913 = vmax.xlane.f32.xlu0 %v1867
        %v1914 = vpop.xlane.xlu0 %1913
        %1915 = vmax.xlane.f32.xlu0 %v1870
        %v1916 = vpop.xlane.xlu0 %1915
        %1917 = vmax.xlane.f32.xlu0 %v1875
        %v1918 = vpop.xlane.xlu0 %1917
        %1919 = vmax.xlane.f32.xlu0 %v1878
        %v1920 = vpop.xlane.xlu0 %1919
        %1921 = vmax.xlane.f32.xlu0 %v1883
        %v1922 = vpop.xlane.xlu0 %1921
        %1923 = vmax.xlane.f32.xlu0 %v1886
        %v1924 = vpop.xlane.xlu0 %1923
        %1925 = vmax.xlane.f32.xlu0 %v1891
        %v1926 = vpop.xlane.xlu0 %1925
        %1927 = vmax.xlane.f32.xlu0 %v1894
        %v1928 = vpop.xlane.xlu0 %1927
        %v1929 = vsub.f32 %v1835, %v1898
        %v1930 = vsub.f32 %v1838, %v1900
        %v1931 = vsub.f32 %v1843, %v1902
        %v1932 = vsub.f32 %v1846, %v1904
        %v1933 = vsub.f32 %v1851, %v1906
        %v1934 = vsub.f32 %v1854, %v1908
        %v1935 = vsub.f32 %v1859, %v1910
        %v1936 = vsub.f32 %v1862, %v1912
        %v1937 = vsub.f32 %v1867, %v1914
        %v1938 = vsub.f32 %v1870, %v1916
        %v1939 = vsub.f32 %v1875, %v1918
        %v1940 = vsub.f32 %v1878, %v1920
        %v1941 = vsub.f32 %v1883, %v1922
        %v1942 = vsub.f32 %v1886, %v1924
        %v1943 = vsub.f32 %v1891, %v1926
        %v1944 = vsub.f32 %v1894, %v1928
        %v1945 = vmul.f32 %v1929, 1.442695
        %v1946 = vpow.pop %v1945
        %v1947 = vmul.f32 %v1930, 1.442695
        %v1948 = vpow.pop %v1947
        %v1949 = vmul.f32 %v1931, 1.442695
        %v1950 = vpow.pop %v1949
        %v1951 = vmul.f32 %v1932, 1.442695
        %v1952 = vpow.pop %v1951
        %v1953 = vmul.f32 %v1933, 1.442695
        %v1954 = vpow.pop %v1953
        %v1955 = vmul.f32 %v1934, 1.442695
        %v1956 = vpow.pop %v1955
        %v1957 = vmul.f32 %v1935, 1.442695
        %v1958 = vpow.pop %v1957
        %v1959 = vmul.f32 %v1936, 1.442695
        %v1960 = vpow.pop %v1959
        %v1961 = vmul.f32 %v1937, 1.442695
        %v1962 = vpow.pop %v1961
        %v1963 = vmul.f32 %v1938, 1.442695
        %v1964 = vpow.pop %v1963
        %v1965 = vmul.f32 %v1939, 1.442695
        %v1966 = vpow.pop %v1965
        %v1967 = vmul.f32 %v1940, 1.442695
        %v1968 = vpow.pop %v1967
        %v1969 = vmul.f32 %v1941, 1.442695
        %v1970 = vpow.pop %v1969
        %v1971 = vmul.f32 %v1942, 1.442695
        %v1972 = vpow.pop %v1971
        %v1973 = vmul.f32 %v1943, 1.442695
        %v1974 = vpow.pop %v1973
        %v1975 = vmul.f32 %v1944, 1.442695
        %v1976 = vpow.pop %v1975
        %1977 = vadd.xlane.f32.xlu0 %v1946
        %v1978 = vpop.xlane.xlu0 %1977
        %1979 = vadd.xlane.f32.xlu0 %v1948
        %v1980 = vpop.xlane.xlu0 %1979
        %1981 = vadd.xlane.f32.xlu0 %v1950
        %v1982 = vpop.xlane.xlu0 %1981
        %1983 = vadd.xlane.f32.xlu0 %v1952
        %v1984 = vpop.xlane.xlu0 %1983
        %1985 = vadd.xlane.f32.xlu0 %v1954
        %v1986 = vpop.xlane.xlu0 %1985
        %1987 = vadd.xlane.f32.xlu0 %v1956
        %v1988 = vpop.xlane.xlu0 %1987
        %1989 = vadd.xlane.f32.xlu0 %v1958
        %v1990 = vpop.xlane.xlu0 %1989
        %1991 = vadd.xlane.f32.xlu0 %v1960
        %v1992 = vpop.xlane.xlu0 %1991
        %1993 = vadd.xlane.f32.xlu0 %v1962
        %v1994 = vpop.xlane.xlu0 %1993
        %1995 = vadd.xlane.f32.xlu0 %v1964
        %v1996 = vpop.xlane.xlu0 %1995
        %1997 = vadd.xlane.f32.xlu0 %v1966
        %v1998 = vpop.xlane.xlu0 %1997
        %1999 = vadd.xlane.f32.xlu0 %v1968
        %v2000 = vpop.xlane.xlu0 %1999
        %2001 = vadd.xlane.f32.xlu0 %v1970
        %v2002 = vpop.xlane.xlu0 %2001
        %2003 = vadd.xlane.f32.xlu0 %v1972
        %v2004 = vpop.xlane.xlu0 %2003
        %2005 = vadd.xlane.f32.xlu0 %v1974
        %v2006 = vpop.xlane.xlu0 %2005
        %2007 = vadd.xlane.f32.xlu0 %v1976
        %v2008 = vpop.xlane.xlu0 %2007
        %v2009 = vrcp.pop %v1978
        %v2010 = vrcp.pop %v1980
        %v2011 = vrcp.pop %v1982
        %v2012 = vrcp.pop %v1984
        %v2013 = vrcp.pop %v1986
        %v2014 = vrcp.pop %v1988
        %v2015 = vrcp.pop %v1990
        %v2016 = vrcp.pop %v1992
        %v2017 = vrcp.pop %v1994
        %v2018 = vrcp.pop %v1996
        %v2019 = vrcp.pop %v1998
        %v2020 = vrcp.pop %v2000
        %v2021 = vrcp.pop %v2002
        %v2022 = vrcp.pop %v2004
        %v2023 = vrcp.pop %v2006
        %v2024 = vrcp.pop %v2008
        %v2025 = vmul.f32 %v1946, %v2009
        %v2026 = vmul.f32 %v1948, %v2010
        %v2027 = vmul.f32 %v1950, %v2011
        %v2028 = vmul.f32 %v1952, %v2012
        %v2029 = vmul.f32 %v1954, %v2013
        %v2030 = vmul.f32 %v1956, %v2014
        %v2031 = vmul.f32 %v1958, %v2015
        %v2032 = vmul.f32 %v1960, %v2016
        %v2033 = vmul.f32 %v1962, %v2017
        %v2034 = vmul.f32 %v1964, %v2018
        %v2035 = vmul.f32 %v1966, %v2019
        %v2036 = vmul.f32 %v1968, %v2020
        %v2037 = vmul.f32 %v1970, %v2021
        %v2038 = vmul.f32 %v1972, %v2022
        %v2039 = vmul.f32 %v1974, %v2023
        %v2040 = vmul.f32 %v1976, %v2024
        %v2041 = vpack.c.bf16 %v2026, %v2025
        %v2042 = vpack.c.bf16 %v2028, %v2027
        %v2043 = vpack.c.bf16 %v2030, %v2029
        %v2044 = vpack.c.bf16 %v2032, %v2031
        %v2045 = vpack.c.bf16 %v2034, %v2033
        %v2046 = vpack.c.bf16 %v2036, %v2035
        %v2047 = vpack.c.bf16 %v2038, %v2037
        %v2048 = vpack.c.bf16 %v2040, %v2039
        %v2065 = vunpack.c.l.b16 %v1736
        %v2066 = vunpack.c.l.b16 %v1737
        %v2067 = vunpack.c.l.b16 %v1738
        %v2068 = vunpack.c.l.b16 %v1739
        %v2069 = vunpack.c.l.b16 %v1740
        %v2070 = vunpack.c.l.b16 %v1741
        %v2071 = vunpack.c.l.b16 %v1742
        %v2072 = vunpack.c.l.b16 %v1743
        %v2073 = vunpack.c.l.b16 %v1744
        %v2074 = vunpack.c.l.b16 %v1745
        %v2075 = vunpack.c.l.b16 %v1746
        %v2076 = vunpack.c.l.b16 %v1747
        %v2077 = vunpack.c.l.b16 %v1748
        %v2078 = vunpack.c.l.b16 %v1749
        %v2079 = vunpack.c.l.b16 %v1750
        %v2080 = vunpack.c.l.b16 %v1751
        %v2081 = vpack.c.b16 %v2066, %v2065
        %v2082 = vpack.c.b16 %v2068, %v2067
        %v2083 = vpack.c.b16 %v2070, %v2069
        %v2084 = vpack.c.b16 %v2072, %v2071
        %v2085 = vpack.c.b16 %v2074, %v2073
        %v2086 = vpack.c.b16 %v2076, %v2075
        %v2087 = vpack.c.b16 %v2078, %v2077
        %v2088 = vpack.c.b16 %v2080, %v2079
        %2097 = vmatprep.subr.bf16.mxu0 0
        %2098 = vmatpush1.bf16.msra.mxu0 %v2088
        %2099 = vmatprep.subr.bf16.mxu0 0
        %2100 = vmatpush1.bf16.msra.mxu0 %v2087
        %2101 = vmatprep.subr.bf16.mxu0 0
        %2102 = vmatpush1.bf16.msra.mxu0 %v2086
        %2103 = vmatprep.subr.bf16.mxu0 0
        %2104 = vmatpush1.bf16.msra.mxu0 %v2085
        %2105 = vmatprep.subr.bf16.mxu0 0
        %2106 = vmatpush1.bf16.msra.mxu0 %v2084
        %2107 = vmatprep.subr.bf16.mxu0 0
        %2108 = vmatpush1.bf16.msra.mxu0 %v2083
        %2109 = vmatprep.subr.bf16.mxu0 0
        %2110 = vmatpush1.bf16.msra.mxu0 %v2082
        %2111 = vmatprep.subr.bf16.mxu0 0
        %2112 = vmatpush1.bf16.msra.mxu0 %v2081
        %2113 = vmatprep.subr.bf16.mxu0 0
        %2114 = vmatpush2.bf16.msra.mxu0 0
        %2115 = vmatprep.subr.bf16.mxu0 0
        %2116 = vmatpush2.bf16.msra.mxu0 0
        %2117 = vmatprep.subr.bf16.mxu0 0
        %2118 = vmatpush2.bf16.msra.mxu0 0
        %2119 = vmatprep.subr.bf16.mxu0 0
        %2120 = vmatpush2.bf16.msra.mxu0 0
        %2121 = vmatprep.subr.bf16.mxu0 0
        %2122 = vmatpush2.bf16.msra.mxu0 0
        %2123 = vmatprep.subr.bf16.mxu0 0
        %2124 = vmatpush2.bf16.msra.mxu0 0
        %2125 = vmatprep.subr.bf16.mxu0 0
        %2126 = vmatpush2.bf16.msra.mxu0 0
        %2127 = vmatprep.subr.bf16.mxu0 0
        %2128 = vmatpush2.bf16.msra.mxu0 0
        %2129 = vmatprep.mubr.bf16.mxu0 0
        %2130 = vmatmul.mubr.bf16.gmra.mxu0 %v2041
        %v2131 = vpop.f32.mrf.mxu0
        %v2132 = vadd.f32 0.0, %v2131
        %v2133 = vpop.f32.mrf.mxu0
        %v2134 = vpop.f32.mrf.mxu0
        %v2135 = vadd.f32 0.0, %v2134
        %v2136 = vpop.f32.mrf.mxu0
        %2137 = vmatprep.mubr.bf16.mxu0 0
        %2138 = vmatmul.mubr.bf16.gmra.mxu0 %v2042
        %v2139 = vpop.f32.mrf.mxu0
        %v2140 = vadd.f32 0.0, %v2139
        %v2141 = vpop.f32.mrf.mxu0
        %v2142 = vpop.f32.mrf.mxu0
        %v2143 = vadd.f32 0.0, %v2142
        %v2144 = vpop.f32.mrf.mxu0
        %2145 = vmatprep.mubr.bf16.mxu0 0
        %2146 = vmatmul.mubr.bf16.gmra.mxu0 %v2043
        %v2147 = vpop.f32.mrf.mxu0
        %v2148 = vadd.f32 0.0, %v2147
        %v2149 = vpop.f32.mrf.mxu0
        %v2150 = vpop.f32.mrf.mxu0
        %v2151 = vadd.f32 0.0, %v2150
        %v2152 = vpop.f32.mrf.mxu0
        %2153 = vmatprep.mubr.bf16.mxu0 0
        %2154 = vmatmul.mubr.bf16.gmra.mxu0 %v2044
        %v2155 = vpop.f32.mrf.mxu0
        %v2156 = vadd.f32 0.0, %v2155
        %v2157 = vpop.f32.mrf.mxu0
        %v2158 = vpop.f32.mrf.mxu0
        %v2159 = vadd.f32 0.0, %v2158
        %v2160 = vpop.f32.mrf.mxu0
        %2161 = vmatprep.mubr.bf16.mxu0 0
        %2162 = vmatmul.mubr.bf16.gmra.mxu0 %v2045
        %v2163 = vpop.f32.mrf.mxu0
        %v2164 = vadd.f32 0.0, %v2163
        %v2165 = vpop.f32.mrf.mxu0
        %v2166 = vpop.f32.mrf.mxu0
        %v2167 = vadd.f32 0.0, %v2166
        %v2168 = vpop.f32.mrf.mxu0
        %2169 = vmatprep.mubr.bf16.mxu0 0
        %2170 = vmatmul.mubr.bf16.gmra.mxu0 %v2046
        %v2171 = vpop.f32.mrf.mxu0
        %v2172 = vadd.f32 0.0, %v2171
        %v2173 = vpop.f32.mrf.mxu0
        %v2174 = vpop.f32.mrf.mxu0
        %v2175 = vadd.f32 0.0, %v2174
        %v2176 = vpop.f32.mrf.mxu0
        %2177 = vmatprep.mubr.bf16.mxu0 0
        %2178 = vmatmul.mubr.bf16.gmra.mxu0 %v2047
        %v2179 = vpop.f32.mrf.mxu0
        %v2180 = vadd.f32 0.0, %v2179
        %v2181 = vpop.f32.mrf.mxu0
        %v2182 = vpop.f32.mrf.mxu0
        %v2183 = vadd.f32 0.0, %v2182
        %v2184 = vpop.f32.mrf.mxu0
        %2185 = vmatprep.mubr.bf16.mxu0 0
        %2186 = vmatmul.mubr.bf16.gmra.mxu0 %v2048
        %v2187 = vpop.f32.mrf.mxu0
        %v2188 = vadd.f32 0.0, %v2187
        %v2189 = vpop.f32.mrf.mxu0
        %v2190 = vpop.f32.mrf.mxu0
        %v2191 = vadd.f32 0.0, %v2190
        %v2192 = vpop.f32.mrf.mxu0
        %2193 = vdwg.mxu0
        %v2194 = vpack.c.bf16 %v2135, %v2132
        %v2195 = vpack.c.bf16 %v2143, %v2140
        %v2196 = vpack.c.bf16 %v2151, %v2148
        %v2197 = vpack.c.bf16 %v2159, %v2156
        %v2198 = vpack.c.bf16 %v2167, %v2164
        %v2199 = vpack.c.bf16 %v2175, %v2172
        %v2200 = vpack.c.bf16 %v2183, %v2180
        %v2201 = vpack.c.bf16 %v2191, %v2188
        %v2202 = vld [vmem:[#allocation15] sm:$0xf]
        %v2203 = vld [vmem:[#allocation15 + $0x4] sm:$0xf]
        %v2204 = vld [vmem:[#allocation15 + $0x8] sm:$0xf]
        %v2205 = vld [vmem:[#allocation15 + $0xc] sm:$0xf]
        %v2206 = vld [vmem:[#allocation15 + $0x10] sm:$0xf]
        %v2207 = vld [vmem:[#allocation15 + $0x14] sm:$0xf]
        %v2208 = vld [vmem:[#allocation15 + $0x18] sm:$0xf]
        %v2209 = vld [vmem:[#allocation15 + $0x1c] sm:$0xf]
        %v2210 = vld [vmem:[#allocation15 + $0x20] sm:$0xf]
        %v2211 = vld [vmem:[#allocation15 + $0x24] sm:$0xf]
        %v2212 = vld [vmem:[#allocation15 + $0x28] sm:$0xf]
        %v2213 = vld [vmem:[#allocation15 + $0x2c] sm:$0xf]
        %v2214 = vld [vmem:[#allocation15 + $0x30] sm:$0xf]
        %v2215 = vld [vmem:[#allocation15 + $0x34] sm:$0xf]
        %v2216 = vld [vmem:[#allocation15 + $0x38] sm:$0xf]
        %v2217 = vld [vmem:[#allocation15 + $0x3c] sm:$0xf]
        %s2218 = scalar_lea.vmem [#allocation10], 64
        %v2219 = vld [vmem:[%s2218] sm:$0xf]
        %v2220 = vld [vmem:[%s2218 + $0x4] sm:$0xf]
        %v2221 = vld [vmem:[%s2218 + $0x8] sm:$0xf]
        %v2222 = vld [vmem:[%s2218 + $0xc] sm:$0xf]
        %v2223 = vld [vmem:[%s2218 + $0x10] sm:$0xf]
        %v2224 = vld [vmem:[%s2218 + $0x14] sm:$0xf]
        %v2225 = vld [vmem:[%s2218 + $0x18] sm:$0xf]
        %v2226 = vld [vmem:[%s2218 + $0x1c] sm:$0xf]
        %v2227 = vld [vmem:[%s2218 + $0x20] sm:$0xf]
        %v2228 = vld [vmem:[%s2218 + $0x24] sm:$0xf]
        %v2229 = vld [vmem:[%s2218 + $0x28] sm:$0xf]
        %v2230 = vld [vmem:[%s2218 + $0x2c] sm:$0xf]
        %v2231 = vld [vmem:[%s2218 + $0x30] sm:$0xf]
        %v2232 = vld [vmem:[%s2218 + $0x34] sm:$0xf]
        %v2233 = vld [vmem:[%s2218 + $0x38] sm:$0xf]
        %v2234 = vld [vmem:[%s2218 + $0x3c] sm:$0xf]
        %v2251 = vunpack.c.l.b16 %v2219
        %v2252 = vunpack.c.l.b16 %v2220
        %v2253 = vunpack.c.l.b16 %v2221
        %v2254 = vunpack.c.l.b16 %v2222
        %v2255 = vunpack.c.l.b16 %v2223
        %v2256 = vunpack.c.l.b16 %v2224
        %v2257 = vunpack.c.l.b16 %v2225
        %v2258 = vunpack.c.l.b16 %v2226
        %v2259 = vunpack.c.l.b16 %v2227
        %v2260 = vunpack.c.l.b16 %v2228
        %v2261 = vunpack.c.l.b16 %v2229
        %v2262 = vunpack.c.l.b16 %v2230
        %v2263 = vunpack.c.l.b16 %v2231
        %v2264 = vunpack.c.l.b16 %v2232
        %v2265 = vunpack.c.l.b16 %v2233
        %v2266 = vunpack.c.l.b16 %v2234
        %v2267 = vpack.c.b16 %v2252, %v2251
        %v2268 = vpack.c.b16 %v2254, %v2253
        %v2269 = vpack.c.b16 %v2256, %v2255
        %v2270 = vpack.c.b16 %v2258, %v2257
        %v2271 = vpack.c.b16 %v2260, %v2259
        %v2272 = vpack.c.b16 %v2262, %v2261
        %v2273 = vpack.c.b16 %v2264, %v2263
        %v2274 = vpack.c.b16 %v2266, %v2265
        %2283 = vmatprep.subr.bf16.mxu0 0
        %2284 = vmatpush1.bf16.msra.mxu0 %v2274
        %2285 = vmatprep.subr.bf16.mxu0 0
        %2286 = vmatpush1.bf16.msra.mxu0 %v2273
        %2287 = vmatprep.subr.bf16.mxu0 0
        %2288 = vmatpush1.bf16.msra.mxu0 %v2272
        %2289 = vmatprep.subr.bf16.mxu0 0
        %2290 = vmatpush1.bf16.msra.mxu0 %v2271
        %2291 = vmatprep.subr.bf16.mxu0 0
        %2292 = vmatpush1.bf16.msra.mxu0 %v2270
        %2293 = vmatprep.subr.bf16.mxu0 0
        %2294 = vmatpush1.bf16.msra.mxu0 %v2269
        %2295 = vmatprep.subr.bf16.mxu0 0
        %2296 = vmatpush1.bf16.msra.mxu0 %v2268
        %2297 = vmatprep.subr.bf16.mxu0 0
        %2298 = vmatpush1.bf16.msra.mxu0 %v2267
        %2299 = vmatprep.subr.bf16.mxu0 0
        %2300 = vmatpush2.bf16.msra.mxu0 0
        %2301 = vmatprep.subr.bf16.mxu0 0
        %2302 = vmatpush2.bf16.msra.mxu0 0
        %2303 = vmatprep.subr.bf16.mxu0 0
        %2304 = vmatpush2.bf16.msra.mxu0 0
        %2305 = vmatprep.subr.bf16.mxu0 0
        %2306 = vmatpush2.bf16.msra.mxu0 0
        %2307 = vmatprep.subr.bf16.mxu0 0
        %2308 = vmatpush2.bf16.msra.mxu0 0
        %2309 = vmatprep.subr.bf16.mxu0 0
        %2310 = vmatpush2.bf16.msra.mxu0 0
        %2311 = vmatprep.subr.bf16.mxu0 0
        %2312 = vmatpush2.bf16.msra.mxu0 0
        %2313 = vmatprep.subr.bf16.mxu0 0
        %2314 = vmatpush2.bf16.msra.mxu0 0
        %2315 = vmatprep.mubr.bf16.mxu0 0
        %2316 = vmatmul.mubr.bf16.gmra.mxu0 %v1543
        %v2317 = vpop.f32.mrf.mxu0
        %v2318 = vadd.f32 0.0, %v2317
        %v2319 = vpop.f32.mrf.mxu0
        %v2320 = vpop.f32.mrf.mxu0
        %v2321 = vadd.f32 0.0, %v2320
        %v2322 = vpop.f32.mrf.mxu0
        %2323 = vmatprep.mubr.bf16.mxu0 0
        %2324 = vmatmul.mubr.bf16.gmra.mxu0 %v1544
        %v2325 = vpop.f32.mrf.mxu0
        %v2326 = vadd.f32 0.0, %v2325
        %v2327 = vpop.f32.mrf.mxu0
        %v2328 = vpop.f32.mrf.mxu0
        %v2329 = vadd.f32 0.0, %v2328
        %v2330 = vpop.f32.mrf.mxu0
        %2331 = vmatprep.mubr.bf16.mxu0 0
        %2332 = vmatmul.mubr.bf16.gmra.mxu0 %v1545
        %v2333 = vpop.f32.mrf.mxu0
        %v2334 = vadd.f32 0.0, %v2333
        %v2335 = vpop.f32.mrf.mxu0
        %v2336 = vpop.f32.mrf.mxu0
        %v2337 = vadd.f32 0.0, %v2336
        %v2338 = vpop.f32.mrf.mxu0
        %2339 = vmatprep.mubr.bf16.mxu0 0
        %2340 = vmatmul.mubr.bf16.gmra.mxu0 %v1546
        %v2341 = vpop.f32.mrf.mxu0
        %v2342 = vadd.f32 0.0, %v2341
        %v2343 = vpop.f32.mrf.mxu0
        %v2344 = vpop.f32.mrf.mxu0
        %v2345 = vadd.f32 0.0, %v2344
        %v2346 = vpop.f32.mrf.mxu0
        %2347 = vmatprep.mubr.bf16.mxu0 0
        %2348 = vmatmul.mubr.bf16.gmra.mxu0 %v1547
        %v2349 = vpop.f32.mrf.mxu0
        %v2350 = vadd.f32 0.0, %v2349
        %v2351 = vpop.f32.mrf.mxu0
        %v2352 = vpop.f32.mrf.mxu0
        %v2353 = vadd.f32 0.0, %v2352
        %v2354 = vpop.f32.mrf.mxu0
        %2355 = vmatprep.mubr.bf16.mxu0 0
        %2356 = vmatmul.mubr.bf16.gmra.mxu0 %v1548
        %v2357 = vpop.f32.mrf.mxu0
        %v2358 = vadd.f32 0.0, %v2357
        %v2359 = vpop.f32.mrf.mxu0
        %v2360 = vpop.f32.mrf.mxu0
        %v2361 = vadd.f32 0.0, %v2360
        %v2362 = vpop.f32.mrf.mxu0
        %2363 = vmatprep.mubr.bf16.mxu0 0
        %2364 = vmatmul.mubr.bf16.gmra.mxu0 %v1549
        %v2365 = vpop.f32.mrf.mxu0
        %v2366 = vadd.f32 0.0, %v2365
        %v2367 = vpop.f32.mrf.mxu0
        %v2368 = vpop.f32.mrf.mxu0
        %v2369 = vadd.f32 0.0, %v2368
        %v2370 = vpop.f32.mrf.mxu0
        %2371 = vmatprep.mubr.bf16.mxu0 0
        %2372 = vmatmul.mubr.bf16.gmra.mxu0 %v1550
        %v2373 = vpop.f32.mrf.mxu0
        %v2374 = vadd.f32 0.0, %v2373
        %v2375 = vpop.f32.mrf.mxu0
        %v2376 = vpop.f32.mrf.mxu0
        %v2377 = vadd.f32 0.0, %v2376
        %v2378 = vpop.f32.mrf.mxu0
        %2379 = vdwg.mxu0
        %v2380 = vpack.c.bf16 %v2321, %v2318
        %v2381 = vpack.c.bf16 %v2329, %v2326
        %v2382 = vpack.c.bf16 %v2337, %v2334
        %v2383 = vpack.c.bf16 %v2345, %v2342
        %v2384 = vpack.c.bf16 %v2353, %v2350
        %v2385 = vpack.c.bf16 %v2361, %v2358
        %v2386 = vpack.c.bf16 %v2369, %v2366
        %v2387 = vpack.c.bf16 %v2377, %v2374
        %s2388 = scalar_lea.vmem [#allocation2], 64
        %v2389 = vld [vmem:[%s2388] sm:$0xf]
        %v2390 = vld [vmem:[%s2388 + $0x4] sm:$0xf]
        %v2391 = vld [vmem:[%s2388 + $0x8] sm:$0xf]
        %v2392 = vld [vmem:[%s2388 + $0xc] sm:$0xf]
        %v2393 = vld [vmem:[%s2388 + $0x10] sm:$0xf]
        %v2394 = vld [vmem:[%s2388 + $0x14] sm:$0xf]
        %v2395 = vld [vmem:[%s2388 + $0x18] sm:$0xf]
        %v2396 = vld [vmem:[%s2388 + $0x1c] sm:$0xf]
        %v2397 = vld [vmem:[%s2388 + $0x20] sm:$0xf]
        %v2398 = vld [vmem:[%s2388 + $0x24] sm:$0xf]
        %v2399 = vld [vmem:[%s2388 + $0x28] sm:$0xf]
        %v2400 = vld [vmem:[%s2388 + $0x2c] sm:$0xf]
        %v2401 = vld [vmem:[%s2388 + $0x30] sm:$0xf]
        %v2402 = vld [vmem:[%s2388 + $0x34] sm:$0xf]
        %v2403 = vld [vmem:[%s2388 + $0x38] sm:$0xf]
        %v2404 = vld [vmem:[%s2388 + $0x3c] sm:$0xf]
        %s2405 = scalar_lea.vmem [#allocation3], 64
        %v2406 = vld [vmem:[%s2405] sm:$0xf]
        %v2407 = vld [vmem:[%s2405 + $0x4] sm:$0xf]
        %v2408 = vld [vmem:[%s2405 + $0x8] sm:$0xf]
        %v2409 = vld [vmem:[%s2405 + $0xc] sm:$0xf]
        %v2410 = vld [vmem:[%s2405 + $0x10] sm:$0xf]
        %v2411 = vld [vmem:[%s2405 + $0x14] sm:$0xf]
        %v2412 = vld [vmem:[%s2405 + $0x18] sm:$0xf]
        %v2413 = vld [vmem:[%s2405 + $0x1c] sm:$0xf]
        %v2414 = vld [vmem:[%s2405 + $0x20] sm:$0xf]
        %v2415 = vld [vmem:[%s2405 + $0x24] sm:$0xf]
        %v2416 = vld [vmem:[%s2405 + $0x28] sm:$0xf]
        %v2417 = vld [vmem:[%s2405 + $0x2c] sm:$0xf]
        %v2418 = vld [vmem:[%s2405 + $0x30] sm:$0xf]
        %v2419 = vld [vmem:[%s2405 + $0x34] sm:$0xf]
        %v2420 = vld [vmem:[%s2405 + $0x38] sm:$0xf]
        %v2421 = vld [vmem:[%s2405 + $0x3c] sm:$0xf]
        %v2438 = vunpack.c.l.b16 %v2389
        %v2439 = vunpack.c.l.b16 %v2390
        %v2440 = vunpack.c.l.b16 %v2391
        %v2441 = vunpack.c.l.b16 %v2392
        %v2442 = vunpack.c.l.b16 %v2393
        %v2443 = vunpack.c.l.b16 %v2394
        %v2444 = vunpack.c.l.b16 %v2395
        %v2445 = vunpack.c.l.b16 %v2396
        %v2446 = vunpack.c.l.b16 %v2397
        %v2447 = vunpack.c.l.b16 %v2398
        %v2448 = vunpack.c.l.b16 %v2399
        %v2449 = vunpack.c.l.b16 %v2400
        %v2450 = vunpack.c.l.b16 %v2401
        %v2451 = vunpack.c.l.b16 %v2402
        %v2452 = vunpack.c.l.b16 %v2403
        %v2453 = vunpack.c.l.b16 %v2404
        %v2454 = vpack.c.b16 %v2439, %v2438
        %v2455 = vpack.c.b16 %v2441, %v2440
        %v2456 = vpack.c.b16 %v2443, %v2442
        %v2457 = vpack.c.b16 %v2445, %v2444
        %v2458 = vpack.c.b16 %v2447, %v2446
        %v2459 = vpack.c.b16 %v2449, %v2448
        %v2460 = vpack.c.b16 %v2451, %v2450
        %v2461 = vpack.c.b16 %v2453, %v2452
        %2470 = vmatprep.subr.bf16.mxu0 0
        %2471 = vmatpush1.bf16.xpose.msra.mxu0 %v2461
        %2472 = vmatprep.subr.bf16.mxu0 0
        %2473 = vmatpush1.bf16.xpose.msra.mxu0 %v2460
        %2474 = vmatprep.subr.bf16.mxu0 0
        %2475 = vmatpush1.bf16.xpose.msra.mxu0 %v2459
        %2476 = vmatprep.subr.bf16.mxu0 0
        %2477 = vmatpush1.bf16.xpose.msra.mxu0 %v2458
        %2478 = vmatprep.subr.bf16.mxu0 0
        %2479 = vmatpush1.bf16.xpose.msra.mxu0 %v2457
        %2480 = vmatprep.subr.bf16.mxu0 0
        %2481 = vmatpush1.bf16.xpose.msra.mxu0 %v2456
        %2482 = vmatprep.subr.bf16.mxu0 0
        %2483 = vmatpush1.bf16.xpose.msra.mxu0 %v2455
        %2484 = vmatprep.subr.bf16.mxu0 0
        %2485 = vmatpush1.bf16.xpose.msra.mxu0 %v2454
        %2486 = vmatprep.subr.bf16.mxu0 0
        %2487 = vmatpush2.bf16.xpose.msra.mxu0 0
        %2488 = vmatprep.subr.bf16.mxu0 0
        %2489 = vmatpush2.bf16.xpose.msra.mxu0 0
        %2490 = vmatprep.subr.bf16.mxu0 0
        %2491 = vmatpush2.bf16.xpose.msra.mxu0 0
        %2492 = vmatprep.subr.bf16.mxu0 0
        %2493 = vmatpush2.bf16.xpose.msra.mxu0 0
        %2494 = vmatprep.subr.bf16.mxu0 0
        %2495 = vmatpush2.bf16.xpose.msra.mxu0 0
        %2496 = vmatprep.subr.bf16.mxu0 0
        %2497 = vmatpush2.bf16.xpose.msra.mxu0 0
        %2498 = vmatprep.subr.bf16.mxu0 0
        %2499 = vmatpush2.bf16.xpose.msra.mxu0 0
        %2500 = vmatprep.subr.bf16.mxu0 0
        %2501 = vmatpush2.bf16.xpose.msra.mxu0 0
        %2502 = vmatprep.mubr.bf16.mxu0 0
        %2503 = vmatmul.mubr.bf16.gmra.mxu0 %v2380
        %v2504 = vpop.f32.mrf.mxu0
        %v2505 = vadd.f32 0.0, %v2504
        %v2506 = vpop.f32.mrf.mxu0
        %v2507 = vpop.f32.mrf.mxu0
        %v2508 = vadd.f32 0.0, %v2507
        %v2509 = vpop.f32.mrf.mxu0
        %2510 = vmatprep.mubr.bf16.mxu0 0
        %2511 = vmatmul.mubr.bf16.gmra.mxu0 %v2381
        %v2512 = vpop.f32.mrf.mxu0
        %v2513 = vadd.f32 0.0, %v2512
        %v2514 = vpop.f32.mrf.mxu0
        %v2515 = vpop.f32.mrf.mxu0
        %v2516 = vadd.f32 0.0, %v2515
        %v2517 = vpop.f32.mrf.mxu0
        %2518 = vmatprep.mubr.bf16.mxu0 0
        %2519 = vmatmul.mubr.bf16.gmra.mxu0 %v2382
        %v2520 = vpop.f32.mrf.mxu0
        %v2521 = vadd.f32 0.0, %v2520
        %v2522 = vpop.f32.mrf.mxu0
        %v2523 = vpop.f32.mrf.mxu0
        %v2524 = vadd.f32 0.0, %v2523
        %v2525 = vpop.f32.mrf.mxu0
        %2526 = vmatprep.mubr.bf16.mxu0 0
        %2527 = vmatmul.mubr.bf16.gmra.mxu0 %v2383
        %v2528 = vpop.f32.mrf.mxu0
        %v2529 = vadd.f32 0.0, %v2528
        %v2530 = vpop.f32.mrf.mxu0
        %v2531 = vpop.f32.mrf.mxu0
        %v2532 = vadd.f32 0.0, %v2531
        %v2533 = vpop.f32.mrf.mxu0
        %2534 = vmatprep.mubr.bf16.mxu0 0
        %2535 = vmatmul.mubr.bf16.gmra.mxu0 %v2384
        %v2536 = vpop.f32.mrf.mxu0
        %v2537 = vadd.f32 0.0, %v2536
        %v2538 = vpop.f32.mrf.mxu0
        %v2539 = vpop.f32.mrf.mxu0
        %v2540 = vadd.f32 0.0, %v2539
        %v2541 = vpop.f32.mrf.mxu0
        %2542 = vmatprep.mubr.bf16.mxu0 0
        %2543 = vmatmul.mubr.bf16.gmra.mxu0 %v2385
        %v2544 = vpop.f32.mrf.mxu0
        %v2545 = vadd.f32 0.0, %v2544
        %v2546 = vpop.f32.mrf.mxu0
        %v2547 = vpop.f32.mrf.mxu0
        %v2548 = vadd.f32 0.0, %v2547
        %v2549 = vpop.f32.mrf.mxu0
        %2550 = vmatprep.mubr.bf16.mxu0 0
        %2551 = vmatmul.mubr.bf16.gmra.mxu0 %v2386
        %v2552 = vpop.f32.mrf.mxu0
        %v2553 = vadd.f32 0.0, %v2552
        %v2554 = vpop.f32.mrf.mxu0
        %v2555 = vpop.f32.mrf.mxu0
        %v2556 = vadd.f32 0.0, %v2555
        %v2557 = vpop.f32.mrf.mxu0
        %2558 = vmatprep.mubr.bf16.mxu0 0
        %2559 = vmatmul.mubr.bf16.gmra.mxu0 %v2387
        %v2560 = vpop.f32.mrf.mxu0
        %v2561 = vadd.f32 0.0, %v2560
        %v2562 = vpop.f32.mrf.mxu0
        %v2563 = vpop.f32.mrf.mxu0
        %v2564 = vadd.f32 0.0, %v2563
        %v2565 = vpop.f32.mrf.mxu0
        %2566 = vdwg.mxu0
        %2567 = vmax.xlane.f32.xlu0 %v2505
        %v2568 = vpop.xlane.xlu0 %2567
        %2569 = vmax.xlane.f32.xlu0 %v2508
        %v2570 = vpop.xlane.xlu0 %2569
        %2571 = vmax.xlane.f32.xlu0 %v2513
        %v2572 = vpop.xlane.xlu0 %2571
        %2573 = vmax.xlane.f32.xlu0 %v2516
        %v2574 = vpop.xlane.xlu0 %2573
        %2575 = vmax.xlane.f32.xlu0 %v2521
        %v2576 = vpop.xlane.xlu0 %2575
        %2577 = vmax.xlane.f32.xlu0 %v2524
        %v2578 = vpop.xlane.xlu0 %2577
        %2579 = vmax.xlane.f32.xlu0 %v2529
        %v2580 = vpop.xlane.xlu0 %2579
        %2581 = vmax.xlane.f32.xlu0 %v2532
        %v2582 = vpop.xlane.xlu0 %2581
        %2583 = vmax.xlane.f32.xlu0 %v2537
        %v2584 = vpop.xlane.xlu0 %2583
        %2585 = vmax.xlane.f32.xlu0 %v2540
        %v2586 = vpop.xlane.xlu0 %2585
        %2587 = vmax.xlane.f32.xlu0 %v2545
        %v2588 = vpop.xlane.xlu0 %2587
        %2589 = vmax.xlane.f32.xlu0 %v2548
        %v2590 = vpop.xlane.xlu0 %2589
        %2591 = vmax.xlane.f32.xlu0 %v2553
        %v2592 = vpop.xlane.xlu0 %2591
        %2593 = vmax.xlane.f32.xlu0 %v2556
        %v2594 = vpop.xlane.xlu0 %2593
        %2595 = vmax.xlane.f32.xlu0 %v2561
        %v2596 = vpop.xlane.xlu0 %2595
        %2597 = vmax.xlane.f32.xlu0 %v2564
        %v2598 = vpop.xlane.xlu0 %2597
        %v2599 = vsub.f32 %v2505, %v2568
        %v2600 = vsub.f32 %v2508, %v2570
        %v2601 = vsub.f32 %v2513, %v2572
        %v2602 = vsub.f32 %v2516, %v2574
        %v2603 = vsub.f32 %v2521, %v2576
        %v2604 = vsub.f32 %v2524, %v2578
        %v2605 = vsub.f32 %v2529, %v2580
        %v2606 = vsub.f32 %v2532, %v2582
        %v2607 = vsub.f32 %v2537, %v2584
        %v2608 = vsub.f32 %v2540, %v2586
        %v2609 = vsub.f32 %v2545, %v2588
        %v2610 = vsub.f32 %v2548, %v2590
        %v2611 = vsub.f32 %v2553, %v2592
        %v2612 = vsub.f32 %v2556, %v2594
        %v2613 = vsub.f32 %v2561, %v2596
        %v2614 = vsub.f32 %v2564, %v2598
        %v2615 = vmul.f32 %v2599, 1.442695
        %v2616 = vpow.pop %v2615
        %v2617 = vmul.f32 %v2600, 1.442695
        %v2618 = vpow.pop %v2617
        %v2619 = vmul.f32 %v2601, 1.442695
        %v2620 = vpow.pop %v2619
        %v2621 = vmul.f32 %v2602, 1.442695
        %v2622 = vpow.pop %v2621
        %v2623 = vmul.f32 %v2603, 1.442695
        %v2624 = vpow.pop %v2623
        %v2625 = vmul.f32 %v2604, 1.442695
        %v2626 = vpow.pop %v2625
        %v2627 = vmul.f32 %v2605, 1.442695
        %v2628 = vpow.pop %v2627
        %v2629 = vmul.f32 %v2606, 1.442695
        %v2630 = vpow.pop %v2629
        %v2631 = vmul.f32 %v2607, 1.442695
        %v2632 = vpow.pop %v2631
        %v2633 = vmul.f32 %v2608, 1.442695
        %v2634 = vpow.pop %v2633
        %v2635 = vmul.f32 %v2609, 1.442695
        %v2636 = vpow.pop %v2635
        %v2637 = vmul.f32 %v2610, 1.442695
        %v2638 = vpow.pop %v2637
        %v2639 = vmul.f32 %v2611, 1.442695
        %v2640 = vpow.pop %v2639
        %v2641 = vmul.f32 %v2612, 1.442695
        %v2642 = vpow.pop %v2641
        %v2643 = vmul.f32 %v2613, 1.442695
        %v2644 = vpow.pop %v2643
        %v2645 = vmul.f32 %v2614, 1.442695
        %v2646 = vpow.pop %v2645
        %2647 = vadd.xlane.f32.xlu0 %v2616
        %v2648 = vpop.xlane.xlu0 %2647
        %2649 = vadd.xlane.f32.xlu0 %v2618
        %v2650 = vpop.xlane.xlu0 %2649
        %2651 = vadd.xlane.f32.xlu0 %v2620
        %v2652 = vpop.xlane.xlu0 %2651
        %2653 = vadd.xlane.f32.xlu0 %v2622
        %v2654 = vpop.xlane.xlu0 %2653
        %2655 = vadd.xlane.f32.xlu0 %v2624
        %v2656 = vpop.xlane.xlu0 %2655
        %2657 = vadd.xlane.f32.xlu0 %v2626
        %v2658 = vpop.xlane.xlu0 %2657
        %2659 = vadd.xlane.f32.xlu0 %v2628
        %v2660 = vpop.xlane.xlu0 %2659
        %2661 = vadd.xlane.f32.xlu0 %v2630
        %v2662 = vpop.xlane.xlu0 %2661
        %2663 = vadd.xlane.f32.xlu0 %v2632
        %v2664 = vpop.xlane.xlu0 %2663
        %2665 = vadd.xlane.f32.xlu0 %v2634
        %v2666 = vpop.xlane.xlu0 %2665
        %2667 = vadd.xlane.f32.xlu0 %v2636
        %v2668 = vpop.xlane.xlu0 %2667
        %2669 = vadd.xlane.f32.xlu0 %v2638
        %v2670 = vpop.xlane.xlu0 %2669
        %2671 = vadd.xlane.f32.xlu0 %v2640
        %v2672 = vpop.xlane.xlu0 %2671
        %2673 = vadd.xlane.f32.xlu0 %v2642
        %v2674 = vpop.xlane.xlu0 %2673
        %2675 = vadd.xlane.f32.xlu0 %v2644
        %v2676 = vpop.xlane.xlu0 %2675
        %2677 = vadd.xlane.f32.xlu0 %v2646
        %v2678 = vpop.xlane.xlu0 %2677
        %v2679 = vrcp.pop %v2648
        %v2680 = vrcp.pop %v2650
        %v2681 = vrcp.pop %v2652
        %v2682 = vrcp.pop %v2654
        %v2683 = vrcp.pop %v2656
        %v2684 = vrcp.pop %v2658
        %v2685 = vrcp.pop %v2660
        %v2686 = vrcp.pop %v2662
        %v2687 = vrcp.pop %v2664
        %v2688 = vrcp.pop %v2666
        %v2689 = vrcp.pop %v2668
        %v2690 = vrcp.pop %v2670
        %v2691 = vrcp.pop %v2672
        %v2692 = vrcp.pop %v2674
        %v2693 = vrcp.pop %v2676
        %v2694 = vrcp.pop %v2678
        %v2695 = vmul.f32 %v2616, %v2679
        %v2696 = vmul.f32 %v2618, %v2680
        %v2697 = vmul.f32 %v2620, %v2681
        %v2698 = vmul.f32 %v2622, %v2682
        %v2699 = vmul.f32 %v2624, %v2683
        %v2700 = vmul.f32 %v2626, %v2684
        %v2701 = vmul.f32 %v2628, %v2685
        %v2702 = vmul.f32 %v2630, %v2686
        %v2703 = vmul.f32 %v2632, %v2687
        %v2704 = vmul.f32 %v2634, %v2688
        %v2705 = vmul.f32 %v2636, %v2689
        %v2706 = vmul.f32 %v2638, %v2690
        %v2707 = vmul.f32 %v2640, %v2691
        %v2708 = vmul.f32 %v2642, %v2692
        %v2709 = vmul.f32 %v2644, %v2693
        %v2710 = vmul.f32 %v2646, %v2694
        %v2711 = vpack.c.bf16 %v2696, %v2695
        %v2712 = vpack.c.bf16 %v2698, %v2697
        %v2713 = vpack.c.bf16 %v2700, %v2699
        %v2714 = vpack.c.bf16 %v2702, %v2701
        %v2715 = vpack.c.bf16 %v2704, %v2703
        %v2716 = vpack.c.bf16 %v2706, %v2705
        %v2717 = vpack.c.bf16 %v2708, %v2707
        %v2718 = vpack.c.bf16 %v2710, %v2709
        %v2735 = vunpack.c.l.b16 %v2406
        %v2736 = vunpack.c.l.b16 %v2407
        %v2737 = vunpack.c.l.b16 %v2408
        %v2738 = vunpack.c.l.b16 %v2409
        %v2739 = vunpack.c.l.b16 %v2410
        %v2740 = vunpack.c.l.b16 %v2411
        %v2741 = vunpack.c.l.b16 %v2412
        %v2742 = vunpack.c.l.b16 %v2413
        %v2743 = vunpack.c.l.b16 %v2414
        %v2744 = vunpack.c.l.b16 %v2415
        %v2745 = vunpack.c.l.b16 %v2416
        %v2746 = vunpack.c.l.b16 %v2417
        %v2747 = vunpack.c.l.b16 %v2418
        %v2748 = vunpack.c.l.b16 %v2419
        %v2749 = vunpack.c.l.b16 %v2420
        %v2750 = vunpack.c.l.b16 %v2421
        %v2751 = vpack.c.b16 %v2736, %v2735
        %v2752 = vpack.c.b16 %v2738, %v2737
        %v2753 = vpack.c.b16 %v2740, %v2739
        %v2754 = vpack.c.b16 %v2742, %v2741
        %v2755 = vpack.c.b16 %v2744, %v2743
        %v2756 = vpack.c.b16 %v2746, %v2745
        %v2757 = vpack.c.b16 %v2748, %v2747
        %v2758 = vpack.c.b16 %v2750, %v2749
        %2767 = vmatprep.subr.bf16.mxu0 0
        %2768 = vmatpush1.bf16.msra.mxu0 %v2758
        %2769 = vmatprep.subr.bf16.mxu0 0
        %2770 = vmatpush1.bf16.msra.mxu0 %v2757
        %2771 = vmatprep.subr.bf16.mxu0 0
        %2772 = vmatpush1.bf16.msra.mxu0 %v2756
        %2773 = vmatprep.subr.bf16.mxu0 0
        %2774 = vmatpush1.bf16.msra.mxu0 %v2755
        %2775 = vmatprep.subr.bf16.mxu0 0
        %2776 = vmatpush1.bf16.msra.mxu0 %v2754
        %2777 = vmatprep.subr.bf16.mxu0 0
        %2778 = vmatpush1.bf16.msra.mxu0 %v2753
        %2779 = vmatprep.subr.bf16.mxu0 0
        %2780 = vmatpush1.bf16.msra.mxu0 %v2752
        %2781 = vmatprep.subr.bf16.mxu0 0
        %2782 = vmatpush1.bf16.msra.mxu0 %v2751
        %2783 = vmatprep.subr.bf16.mxu0 0
        %2784 = vmatpush2.bf16.msra.mxu0 0
        %2785 = vmatprep.subr.bf16.mxu0 0
        %2786 = vmatpush2.bf16.msra.mxu0 0
        %2787 = vmatprep.subr.bf16.mxu0 0
        %2788 = vmatpush2.bf16.msra.mxu0 0
        %2789 = vmatprep.subr.bf16.mxu0 0
        %2790 = vmatpush2.bf16.msra.mxu0 0
        %2791 = vmatprep.subr.bf16.mxu0 0
        %2792 = vmatpush2.bf16.msra.mxu0 0
        %2793 = vmatprep.subr.bf16.mxu0 0
        %2794 = vmatpush2.bf16.msra.mxu0 0
        %2795 = vmatprep.subr.bf16.mxu0 0
        %2796 = vmatpush2.bf16.msra.mxu0 0
        %2797 = vmatprep.subr.bf16.mxu0 0
        %2798 = vmatpush2.bf16.msra.mxu0 0
        %2799 = vmatprep.mubr.bf16.mxu0 0
        %2800 = vmatmul.mubr.bf16.gmra.mxu0 %v2711
        %v2801 = vpop.f32.mrf.mxu0
        %v2802 = vadd.f32 0.0, %v2801
        %v2803 = vpop.f32.mrf.mxu0
        %v2804 = vpop.f32.mrf.mxu0
        %v2805 = vadd.f32 0.0, %v2804
        %v2806 = vpop.f32.mrf.mxu0
        %2807 = vmatprep.mubr.bf16.mxu0 0
        %2808 = vmatmul.mubr.bf16.gmra.mxu0 %v2712
        %v2809 = vpop.f32.mrf.mxu0
        %v2810 = vadd.f32 0.0, %v2809
        %v2811 = vpop.f32.mrf.mxu0
        %v2812 = vpop.f32.mrf.mxu0
        %v2813 = vadd.f32 0.0, %v2812
        %v2814 = vpop.f32.mrf.mxu0
        %2815 = vmatprep.mubr.bf16.mxu0 0
        %2816 = vmatmul.mubr.bf16.gmra.mxu0 %v2713
        %v2817 = vpop.f32.mrf.mxu0
        %v2818 = vadd.f32 0.0, %v2817
        %v2819 = vpop.f32.mrf.mxu0
        %v2820 = vpop.f32.mrf.mxu0
        %v2821 = vadd.f32 0.0, %v2820
        %v2822 = vpop.f32.mrf.mxu0
        %2823 = vmatprep.mubr.bf16.mxu0 0
        %2824 = vmatmul.mubr.bf16.gmra.mxu0 %v2714
        %v2825 = vpop.f32.mrf.mxu0
        %v2826 = vadd.f32 0.0, %v2825
        %v2827 = vpop.f32.mrf.mxu0
        %v2828 = vpop.f32.mrf.mxu0
        %v2829 = vadd.f32 0.0, %v2828
        %v2830 = vpop.f32.mrf.mxu0
        %2831 = vmatprep.mubr.bf16.mxu0 0
        %2832 = vmatmul.mubr.bf16.gmra.mxu0 %v2715
        %v2833 = vpop.f32.mrf.mxu0
        %v2834 = vadd.f32 0.0, %v2833
        %v2835 = vpop.f32.mrf.mxu0
        %v2836 = vpop.f32.mrf.mxu0
        %v2837 = vadd.f32 0.0, %v2836
        %v2838 = vpop.f32.mrf.mxu0
        %2839 = vmatprep.mubr.bf16.mxu0 0
        %2840 = vmatmul.mubr.bf16.gmra.mxu0 %v2716
        %v2841 = vpop.f32.mrf.mxu0
        %v2842 = vadd.f32 0.0, %v2841
        %v2843 = vpop.f32.mrf.mxu0
        %v2844 = vpop.f32.mrf.mxu0
        %v2845 = vadd.f32 0.0, %v2844
        %v2846 = vpop.f32.mrf.mxu0
        %2847 = vmatprep.mubr.bf16.mxu0 0
        %2848 = vmatmul.mubr.bf16.gmra.mxu0 %v2717
        %v2849 = vpop.f32.mrf.mxu0
        %v2850 = vadd.f32 0.0, %v2849
        %v2851 = vpop.f32.mrf.mxu0
        %v2852 = vpop.f32.mrf.mxu0
        %v2853 = vadd.f32 0.0, %v2852
        %v2854 = vpop.f32.mrf.mxu0
        %2855 = vmatprep.mubr.bf16.mxu0 0
        %2856 = vmatmul.mubr.bf16.gmra.mxu0 %v2718
        %v2857 = vpop.f32.mrf.mxu0
        %v2858 = vadd.f32 0.0, %v2857
        %v2859 = vpop.f32.mrf.mxu0
        %v2860 = vpop.f32.mrf.mxu0
        %v2861 = vadd.f32 0.0, %v2860
        %v2862 = vpop.f32.mrf.mxu0
        %2863 = vdwg.mxu0
        %v2864 = vpack.c.bf16 %v2805, %v2802
        %v2865 = vpack.c.bf16 %v2813, %v2810
        %v2866 = vpack.c.bf16 %v2821, %v2818
        %v2867 = vpack.c.bf16 %v2829, %v2826
        %v2868 = vpack.c.bf16 %v2837, %v2834
        %v2869 = vpack.c.bf16 %v2845, %v2842
        %v2870 = vpack.c.bf16 %v2853, %v2850
        %v2871 = vpack.c.bf16 %v2861, %v2858
        %s2872 = scalar_lea.vmem [#allocation15], 64
        %v2873 = vld [vmem:[%s2872] sm:$0xf]
        %v2874 = vld [vmem:[%s2872 + $0x4] sm:$0xf]
        %v2875 = vld [vmem:[%s2872 + $0x8] sm:$0xf]
        %v2876 = vld [vmem:[%s2872 + $0xc] sm:$0xf]
        %v2877 = vld [vmem:[%s2872 + $0x10] sm:$0xf]
        %v2878 = vld [vmem:[%s2872 + $0x14] sm:$0xf]
        %v2879 = vld [vmem:[%s2872 + $0x18] sm:$0xf]
        %v2880 = vld [vmem:[%s2872 + $0x1c] sm:$0xf]
        %v2881 = vld [vmem:[%s2872 + $0x20] sm:$0xf]
        %v2882 = vld [vmem:[%s2872 + $0x24] sm:$0xf]
        %v2883 = vld [vmem:[%s2872 + $0x28] sm:$0xf]
        %v2884 = vld [vmem:[%s2872 + $0x2c] sm:$0xf]
        %v2885 = vld [vmem:[%s2872 + $0x30] sm:$0xf]
        %v2886 = vld [vmem:[%s2872 + $0x34] sm:$0xf]
        %v2887 = vld [vmem:[%s2872 + $0x38] sm:$0xf]
        %v2888 = vld [vmem:[%s2872 + $0x3c] sm:$0xf]
        %v2905 = vunpack.c.l.b16 %v2873
        %v2906 = vunpack.c.l.b16 %v2874
        %v2907 = vunpack.c.l.b16 %v2875
        %v2908 = vunpack.c.l.b16 %v2876
        %v2909 = vunpack.c.l.b16 %v2877
        %v2910 = vunpack.c.l.b16 %v2878
        %v2911 = vunpack.c.l.b16 %v2879
        %v2912 = vunpack.c.l.b16 %v2880
        %v2913 = vunpack.c.l.b16 %v2881
        %v2914 = vunpack.c.l.b16 %v2882
        %v2915 = vunpack.c.l.b16 %v2883
        %v2916 = vunpack.c.l.b16 %v2884
        %v2917 = vunpack.c.l.b16 %v2885
        %v2918 = vunpack.c.l.b16 %v2886
        %v2919 = vunpack.c.l.b16 %v2887
        %v2920 = vunpack.c.l.b16 %v2888
        %v2921 = vpack.c.b16 %v2906, %v2905
        %v2922 = vpack.c.b16 %v2908, %v2907
        %v2923 = vpack.c.b16 %v2910, %v2909
        %v2924 = vpack.c.b16 %v2912, %v2911
        %v2925 = vpack.c.b16 %v2914, %v2913
        %v2926 = vpack.c.b16 %v2916, %v2915
        %v2927 = vpack.c.b16 %v2918, %v2917
        %v2928 = vpack.c.b16 %v2920, %v2919
        %2937 = vmatprep.subr.bf16.mxu0 0
        %2938 = vmatpush1.bf16.msra.mxu0 %v2928
        %2939 = vmatprep.subr.bf16.mxu0 0
        %2940 = vmatpush1.bf16.msra.mxu0 %v2927
        %2941 = vmatprep.subr.bf16.mxu0 0
        %2942 = vmatpush1.bf16.msra.mxu0 %v2926
        %2943 = vmatprep.subr.bf16.mxu0 0
        %2944 = vmatpush1.bf16.msra.mxu0 %v2925
        %2945 = vmatprep.subr.bf16.mxu0 0
        %2946 = vmatpush1.bf16.msra.mxu0 %v2924
        %2947 = vmatprep.subr.bf16.mxu0 0
        %2948 = vmatpush1.bf16.msra.mxu0 %v2923
        %2949 = vmatprep.subr.bf16.mxu0 0
        %2950 = vmatpush1.bf16.msra.mxu0 %v2922
        %2951 = vmatprep.subr.bf16.mxu0 0
        %2952 = vmatpush1.bf16.msra.mxu0 %v2921
        %2953 = vmatprep.subr.bf16.mxu0 0
        %2954 = vmatpush2.bf16.msra.mxu0 0
        %2955 = vmatprep.subr.bf16.mxu0 0
        %2956 = vmatpush2.bf16.msra.mxu0 0
        %2957 = vmatprep.subr.bf16.mxu0 0
        %2958 = vmatpush2.bf16.msra.mxu0 0
        %2959 = vmatprep.subr.bf16.mxu0 0
        %2960 = vmatpush2.bf16.msra.mxu0 0
        %2961 = vmatprep.subr.bf16.mxu0 0
        %2962 = vmatpush2.bf16.msra.mxu0 0
        %2963 = vmatprep.subr.bf16.mxu0 0
        %2964 = vmatpush2.bf16.msra.mxu0 0
        %2965 = vmatprep.subr.bf16.mxu0 0
        %2966 = vmatpush2.bf16.msra.mxu0 0
        %2967 = vmatprep.subr.bf16.mxu0 0
        %2968 = vmatpush2.bf16.msra.mxu0 0
        %2969 = vmatprep.mubr.bf16.mxu0 0
        %2970 = vmatmul.mubr.bf16.gmra.mxu0 %v2864
        %v2971 = vpop.f32.mrf.mxu0
        %v2972 = vadd.f32 0.0, %v2971
        %v2973 = vpop.f32.mrf.mxu0
        %v2974 = vpop.f32.mrf.mxu0
        %v2975 = vadd.f32 0.0, %v2974
        %v2976 = vpop.f32.mrf.mxu0
        %2977 = vmatprep.mubr.bf16.mxu0 0
        %2978 = vmatmul.mubr.bf16.gmra.mxu0 %v2865
        %v2979 = vpop.f32.mrf.mxu0
        %v2980 = vadd.f32 0.0, %v2979
        %v2981 = vpop.f32.mrf.mxu0
        %v2982 = vpop.f32.mrf.mxu0
        %v2983 = vadd.f32 0.0, %v2982
        %v2984 = vpop.f32.mrf.mxu0
        %2985 = vmatprep.mubr.bf16.mxu0 0
        %2986 = vmatmul.mubr.bf16.gmra.mxu0 %v2866
        %v2987 = vpop.f32.mrf.mxu0
        %v2988 = vadd.f32 0.0, %v2987
        %v2989 = vpop.f32.mrf.mxu0
        %v2990 = vpop.f32.mrf.mxu0
        %v2991 = vadd.f32 0.0, %v2990
        %v2992 = vpop.f32.mrf.mxu0
        %2993 = vmatprep.mubr.bf16.mxu0 0
        %2994 = vmatmul.mubr.bf16.gmra.mxu0 %v2867
        %v2995 = vpop.f32.mrf.mxu0
        %v2996 = vadd.f32 0.0, %v2995
        %v2997 = vpop.f32.mrf.mxu0
        %v2998 = vpop.f32.mrf.mxu0
        %v2999 = vadd.f32 0.0, %v2998
        %v3000 = vpop.f32.mrf.mxu0
        %3001 = vmatprep.mubr.bf16.mxu0 0
        %3002 = vmatmul.mubr.bf16.gmra.mxu0 %v2868
        %v3003 = vpop.f32.mrf.mxu0
        %v3004 = vadd.f32 0.0, %v3003
        %v3005 = vpop.f32.mrf.mxu0
        %v3006 = vpop.f32.mrf.mxu0
        %v3007 = vadd.f32 0.0, %v3006
        %v3008 = vpop.f32.mrf.mxu0
        %3009 = vmatprep.mubr.bf16.mxu0 0
        %3010 = vmatmul.mubr.bf16.gmra.mxu0 %v2869
        %v3011 = vpop.f32.mrf.mxu0
        %v3012 = vadd.f32 0.0, %v3011
        %v3013 = vpop.f32.mrf.mxu0
        %v3014 = vpop.f32.mrf.mxu0
        %v3015 = vadd.f32 0.0, %v3014
        %v3016 = vpop.f32.mrf.mxu0
        %3017 = vmatprep.mubr.bf16.mxu0 0
        %3018 = vmatmul.mubr.bf16.gmra.mxu0 %v2870
        %v3019 = vpop.f32.mrf.mxu0
        %v3020 = vadd.f32 0.0, %v3019
        %v3021 = vpop.f32.mrf.mxu0
        %v3022 = vpop.f32.mrf.mxu0
        %v3023 = vadd.f32 0.0, %v3022
        %v3024 = vpop.f32.mrf.mxu0
        %3025 = vmatprep.mubr.bf16.mxu0 0
        %3026 = vmatmul.mubr.bf16.gmra.mxu0 %v2871
        %v3027 = vpop.f32.mrf.mxu0
        %v3028 = vadd.f32 0.0, %v3027
        %v3029 = vpop.f32.mrf.mxu0
        %v3030 = vpop.f32.mrf.mxu0
        %v3031 = vadd.f32 0.0, %v3030
        %v3032 = vpop.f32.mrf.mxu0
        %3033 = vdwg.mxu0
        %v3050 = vunpack.c.l.b16 %v2202
        %v3051 = vunpack.c.l.b16 %v2203
        %v3052 = vunpack.c.l.b16 %v2204
        %v3053 = vunpack.c.l.b16 %v2205
        %v3054 = vunpack.c.l.b16 %v2206
        %v3055 = vunpack.c.l.b16 %v2207
        %v3056 = vunpack.c.l.b16 %v2208
        %v3057 = vunpack.c.l.b16 %v2209
        %v3058 = vunpack.c.l.b16 %v2210
        %v3059 = vunpack.c.l.b16 %v2211
        %v3060 = vunpack.c.l.b16 %v2212
        %v3061 = vunpack.c.l.b16 %v2213
        %v3062 = vunpack.c.l.b16 %v2214
        %v3063 = vunpack.c.l.b16 %v2215
        %v3064 = vunpack.c.l.b16 %v2216
        %v3065 = vunpack.c.l.b16 %v2217
        %v3066 = vpack.c.b16 %v3051, %v3050
        %v3067 = vpack.c.b16 %v3053, %v3052
        %v3068 = vpack.c.b16 %v3055, %v3054
        %v3069 = vpack.c.b16 %v3057, %v3056
        %v3070 = vpack.c.b16 %v3059, %v3058
        %v3071 = vpack.c.b16 %v3061, %v3060
        %v3072 = vpack.c.b16 %v3063, %v3062
        %v3073 = vpack.c.b16 %v3065, %v3064
        %3082 = vmatprep.subr.bf16.mxu0 0
        %3083 = vmatpush1.bf16.msra.mxu0 %v3073
        %3084 = vmatprep.subr.bf16.mxu0 0
        %3085 = vmatpush1.bf16.msra.mxu0 %v3072
        %3086 = vmatprep.subr.bf16.mxu0 0
        %3087 = vmatpush1.bf16.msra.mxu0 %v3071
        %3088 = vmatprep.subr.bf16.mxu0 0
        %3089 = vmatpush1.bf16.msra.mxu0 %v3070
        %3090 = vmatprep.subr.bf16.mxu0 0
        %3091 = vmatpush1.bf16.msra.mxu0 %v3069
        %3092 = vmatprep.subr.bf16.mxu0 0
        %3093 = vmatpush1.bf16.msra.mxu0 %v3068
        %3094 = vmatprep.subr.bf16.mxu0 0
        %3095 = vmatpush1.bf16.msra.mxu0 %v3067
        %3096 = vmatprep.subr.bf16.mxu0 0
        %3097 = vmatpush1.bf16.msra.mxu0 %v3066
        %3098 = vmatprep.subr.bf16.mxu0 0
        %3099 = vmatpush2.bf16.msra.mxu0 0
        %3100 = vmatprep.subr.bf16.mxu0 0
        %3101 = vmatpush2.bf16.msra.mxu0 0
        %3102 = vmatprep.subr.bf16.mxu0 0
        %3103 = vmatpush2.bf16.msra.mxu0 0
        %3104 = vmatprep.subr.bf16.mxu0 0
        %3105 = vmatpush2.bf16.msra.mxu0 0
        %3106 = vmatprep.subr.bf16.mxu0 0
        %3107 = vmatpush2.bf16.msra.mxu0 0
        %3108 = vmatprep.subr.bf16.mxu0 0
        %3109 = vmatpush2.bf16.msra.mxu0 0
        %3110 = vmatprep.subr.bf16.mxu0 0
        %3111 = vmatpush2.bf16.msra.mxu0 0
        %3112 = vmatprep.subr.bf16.mxu0 0
        %3113 = vmatpush2.bf16.msra.mxu0 0
        %3114 = vmatprep.mubr.bf16.mxu0 0
        %3115 = vmatmul.mubr.bf16.gmra.mxu0 %v2194
        %v3116 = vpop.f32.mrf.mxu0
        %v3117 = vadd.f32 %v2972, %v3116
        %v3118 = vpop.f32.mrf.mxu0
        %v3119 = vpop.f32.mrf.mxu0
        %v3120 = vadd.f32 %v2975, %v3119
        %v3121 = vpop.f32.mrf.mxu0
        %3122 = vmatprep.mubr.bf16.mxu0 0
        %3123 = vmatmul.mubr.bf16.gmra.mxu0 %v2195
        %v3124 = vpop.f32.mrf.mxu0
        %v3125 = vadd.f32 %v2980, %v3124
        %v3126 = vpop.f32.mrf.mxu0
        %v3127 = vpop.f32.mrf.mxu0
        %v3128 = vadd.f32 %v2983, %v3127
        %v3129 = vpop.f32.mrf.mxu0
        %3130 = vmatprep.mubr.bf16.mxu0 0
        %3131 = vmatmul.mubr.bf16.gmra.mxu0 %v2196
        %v3132 = vpop.f32.mrf.mxu0
        %v3133 = vadd.f32 %v2988, %v3132
        %v3134 = vpop.f32.mrf.mxu0
        %v3135 = vpop.f32.mrf.mxu0
        %v3136 = vadd.f32 %v2991, %v3135
        %v3137 = vpop.f32.mrf.mxu0
        %3138 = vmatprep.mubr.bf16.mxu0 0
        %3139 = vmatmul.mubr.bf16.gmra.mxu0 %v2197
        %v3140 = vpop.f32.mrf.mxu0
        %v3141 = vadd.f32 %v2996, %v3140
        %v3142 = vpop.f32.mrf.mxu0
        %v3143 = vpop.f32.mrf.mxu0
        %v3144 = vadd.f32 %v2999, %v3143
        %v3145 = vpop.f32.mrf.mxu0
        %3146 = vmatprep.mubr.bf16.mxu0 0
        %3147 = vmatmul.mubr.bf16.gmra.mxu0 %v2198
        %v3148 = vpop.f32.mrf.mxu0
        %v3149 = vadd.f32 %v3004, %v3148
        %v3150 = vpop.f32.mrf.mxu0
        %v3151 = vpop.f32.mrf.mxu0
        %v3152 = vadd.f32 %v3007, %v3151
        %v3153 = vpop.f32.mrf.mxu0
        %3154 = vmatprep.mubr.bf16.mxu0 0
        %3155 = vmatmul.mubr.bf16.gmra.mxu0 %v2199
        %v3156 = vpop.f32.mrf.mxu0
        %v3157 = vadd.f32 %v3012, %v3156
        %v3158 = vpop.f32.mrf.mxu0
        %v3159 = vpop.f32.mrf.mxu0
        %v3160 = vadd.f32 %v3015, %v3159
        %v3161 = vpop.f32.mrf.mxu0
        %3162 = vmatprep.mubr.bf16.mxu0 0
        %3163 = vmatmul.mubr.bf16.gmra.mxu0 %v2200
        %v3164 = vpop.f32.mrf.mxu0
        %v3165 = vadd.f32 %v3020, %v3164
        %v3166 = vpop.f32.mrf.mxu0
        %v3167 = vpop.f32.mrf.mxu0
        %v3168 = vadd.f32 %v3023, %v3167
        %v3169 = vpop.f32.mrf.mxu0
        %3170 = vmatprep.mubr.bf16.mxu0 0
        %3171 = vmatmul.mubr.bf16.gmra.mxu0 %v2201
        %v3172 = vpop.f32.mrf.mxu0
        %v3173 = vadd.f32 %v3028, %v3172
        %v3174 = vpop.f32.mrf.mxu0
        %v3175 = vpop.f32.mrf.mxu0
        %v3176 = vadd.f32 %v3031, %v3175
        %v3177 = vpop.f32.mrf.mxu0
        %3178 = vdwg.mxu0
        %v3179 = vadd.f32 %v3117, %v1527
        %v3180 = vadd.f32 %v3120, %v1528
        %v3181 = vadd.f32 %v3125, %v1529
        %v3182 = vadd.f32 %v3128, %v1530
        %v3183 = vadd.f32 %v3133, %v1531
        %v3184 = vadd.f32 %v3136, %v1532
        %v3185 = vadd.f32 %v3141, %v1533
        %v3186 = vadd.f32 %v3144, %v1534
        %v3187 = vadd.f32 %v3149, %v1535
        %v3188 = vadd.f32 %v3152, %v1536
        %v3189 = vadd.f32 %v3157, %v1537
        %v3190 = vadd.f32 %v3160, %v1538
        %v3191 = vadd.f32 %v3165, %v1539
        %v3192 = vadd.f32 %v3168, %v1540
        %v3193 = vadd.f32 %v3173, %v1541
        %v3194 = vadd.f32 %v3176, %v1542
        %3195 = vadd.xlane.f32.xlu0 %v3179
        %v3196 = vpop.xlane.xlu0 %3195
        %3197 = vadd.xlane.f32.xlu0 %v3180
        %v3198 = vpop.xlane.xlu0 %3197
        %3199 = vadd.xlane.f32.xlu0 %v3181
        %v3200 = vpop.xlane.xlu0 %3199
        %3201 = vadd.xlane.f32.xlu0 %v3182
        %v3202 = vpop.xlane.xlu0 %3201
        %3203 = vadd.xlane.f32.xlu0 %v3183
        %v3204 = vpop.xlane.xlu0 %3203
        %3205 = vadd.xlane.f32.xlu0 %v3184
        %v3206 = vpop.xlane.xlu0 %3205
        %3207 = vadd.xlane.f32.xlu0 %v3185
        %v3208 = vpop.xlane.xlu0 %3207
        %3209 = vadd.xlane.f32.xlu0 %v3186
        %v3210 = vpop.xlane.xlu0 %3209
        %3211 = vadd.xlane.f32.xlu0 %v3187
        %v3212 = vpop.xlane.xlu0 %3211
        %3213 = vadd.xlane.f32.xlu0 %v3188
        %v3214 = vpop.xlane.xlu0 %3213
        %3215 = vadd.xlane.f32.xlu0 %v3189
        %v3216 = vpop.xlane.xlu0 %3215
        %3217 = vadd.xlane.f32.xlu0 %v3190
        %v3218 = vpop.xlane.xlu0 %3217
        %3219 = vadd.xlane.f32.xlu0 %v3191
        %v3220 = vpop.xlane.xlu0 %3219
        %3221 = vadd.xlane.f32.xlu0 %v3192
        %v3222 = vpop.xlane.xlu0 %3221
        %3223 = vadd.xlane.f32.xlu0 %v3193
        %v3224 = vpop.xlane.xlu0 %3223
        %3225 = vadd.xlane.f32.xlu0 %v3194
        %v3226 = vpop.xlane.xlu0 %3225
        %v3227 = vrcp.pop 128.0
        %v3228 = vmul.f32 %v3196, %v3227
        %v3229 = vmul.f32 %v3198, %v3227
        %v3230 = vmul.f32 %v3200, %v3227
        %v3231 = vmul.f32 %v3202, %v3227
        %v3232 = vmul.f32 %v3204, %v3227
        %v3233 = vmul.f32 %v3206, %v3227
        %v3234 = vmul.f32 %v3208, %v3227
        %v3235 = vmul.f32 %v3210, %v3227
        %v3236 = vmul.f32 %v3212, %v3227
        %v3237 = vmul.f32 %v3214, %v3227
        %v3238 = vmul.f32 %v3216, %v3227
        %v3239 = vmul.f32 %v3218, %v3227
        %v3240 = vmul.f32 %v3220, %v3227
        %v3241 = vmul.f32 %v3222, %v3227
        %v3242 = vmul.f32 %v3224, %v3227
        %v3243 = vmul.f32 %v3226, %v3227
        %v3244 = vsub.f32 %v3179, %v3228
        %v3245 = vsub.f32 %v3180, %v3229
        %v3246 = vsub.f32 %v3181, %v3230
        %v3247 = vsub.f32 %v3182, %v3231
        %v3248 = vsub.f32 %v3183, %v3232
        %v3249 = vsub.f32 %v3184, %v3233
        %v3250 = vsub.f32 %v3185, %v3234
        %v3251 = vsub.f32 %v3186, %v3235
        %v3252 = vsub.f32 %v3187, %v3236
        %v3253 = vsub.f32 %v3188, %v3237
        %v3254 = vsub.f32 %v3189, %v3238
        %v3255 = vsub.f32 %v3190, %v3239
        %v3256 = vsub.f32 %v3191, %v3240
        %v3257 = vsub.f32 %v3192, %v3241
        %v3258 = vsub.f32 %v3193, %v3242
        %v3259 = vsub.f32 %v3194, %v3243
        %v3260 = vmul.f32 %v3244, %v3244
        %v3261 = vmul.f32 %v3245, %v3245
        %v3262 = vmul.f32 %v3246, %v3246
        %v3263 = vmul.f32 %v3247, %v3247
        %v3264 = vmul.f32 %v3248, %v3248
        %v3265 = vmul.f32 %v3249, %v3249
        %v3266 = vmul.f32 %v3250, %v3250
        %v3267 = vmul.f32 %v3251, %v3251
        %v3268 = vmul.f32 %v3252, %v3252
        %v3269 = vmul.f32 %v3253, %v3253
        %v3270 = vmul.f32 %v3254, %v3254
        %v3271 = vmul.f32 %v3255, %v3255
        %v3272 = vmul.f32 %v3256, %v3256
        %v3273 = vmul.f32 %v3257, %v3257
        %v3274 = vmul.f32 %v3258, %v3258
        %v3275 = vmul.f32 %v3259, %v3259
        %3276 = vadd.xlane.f32.xlu0 %v3260
        %v3277 = vpop.xlane.xlu0 %3276
        %3278 = vadd.xlane.f32.xlu0 %v3261
        %v3279 = vpop.xlane.xlu0 %3278
        %3280 = vadd.xlane.f32.xlu0 %v3262
        %v3281 = vpop.xlane.xlu0 %3280
        %3282 = vadd.xlane.f32.xlu0 %v3263
        %v3283 = vpop.xlane.xlu0 %3282
        %3284 = vadd.xlane.f32.xlu0 %v3264
        %v3285 = vpop.xlane.xlu0 %3284
        %3286 = vadd.xlane.f32.xlu0 %v3265
        %v3287 = vpop.xlane.xlu0 %3286
        %3288 = vadd.xlane.f32.xlu0 %v3266
        %v3289 = vpop.xlane.xlu0 %3288
        %3290 = vadd.xlane.f32.xlu0 %v3267
        %v3291 = vpop.xlane.xlu0 %3290
        %3292 = vadd.xlane.f32.xlu0 %v3268
        %v3293 = vpop.xlane.xlu0 %3292
        %3294 = vadd.xlane.f32.xlu0 %v3269
        %v3295 = vpop.xlane.xlu0 %3294
        %3296 = vadd.xlane.f32.xlu0 %v3270
        %v3297 = vpop.xlane.xlu0 %3296
        %3298 = vadd.xlane.f32.xlu0 %v3271
        %v3299 = vpop.xlane.xlu0 %3298
        %3300 = vadd.xlane.f32.xlu0 %v3272
        %v3301 = vpop.xlane.xlu0 %3300
        %3302 = vadd.xlane.f32.xlu0 %v3273
        %v3303 = vpop.xlane.xlu0 %3302
        %3304 = vadd.xlane.f32.xlu0 %v3274
        %v3305 = vpop.xlane.xlu0 %3304
        %3306 = vadd.xlane.f32.xlu0 %v3275
        %v3307 = vpop.xlane.xlu0 %3306
        %v3308 = vmul.f32 %v3277, %v3227
        %v3309 = vmul.f32 %v3279, %v3227
        %v3310 = vmul.f32 %v3281, %v3227
        %v3311 = vmul.f32 %v3283, %v3227
        %v3312 = vmul.f32 %v3285, %v3227
        %v3313 = vmul.f32 %v3287, %v3227
        %v3314 = vmul.f32 %v3289, %v3227
        %v3315 = vmul.f32 %v3291, %v3227
        %v3316 = vmul.f32 %v3293, %v3227
        %v3317 = vmul.f32 %v3295, %v3227
        %v3318 = vmul.f32 %v3297, %v3227
        %v3319 = vmul.f32 %v3299, %v3227
        %v3320 = vmul.f32 %v3301, %v3227
        %v3321 = vmul.f32 %v3303, %v3227
        %v3322 = vmul.f32 %v3305, %v3227
        %v3323 = vmul.f32 %v3307, %v3227
        %v3324 = vadd.f32 %v3308, 1e-06
        %v3325 = vadd.f32 %v3309, 1e-06
        %v3326 = vadd.f32 %v3310, 1e-06
        %v3327 = vadd.f32 %v3311, 1e-06
        %v3328 = vadd.f32 %v3312, 1e-06
        %v3329 = vadd.f32 %v3313, 1e-06
        %v3330 = vadd.f32 %v3314, 1e-06
        %v3331 = vadd.f32 %v3315, 1e-06
        %v3332 = vadd.f32 %v3316, 1e-06
        %v3333 = vadd.f32 %v3317, 1e-06
        %v3334 = vadd.f32 %v3318, 1e-06
        %v3335 = vadd.f32 %v3319, 1e-06
        %v3336 = vadd.f32 %v3320, 1e-06
        %v3337 = vadd.f32 %v3321, 1e-06
        %v3338 = vadd.f32 %v3322, 1e-06
        %v3339 = vadd.f32 %v3323, 1e-06
        %v3340 = vrsqrt.pop %v3324
        %v3341 = vrsqrt.pop %v3325
        %v3342 = vrsqrt.pop %v3326
        %v3343 = vrsqrt.pop %v3327
        %v3344 = vrsqrt.pop %v3328
        %v3345 = vrsqrt.pop %v3329
        %v3346 = vrsqrt.pop %v3330
        %v3347 = vrsqrt.pop %v3331
        %v3348 = vrsqrt.pop %v3332
        %v3349 = vrsqrt.pop %v3333
        %v3350 = vrsqrt.pop %v3334
        %v3351 = vrsqrt.pop %v3335
        %v3352 = vrsqrt.pop %v3336
        %v3353 = vrsqrt.pop %v3337
        %v3354 = vrsqrt.pop %v3338
        %v3355 = vrsqrt.pop %v3339
        %v3356 = vmul.f32 %v3244, %v3340
        %v3357 = vmul.f32 %v3245, %v3341
        %v3358 = vmul.f32 %v3246, %v3342
        %v3359 = vmul.f32 %v3247, %v3343
        %v3360 = vmul.f32 %v3248, %v3344
        %v3361 = vmul.f32 %v3249, %v3345
        %v3362 = vmul.f32 %v3250, %v3346
        %v3363 = vmul.f32 %v3251, %v3347
        %v3364 = vmul.f32 %v3252, %v3348
        %v3365 = vmul.f32 %v3253, %v3349
        %v3366 = vmul.f32 %v3254, %v3350
        %v3367 = vmul.f32 %v3255, %v3351
        %v3368 = vmul.f32 %v3256, %v3352
        %v3369 = vmul.f32 %v3257, %v3353
        %v3370 = vmul.f32 %v3258, %v3354
        %v3371 = vmul.f32 %v3259, %v3355
        %v3372 = vld [vmem:[%s7] sm:$0x1]
        %v3374 = vlaneseq
        %v3375 = vshrl.u32 %v3374, 7
        %v3376 = vsub.s32 0, %v3375
        %v3377 = vrot.slane %v3372, %v3376
        %v3379 = vmul.f32 %v3356, %v3377
        %v3380 = vmul.f32 %v3357, %v3377
        %v3381 = vmul.f32 %v3358, %v3377
        %v3382 = vmul.f32 %v3359, %v3377
        %v3383 = vmul.f32 %v3360, %v3377
        %v3384 = vmul.f32 %v3361, %v3377
        %v3385 = vmul.f32 %v3362, %v3377
        %v3386 = vmul.f32 %v3363, %v3377
        %v3387 = vmul.f32 %v3364, %v3377
        %v3388 = vmul.f32 %v3365, %v3377
        %v3389 = vmul.f32 %v3366, %v3377
        %v3390 = vmul.f32 %v3367, %v3377
        %v3391 = vmul.f32 %v3368, %v3377
        %v3392 = vmul.f32 %v3369, %v3377
        %v3393 = vmul.f32 %v3370, %v3377
        %v3394 = vmul.f32 %v3371, %v3377
        %v3395 = vld [vmem:[%s8] sm:$0x1]
        %v3397 = vlaneseq
        %v3398 = vshrl.u32 %v3397, 7
        %v3399 = vsub.s32 0, %v3398
        %v3400 = vrot.slane %v3395, %v3399
        %v3402 = vadd.f32 %v3379, %v3400
        %v3403 = vadd.f32 %v3380, %v3400
        %v3404 = vadd.f32 %v3381, %v3400
        %v3405 = vadd.f32 %v3382, %v3400
        %v3406 = vadd.f32 %v3383, %v3400
        %v3407 = vadd.f32 %v3384, %v3400
        %v3408 = vadd.f32 %v3385, %v3400
        %v3409 = vadd.f32 %v3386, %v3400
        %v3410 = vadd.f32 %v3387, %v3400
        %v3411 = vadd.f32 %v3388, %v3400
        %v3412 = vadd.f32 %v3389, %v3400
        %v3413 = vadd.f32 %v3390, %v3400
        %v3414 = vadd.f32 %v3391, %v3400
        %v3415 = vadd.f32 %v3392, %v3400
        %v3416 = vadd.f32 %v3393, %v3400
        %v3417 = vadd.f32 %v3394, %v3400
        %3418 = vst [vmem:[%s503] sm:$0xff] %v3402
        %3419 = vst [vmem:[%s503 + $0x8] sm:$0xff] %v3403
        %3420 = vst [vmem:[%s503 + $0x10] sm:$0xff] %v3404
        %3421 = vst [vmem:[%s503 + $0x18] sm:$0xff] %v3405
        %3422 = vst [vmem:[%s503 + $0x20] sm:$0xff] %v3406
        %3423 = vst [vmem:[%s503 + $0x28] sm:$0xff] %v3407
        %3424 = vst [vmem:[%s503 + $0x30] sm:$0xff] %v3408
        %3425 = vst [vmem:[%s503 + $0x38] sm:$0xff] %v3409
        %3426 = vst [vmem:[%s503 + $0x40] sm:$0xff] %v3410
        %3427 = vst [vmem:[%s503 + $0x48] sm:$0xff] %v3411
        %3428 = vst [vmem:[%s503 + $0x50] sm:$0xff] %v3412
        %3429 = vst [vmem:[%s503 + $0x58] sm:$0xff] %v3413
        %3430 = vst [vmem:[%s503 + $0x60] sm:$0xff] %v3414
        %3431 = vst [vmem:[%s503 + $0x68] sm:$0xff] %v3415
        %3432 = vst [vmem:[%s503 + $0x70] sm:$0xff] %v3416
        %3433 = vst [vmem:[%s503 + $0x78] sm:$0xff] %v3417
        %s3434 = sand.u32 %s259, 1
        %s3435 = scalar_lea.sflag [#allocation6], %s3434
        %s3436 = sand.u32 %s259, 1
        %s3437 = smul.addr %s3436, 128
        %s3438 = scalar_lea.vmem [#allocation16], %s3437
        // Predicated region
        $region89: #{tpu_custom_call.1} parent=55 // pred_check
          %p3439 = pneg %p269
        $region90: #{tpu_custom_call.1} parent=55 // pred_check_branch
          %3441 = sbr.rel (%p3439) target = $region92
        $region91: #{tpu_custom_call.1} parent=55 // pred_region
          %s3442 = smul.u32 16, %s36
          %s3444 = ssub.s32 2048, 2048
          %3445 = vsyncadd %s3435, %s3444
          %s3446 = smul.addr %s35, 16
          %s3447 = sadd.s32 %s3442, %s3446
          %s3448 = smul.addr %s3447, 128
          %s3449 = scalar_lea.hbm %s9, %s3448
          %s3450 = sshll.u32 %s3438, 4
          %s3451 = int_to_ptr.vmem [resolvable:$true] %s3450
          %3456 = dma.vmem_to_hbm [thread:$0]  %s3451, 2048, %s3449, %s3435, 128, 128, 8
        $region92: #{tpu_custom_call.1} parent=55 // pred_fallthru
          _
      $region56: #{tpu_custom_call.1} parent=5 // pred_fallthru
        _
      %p3457 = scmp.le.s32.totalorder 2, %s26
      // Predicated region
      $region93: #{tpu_custom_call.1} parent=5 // pred_check
        %p3458 = pneg %p3457
      $region94: #{tpu_custom_call.1} parent=5 // pred_check_branch
        %3460 = sbr.rel (%p3458) target = $region96
      $region95: #{tpu_custom_call.1} parent=5 // pred_region
        %s3461 = ssub.s32 %s26, 2
        // Predicated region
        $region97: #{tpu_custom_call.1} parent=95 // pred_check
          %p3462 = pneg %p275
        $region98: #{tpu_custom_call.1} parent=95 // pred_check_branch
          %3464 = sbr.rel (%p3462) target = $region100
        $region99: #{tpu_custom_call.1} parent=95 // pred_region
          %s3465 = sand.u32 %s260, 1
          %s3466 = scalar_lea.sflag [#allocation6], %s3465
          %s3467 = sand.u32 %s260, 1
          %s3468 = smul.addr %s3467, 128
          %s3469 = scalar_lea.vmem [#allocation16], %s3468
          %3470 = dma.done %s3466, 2048
        $region100: #{tpu_custom_call.1} parent=95 // pred_fallthru
          _
      $region96: #{tpu_custom_call.1} parent=5 // pred_fallthru
        _
    $region6: #{tpu_custom_call.1} parent=1 // loop_footer
      %s30 = sadd.s32 1, %s26
    $region7: #{tpu_custom_call.1} parent=1 // loop_footer_branch
      %25 = sbr.rel target = $region3
    $region8: #{tpu_custom_call.1} parent=1 // loop_exit
      _
    %3471 = vsyncpa [#allocation5], 1
    %s3472 = scalar_lea.sflag [#allocation5], 1
    %3473 = vsyncpa %s3472, 1
    %3474 = vsyncpa [#allocation8], 1
    %s3475 = scalar_lea.sflag [#allocation8], 1
    %3476 = vsyncpa %s3475, 1
    %3477 = vsyncpa [#allocation11], 1
    %3478 = vsyncpa [#allocation14], 1
    %3479 = vsyncpa [#allocation6], 1
    %s3480 = scalar_lea.sflag [#allocation6], 1
    %3481 = vsyncpa %s3480, 1

</llo_original>
